<compile_context>
chip_gen: v5e
topology: v5e:2x2
jax: 0.10.0
libtpu: 0.0.40
codegen_flags: <defaults>
</compile_context>

<pallas_src>
import functools
import math

import jax
import jax.numpy as jnp
from jax.experimental import pallas as pl
from jax.experimental.pallas import tpu as pltpu

# ---- small config consistent with the module's forward ----
VOCAB = 128
N_EMBD = 128
N_HEAD = 4
N_LAYER = 2
BLOCK_SIZE = 32
FFN = 4 * N_EMBD
LN_EPS = 1e-5
HEAD_DIM = N_EMBD // N_HEAD
INV_SQRT2 = 1.0 / math.sqrt(2.0)


def _layer_norm(x, gamma, beta):
    # two-pass (centered) LN: numerically robust under bf16 MXU inputs
    mu = jnp.mean(x, axis=-1, keepdims=True)
    xc = x - mu
    var = jnp.mean(xc * xc, axis=-1, keepdims=True)
    return xc * jax.lax.rsqrt(var + LN_EPS) * gamma + beta


def _gelu_exact(x):
    # PyTorch F.gelu default (erf-based, exact); erf runs on the EUP
    return 0.5 * x * (1.0 + jax.lax.erf(x * INV_SQRT2))


# --------------------------------------------------------------------------
# Fully fused forward: token ids -> logits, one kernel invocation.
# --------------------------------------------------------------------------
def mini_gpt2_kernel(idx_ref, tok_ref, pos_ref,
                     wqkv_ref, bqkv_ref, wo_ref, bo_ref, g1_ref, be1_ref,
                     w1_ref, b1_ref, w2_ref, b2_ref, g2_ref, be2_ref,
                     gf_ref, bf_ref, wh_ref, bh_ref,
                     out_ref, *, batch, seq):
    f32 = jnp.float32
    bf16 = jnp.bfloat16
    BT = batch * seq
    E, H, hd = N_EMBD, N_HEAD, HEAD_DIM

    # ---- token embedding as one-hot @ table (exact gather, on the MXU) ----
    ids = idx_ref[...]                                               # (BT, 1) int32
    cols = jax.lax.broadcasted_iota(jnp.int32, (BT, VOCAB), 1)
    onehot = (cols == ids).astype(bf16)                              # (BT, V)
    tok = jnp.dot(onehot, tok_ref[...], preferred_element_type=f32)  # (BT, E) f32
    # broadcast (T, E) positional table across batch inside the kernel
    x = (tok.reshape(batch, seq, E) + pos_ref[...]).reshape(BT, E)

    for l in range(N_LAYER):                                         # static unroll
        # ---------------- multi-head self attention (no mask, eval) --------
        # fused QKV projection: one (BT,E)x(E,3E) matmul; scale folded into Q
        qkv = jnp.dot(x.astype(bf16), wqkv_ref[l],
                      preferred_element_type=f32) + bqkv_ref[l]      # (BT, 3E) f32

        ctx_heads = []
        for h in range(H):                                           # static unroll
            q = qkv[:, h * hd:(h + 1) * hd].reshape(batch, seq, hd).astype(bf16)
            k = qkv[:, E + h * hd:E + (h + 1) * hd].reshape(batch, seq, hd).astype(bf16)
            v = qkv[:, 2 * E + h * hd:2 * E + (h + 1) * hd].reshape(batch, seq, hd).astype(bf16)
            # scores / softmax kept in f32
            s = jnp.einsum('bqd,bkd->bqk', q, k, preferred_element_type=f32)
            s = s - jnp.max(s, axis=-1, keepdims=True)
            p = jnp.exp(s)
            p = p * pl.reciprocal(jnp.sum(p, axis=-1, keepdims=True), approx=True)
            ctx = jnp.einsum('bqk,bkd->bqd', p.astype(bf16), v,
                             preferred_element_type=f32)
            ctx_heads.append(ctx.reshape(BT, hd))

        # single K=128 output projection over the concatenated heads
        ctx = jnp.concatenate(ctx_heads, axis=-1)                    # (BT, E)
        attn = jnp.dot(ctx.astype(bf16), wo_ref[l],
                       preferred_element_type=f32) + bo_ref[l]
        x = _layer_norm(x + attn, g1_ref[l], be1_ref[l])

        # ---------------- feed forward (gelu, eval: no dropout) ------------
        h1 = _gelu_exact(jnp.dot(x.astype(bf16), w1_ref[l],
                                 preferred_element_type=f32) + b1_ref[l])
        ff = jnp.dot(h1.astype(bf16), w2_ref[l],
                     preferred_element_type=f32) + b2_ref[l]
        x = _layer_norm(x + ff, g2_ref[l], be2_ref[l])

    # ---- final LayerNorm + vocab head ----
    xn = _layer_norm(x, gf_ref[...], bf_ref[...])
    out_ref[...] = jnp.dot(xn.astype(bf16), wh_ref[...],
                           preferred_element_type=f32) + bh_ref[...]


def _full_spec(shape):
    # whole array resident in VMEM; grid has a single (dummy) step
    return pl.BlockSpec(shape, lambda i: (0,) * len(shape))


def mini_gpt2_forward(idx, params):
    B, T = idx.shape
    E = N_EMBD
    scale = 1.0 / math.sqrt(HEAD_DIM)
    bf16 = jnp.bfloat16

    # ---- host/XLA-side packing (once, outside the kernel) ------------------
    layers = params["layers"]
    # fold 1/sqrt(head_dim) into the Q columns / Q bias; weights -> bf16
    wqkv = jnp.stack([lp["wqkv"].at[:, :E].multiply(scale) for lp in layers]).astype(bf16)
    bqkv = jnp.stack([lp["bqkv"].at[:, :E].multiply(scale) for lp in layers])
    wo = jnp.stack([lp["wo"] for lp in layers]).astype(bf16)
    bo = jnp.stack([lp["bo"] for lp in layers])
    g1 = jnp.stack([lp["g1"] for lp in layers])
    be1 = jnp.stack([lp["be1"] for lp in layers])
    w1 = jnp.stack([lp["w1"] for lp in layers]).astype(bf16)
    b1 = jnp.stack([lp["b1"] for lp in layers])
    w2 = jnp.stack([lp["w2"] for lp in layers]).astype(bf16)
    b2 = jnp.stack([lp["b2"] for lp in layers])
    g2 = jnp.stack([lp["g2"] for lp in layers])
    be2 = jnp.stack([lp["be2"] for lp in layers])

    idx_flat = idx.reshape(B * T, 1).astype(jnp.int32)
    pos = params["pos_emb"][0, :T, :]                 # (T, E), broadcast in-kernel

    inputs = [
        idx_flat, params["token_emb"].astype(bf16), pos,
        wqkv, bqkv, wo, bo, g1, be1, w1, b1, w2, b2, g2, be2,
        params["ln_f_g"], params["ln_f_b"],
        params["w_head"].astype(bf16), params["b_head"],
    ]

    kernel = functools.partial(mini_gpt2_kernel, batch=B, seq=T)
    logits = pl.pallas_call(
        kernel,
        out_shape=jax.ShapeDtypeStruct((B * T, VOCAB), jnp.float32),
        grid=(1,),
        in_specs=[_full_spec(a.shape) for a in inputs],
        out_specs=_full_spec((B * T, VOCAB)),
        compiler_params=pltpu.CompilerParams(dimension_semantics=("arbitrary",)),
    )(*inputs)
    return logits.reshape(B, T, VOCAB)


# --------------------------------------------------------------------------
# Parameter construction (deterministic, synthetic; PyTorch-like layout with
# weights stored transposed as (in_features, out_features)).
# --------------------------------------------------------------------------
def init_params(key):
    E, F, V = N_EMBD, FFN, VOCAB
    keys = jax.random.split(key, 2 + 4 * N_LAYER)
    params = {
        "token_emb": 0.02 * jax.random.normal(keys[0], (V, E), jnp.float32),
        "pos_emb": jnp.zeros((1, BLOCK_SIZE, E), jnp.float32),   # torch inits zeros
        "ln_f_g": jnp.ones((1, E), jnp.float32),
        "ln_f_b": jnp.zeros((1, E), jnp.float32),
        "w_head": 0.02 * jax.random.normal(keys[1], (E, V), jnp.float32),
        "b_head": jnp.zeros((1, V), jnp.float32),
        "layers": [],
    }
    for l in range(N_LAYER):
        k0, k1, k2, k3 = keys[2 + 4 * l: 2 + 4 * (l + 1)]
        params["layers"].append({
            "wqkv": 0.02 * jax.random.normal(k0, (E, 3 * E), jnp.float32),
            "bqkv": jnp.zeros((1, 3 * E), jnp.float32),
            "wo":   0.02 * jax.random.normal(k1, (E, E), jnp.float32),
            "bo":   jnp.zeros((1, E), jnp.float32),
            "g1":   jnp.ones((1, E), jnp.float32),
            "be1":  jnp.zeros((1, E), jnp.float32),
            "w1":   0.02 * jax.random.normal(k2, (E, F), jnp.float32),
            "b1":   jnp.zeros((1, F), jnp.float32),
            "w2":   0.02 * jax.random.normal(k3, (F, E), jnp.float32),
            "b2":   jnp.zeros((1, E), jnp.float32),
            "g2":   jnp.ones((1, E), jnp.float32),
            "be2":  jnp.zeros((1, E), jnp.float32),
        })
    return params


# --------------------------------------------------------------------------
# Pure-JAX (non-Pallas) f32 reference mirroring the PyTorch module.
# --------------------------------------------------------------------------
def _ref_layer_norm(x, g, b):
    mu = jnp.mean(x, axis=-1, keepdims=True)
    var = jnp.mean((x - mu) ** 2, axis=-1, keepdims=True)
    return (x - mu) * jax.lax.rsqrt(var + LN_EPS) * g + b


def reference_forward(idx, params):
    hp = jax.lax.Precision.HIGHEST
    B, T = idx.shape
    E, H, hd = N_EMBD, N_HEAD, HEAD_DIM
    x = params["token_emb"][idx] + params["pos_emb"][:, :T, :]
    for lp in params["layers"]:
        qkv = jnp.einsum('bte,ef->btf', x, lp["wqkv"], precision=hp) + lp["bqkv"]
        q, k, v = qkv[..., :E], qkv[..., E:2 * E], qkv[..., 2 * E:]
        q = q.reshape(B, T, H, hd).transpose(0, 2, 1, 3)
        k = k.reshape(B, T, H, hd).transpose(0, 2, 1, 3)
        v = v.reshape(B, T, H, hd).transpose(0, 2, 1, 3)
        s = jnp.einsum('bhqd,bhkd->bhqk', q, k, precision=hp) / math.sqrt(hd)
        p = jax.nn.softmax(s, axis=-1)
        ctx = jnp.einsum('bhqk,bhkd->bhqd', p, v, precision=hp)
        ctx = ctx.transpose(0, 2, 1, 3).reshape(B, T, E)
        attn = jnp.einsum('bte,ef->btf', ctx, lp["wo"], precision=hp) + lp["bo"]
        x = _ref_layer_norm(x + attn, lp["g1"], lp["be1"])
        h1 = jax.nn.gelu(jnp.einsum('bte,ef->btf', x, lp["w1"], precision=hp) + lp["b1"],
                         approximate=False)
        ff = jnp.einsum('btf,fe->bte', h1, lp["w2"], precision=hp) + lp["b2"]
        x = _ref_layer_norm(x + ff, lp["g2"], lp["be2"])
    x = _ref_layer_norm(x, params["ln_f_g"], params["ln_f_b"])
    return jnp.einsum('bte,ev->btv', x, params["w_head"], precision=hp) + params["b_head"]


if __name__ == "__main__":
    key = jax.random.PRNGKey(0)
    k_param, k_idx = jax.random.split(key)
    params = init_params(k_param)

    B, T = 2, 16
    idx = jax.random.randint(k_idx, (B, T), 0, VOCAB, dtype=jnp.int32)

    logits = jax.jit(mini_gpt2_forward)(idx, params)
    logits = jax.block_until_ready(logits)

    assert logits.shape == (B, T, VOCAB), logits.shape
    assert bool(jnp.all(jnp.isfinite(logits)))

    ref = reference_forward(idx, params)
    max_err = float(jnp.max(jnp.abs(logits - ref)))
    # bf16 MXU operands vs. f32 reference: bf16-level parity tolerance
    assert bool(jnp.allclose(logits, ref, atol=2e-2, rtol=2e-2)), max_err

    print("KERNEL_OK")
</pallas_src>

<mosaic_0001>
module attributes {stable_mosaic.version = 11 : i64} {
  func.func @mini_gpt2_kernel(%arg0: i32, %arg1: memref<32x1xi32, #tpu.memory_space<vmem>>, %arg2: memref<128x128xbf16, #tpu.memory_space<vmem>>, %arg3: memref<16x128xf32, #tpu.memory_space<vmem>>, %arg4: memref<2x128x384xbf16, #tpu.memory_space<vmem>>, %arg5: memref<2x1x384xf32, #tpu.memory_space<vmem>>, %arg6: memref<2x128x128xbf16, #tpu.memory_space<vmem>>, %arg7: memref<2x1x128xf32, #tpu.memory_space<vmem>>, %arg8: memref<2x1x128xf32, #tpu.memory_space<vmem>>, %arg9: memref<2x1x128xf32, #tpu.memory_space<vmem>>, %arg10: memref<2x128x512xbf16, #tpu.memory_space<vmem>>, %arg11: memref<2x1x512xf32, #tpu.memory_space<vmem>>, %arg12: memref<2x512x128xbf16, #tpu.memory_space<vmem>>, %arg13: memref<2x1x128xf32, #tpu.memory_space<vmem>>, %arg14: memref<2x1x128xf32, #tpu.memory_space<vmem>>, %arg15: memref<2x1x128xf32, #tpu.memory_space<vmem>>, %arg16: memref<1x128xf32, #tpu.memory_space<vmem>>, %arg17: memref<1x128xf32, #tpu.memory_space<vmem>>, %arg18: memref<128x128xbf16, #tpu.memory_space<vmem>>, %arg19: memref<1x128xf32, #tpu.memory_space<vmem>>, %arg20: memref<32x128xf32, #tpu.memory_space<vmem>>) attributes {dimension_semantics = [#tpu.dimension_semantics<arbitrary>], iteration_bounds = array<i64: 1>, scalar_prefetch = 0 : i64, scratch_operands = 0 : i64, tpu.core_type = #tpu.core_type<tc>, window_params = [{pipeline_mode = #tpu.pipeline_mode<synchronous>, transform_indices = @transform_0, window_bounds = array<i64: 32, 1>}, {pipeline_mode = #tpu.pipeline_mode<synchronous>, transform_indices = @transform_1, window_bounds = array<i64: 128, 128>}, {pipeline_mode = #tpu.pipeline_mode<synchronous>, transform_indices = @transform_2, window_bounds = array<i64: 16, 128>}, {pipeline_mode = #tpu.pipeline_mode<synchronous>, transform_indices = @transform_3, window_bounds = array<i64: 2, 128, 384>}, {pipeline_mode = #tpu.pipeline_mode<synchronous>, transform_indices = @transform_4, window_bounds = array<i64: 2, 1, 384>}, {pipeline_mode = #tpu.pipeline_mode<synchronous>, transform_indices = @transform_5, window_bounds = array<i64: 2, 128, 128>}, {pipeline_mode = #tpu.pipeline_mode<synchronous>, transform_indices = @transform_6, window_bounds = array<i64: 2, 1, 128>}, {pipeline_mode = #tpu.pipeline_mode<synchronous>, transform_indices = @transform_7, window_bounds = array<i64: 2, 1, 128>}, {pipeline_mode = #tpu.pipeline_mode<synchronous>, transform_indices = @transform_8, window_bounds = array<i64: 2, 1, 128>}, {pipeline_mode = #tpu.pipeline_mode<synchronous>, transform_indices = @transform_9, window_bounds = array<i64: 2, 128, 512>}, {pipeline_mode = #tpu.pipeline_mode<synchronous>, transform_indices = @transform_10, window_bounds = array<i64: 2, 1, 512>}, {pipeline_mode = #tpu.pipeline_mode<synchronous>, transform_indices = @transform_11, window_bounds = array<i64: 2, 512, 128>}, {pipeline_mode = #tpu.pipeline_mode<synchronous>, transform_indices = @transform_12, window_bounds = array<i64: 2, 1, 128>}, {pipeline_mode = #tpu.pipeline_mode<synchronous>, transform_indices = @transform_13, window_bounds = array<i64: 2, 1, 128>}, {pipeline_mode = #tpu.pipeline_mode<synchronous>, transform_indices = @transform_14, window_bounds = array<i64: 2, 1, 128>}, {pipeline_mode = #tpu.pipeline_mode<synchronous>, transform_indices = @transform_15, window_bounds = array<i64: 1, 128>}, {pipeline_mode = #tpu.pipeline_mode<synchronous>, transform_indices = @transform_16, window_bounds = array<i64: 1, 128>}, {pipeline_mode = #tpu.pipeline_mode<synchronous>, transform_indices = @transform_17, window_bounds = array<i64: 128, 128>}, {pipeline_mode = #tpu.pipeline_mode<synchronous>, transform_indices = @transform_18, window_bounds = array<i64: 1, 128>}, {pipeline_mode = #tpu.pipeline_mode<synchronous>, transform_indices = @transform_19, window_bounds = array<i64: 32, 128>}]} {
    %c0 = arith.constant 0 : index
    %c0_0 = arith.constant 0 : index
    %0 = vector.load %arg1[%c0, %c0_0] : memref<32x1xi32, #tpu.memory_space<vmem>>, vector<32x1xi32>
    %1 = tpu.iota {dimensions = array<i32: 1>} : vector<32x128xi32>
    %2 = vector.broadcast %0 : vector<32x1xi32> to vector<32x128xi32>
    %3 = arith.cmpi eq, %1, %2 : vector<32x128xi32>
    %4 = arith.extui %3 : vector<32x128xi1> to vector<32x128xi32>
    %5 = arith.sitofp %4 : vector<32x128xi32> to vector<32x128xf32>
    %6 = arith.truncf %5 : vector<32x128xf32> to vector<32x128xbf16>
    %c0_1 = arith.constant 0 : index
    %c0_2 = arith.constant 0 : index
    %7 = vector.load %arg2[%c0_1, %c0_2] : memref<128x128xbf16, #tpu.memory_space<vmem>>, vector<128x128xbf16>
    %cst = arith.constant dense<0.000000e+00> : vector<32x128xf32>
    %8 = tpu.matmul %6, %7, %cst {dimension_numbers = #tpu.dot_dimension_numbers<[1], [0], [0], [1], [0, 0, 1, 1], [], []>} : vector<32x128xbf16>, vector<128x128xbf16>, vector<32x128xf32> -> vector<32x128xf32>
    %9 = vector.shape_cast %8 : vector<32x128xf32> to vector<2x16x128xf32>
    %c0_3 = arith.constant 0 : index
    %c0_4 = arith.constant 0 : index
    %10 = vector.load %arg3[%c0_3, %c0_4] : memref<16x128xf32, #tpu.memory_space<vmem>>, vector<16x128xf32>
    %11 = vector.shape_cast %10 : vector<16x128xf32> to vector<1x16x128xf32>
    %12 = vector.broadcast %11 : vector<1x16x128xf32> to vector<2x16x128xf32>
    %13 = arith.addf %9, %12 : vector<2x16x128xf32>
    %14 = vector.shape_cast %13 : vector<2x16x128xf32> to vector<32x128xf32>
    %15 = arith.truncf %14 : vector<32x128xf32> to vector<32x128xbf16>
    %c0_5 = arith.constant 0 : index
    %c0_6 = arith.constant 0 : index
    %c0_7 = arith.constant 0 : index
    %16 = vector.load %arg4[%c0_5, %c0_6, %c0_7] : memref<2x128x384xbf16, #tpu.memory_space<vmem>>, vector<1x128x384xbf16>
    %17 = vector.shape_cast %16 : vector<1x128x384xbf16> to vector<128x384xbf16>
    %cst_8 = arith.constant dense<0.000000e+00> : vector<32x384xf32>
    %18 = tpu.matmul %15, %17, %cst_8 {dimension_numbers = #tpu.dot_dimension_numbers<[1], [0], [0], [1], [0, 0, 1, 1], [], []>} : vector<32x128xbf16>, vector<128x384xbf16>, vector<32x384xf32> -> vector<32x384xf32>
    %c0_9 = arith.constant 0 : index
    %c0_10 = arith.constant 0 : index
    %c0_11 = arith.constant 0 : index
    %19 = vector.load %arg5[%c0_9, %c0_10, %c0_11] : memref<2x1x384xf32, #tpu.memory_space<vmem>>, vector<1x1x384xf32>
    %20 = vector.shape_cast %19 : vector<1x1x384xf32> to vector<1x384xf32>
    %21 = vector.broadcast %20 : vector<1x384xf32> to vector<32x384xf32>
    %22 = arith.addf %18, %21 : vector<32x384xf32>
    %23 = vector.extract_strided_slice %22 {offsets = [0, 0], sizes = [32, 32], strides = [1, 1]} : vector<32x384xf32> to vector<32x32xf32>
    %24 = vector.shape_cast %23 : vector<32x32xf32> to vector<2x16x32xf32>
    %25 = arith.truncf %24 : vector<2x16x32xf32> to vector<2x16x32xbf16>
    %26 = vector.extract_strided_slice %22 {offsets = [0, 128], sizes = [32, 32], strides = [1, 1]} : vector<32x384xf32> to vector<32x32xf32>
    %27 = vector.shape_cast %26 : vector<32x32xf32> to vector<2x16x32xf32>
    %28 = arith.truncf %27 : vector<2x16x32xf32> to vector<2x16x32xbf16>
    %29 = vector.extract_strided_slice %22 {offsets = [0, 256], sizes = [32, 32], strides = [1, 1]} : vector<32x384xf32> to vector<32x32xf32>
    %30 = vector.shape_cast %29 : vector<32x32xf32> to vector<2x16x32xf32>
    %31 = arith.truncf %30 : vector<2x16x32xf32> to vector<2x16x32xbf16>
    "tpu.trace_start"() <{level = 10 : i32, message = "bqd,bkd->bqk"}> : () -> ()
    %cst_12 = arith.constant dense<0.000000e+00> : vector<2x16x16xf32>
    %32 = tpu.matmul %25, %28, %cst_12 {dimension_numbers = #tpu.dot_dimension_numbers<[2], [2], [1], [1], [0, 0, 0, 1, 1, 1], [0], [0]>} : vector<2x16x32xbf16>, vector<2x16x32xbf16>, vector<2x16x16xf32> -> vector<2x16x16xf32>
    "tpu.trace_stop"() : () -> ()
    %cst_13 = arith.constant dense<0xFF800000> : vector<2x16xf32>
    %33 = vector.multi_reduction <maximumf>, %32, %cst_13 [2] : vector<2x16x16xf32> to vector<2x16xf32>
    %34 = vector.shape_cast %33 : vector<2x16xf32> to vector<2x16x1xf32>
    %35 = vector.broadcast %34 : vector<2x16x1xf32> to vector<2x16x16xf32>
    %36 = arith.subf %32, %35 : vector<2x16x16xf32>
    %37 = math.exp %36 : vector<2x16x16xf32>
    %cst_14 = arith.constant dense<0.000000e+00> : vector<2x16xf32>
    %38 = vector.multi_reduction <add>, %37, %cst_14 [2] : vector<2x16x16xf32> to vector<2x16xf32>
    %39 = vector.shape_cast %38 : vector<2x16xf32> to vector<2x16x1xf32>
    %40 = tpu.reciprocal %39 {approx = true} : vector<2x16x1xf32> -> vector<2x16x1xf32>
    %41 = vector.broadcast %40 : vector<2x16x1xf32> to vector<2x16x16xf32>
    %42 = arith.mulf %37, %41 : vector<2x16x16xf32>
    %43 = arith.truncf %42 : vector<2x16x16xf32> to vector<2x16x16xbf16>
    "tpu.trace_start"() <{level = 10 : i32, message = "bqk,bkd->bqd"}> : () -> ()
    %cst_15 = arith.constant dense<0.000000e+00> : vector<2x16x32xf32>
    %44 = tpu.matmul %43, %31, %cst_15 {dimension_numbers = #tpu.dot_dimension_numbers<[2], [1], [1], [2], [0, 0, 0, 1, 1, 2], [0], [0]>} : vector<2x16x16xbf16>, vector<2x16x32xbf16>, vector<2x16x32xf32> -> vector<2x16x32xf32>
    "tpu.trace_stop"() : () -> ()
    %45 = vector.shape_cast %44 : vector<2x16x32xf32> to vector<32x32xf32>
    %46 = vector.extract_strided_slice %22 {offsets = [0, 32], sizes = [32, 32], strides = [1, 1]} : vector<32x384xf32> to vector<32x32xf32>
    %47 = vector.shape_cast %46 : vector<32x32xf32> to vector<2x16x32xf32>
    %48 = arith.truncf %47 : vector<2x16x32xf32> to vector<2x16x32xbf16>
    %49 = vector.extract_strided_slice %22 {offsets = [0, 160], sizes = [32, 32], strides = [1, 1]} : vector<32x384xf32> to vector<32x32xf32>
    %50 = vector.shape_cast %49 : vector<32x32xf32> to vector<2x16x32xf32>
    %51 = arith.truncf %50 : vector<2x16x32xf32> to vector<2x16x32xbf16>
    %52 = vector.extract_strided_slice %22 {offsets = [0, 288], sizes = [32, 32], strides = [1, 1]} : vector<32x384xf32> to vector<32x32xf32>
    %53 = vector.shape_cast %52 : vector<32x32xf32> to vector<2x16x32xf32>
    %54 = arith.truncf %53 : vector<2x16x32xf32> to vector<2x16x32xbf16>
    "tpu.trace_start"() <{level = 10 : i32, message = "bqd,bkd->bqk"}> : () -> ()
    %cst_16 = arith.constant dense<0.000000e+00> : vector<2x16x16xf32>
    %55 = tpu.matmul %48, %51, %cst_16 {dimension_numbers = #tpu.dot_dimension_numbers<[2], [2], [1], [1], [0, 0, 0, 1, 1, 1], [0], [0]>} : vector<2x16x32xbf16>, vector<2x16x32xbf16>, vector<2x16x16xf32> -> vector<2x16x16xf32>
    "tpu.trace_stop"() : () -> ()
    %cst_17 = arith.constant dense<0xFF800000> : vector<2x16xf32>
    %56 = vector.multi_reduction <maximumf>, %55, %cst_17 [2] : vector<2x16x16xf32> to vector<2x16xf32>
    %57 = vector.shape_cast %56 : vector<2x16xf32> to vector<2x16x1xf32>
    %58 = vector.broadcast %57 : vector<2x16x1xf32> to vector<2x16x16xf32>
    %59 = arith.subf %55, %58 : vector<2x16x16xf32>
    %60 = math.exp %59 : vector<2x16x16xf32>
    %cst_18 = arith.constant dense<0.000000e+00> : vector<2x16xf32>
    %61 = vector.multi_reduction <add>, %60, %cst_18 [2] : vector<2x16x16xf32> to vector<2x16xf32>
    %62 = vector.shape_cast %61 : vector<2x16xf32> to vector<2x16x1xf32>
    %63 = tpu.reciprocal %62 {approx = true} : vector<2x16x1xf32> -> vector<2x16x1xf32>
    %64 = vector.broadcast %63 : vector<2x16x1xf32> to vector<2x16x16xf32>
    %65 = arith.mulf %60, %64 : vector<2x16x16xf32>
    %66 = arith.truncf %65 : vector<2x16x16xf32> to vector<2x16x16xbf16>
    "tpu.trace_start"() <{level = 10 : i32, message = "bqk,bkd->bqd"}> : () -> ()
    %cst_19 = arith.constant dense<0.000000e+00> : vector<2x16x32xf32>
    %67 = tpu.matmul %66, %54, %cst_19 {dimension_numbers = #tpu.dot_dimension_numbers<[2], [1], [1], [2], [0, 0, 0, 1, 1, 2], [0], [0]>} : vector<2x16x16xbf16>, vector<2x16x32xbf16>, vector<2x16x32xf32> -> vector<2x16x32xf32>
    "tpu.trace_stop"() : () -> ()
    %68 = vector.shape_cast %67 : vector<2x16x32xf32> to vector<32x32xf32>
    %69 = vector.extract_strided_slice %22 {offsets = [0, 64], sizes = [32, 32], strides = [1, 1]} : vector<32x384xf32> to vector<32x32xf32>
    %70 = vector.shape_cast %69 : vector<32x32xf32> to vector<2x16x32xf32>
    %71 = arith.truncf %70 : vector<2x16x32xf32> to vector<2x16x32xbf16>
    %72 = vector.extract_strided_slice %22 {offsets = [0, 192], sizes = [32, 32], strides = [1, 1]} : vector<32x384xf32> to vector<32x32xf32>
    %73 = vector.shape_cast %72 : vector<32x32xf32> to vector<2x16x32xf32>
    %74 = arith.truncf %73 : vector<2x16x32xf32> to vector<2x16x32xbf16>
    %75 = vector.extract_strided_slice %22 {offsets = [0, 320], sizes = [32, 32], strides = [1, 1]} : vector<32x384xf32> to vector<32x32xf32>
    %76 = vector.shape_cast %75 : vector<32x32xf32> to vector<2x16x32xf32>
    %77 = arith.truncf %76 : vector<2x16x32xf32> to vector<2x16x32xbf16>
    "tpu.trace_start"() <{level = 10 : i32, message = "bqd,bkd->bqk"}> : () -> ()
    %cst_20 = arith.constant dense<0.000000e+00> : vector<2x16x16xf32>
    %78 = tpu.matmul %71, %74, %cst_20 {dimension_numbers = #tpu.dot_dimension_numbers<[2], [2], [1], [1], [0, 0, 0, 1, 1, 1], [0], [0]>} : vector<2x16x32xbf16>, vector<2x16x32xbf16>, vector<2x16x16xf32> -> vector<2x16x16xf32>
    "tpu.trace_stop"() : () -> ()
    %cst_21 = arith.constant dense<0xFF800000> : vector<2x16xf32>
    %79 = vector.multi_reduction <maximumf>, %78, %cst_21 [2] : vector<2x16x16xf32> to vector<2x16xf32>
    %80 = vector.shape_cast %79 : vector<2x16xf32> to vector<2x16x1xf32>
    %81 = vector.broadcast %80 : vector<2x16x1xf32> to vector<2x16x16xf32>
    %82 = arith.subf %78, %81 : vector<2x16x16xf32>
    %83 = math.exp %82 : vector<2x16x16xf32>
    %cst_22 = arith.constant dense<0.000000e+00> : vector<2x16xf32>
    %84 = vector.multi_reduction <add>, %83, %cst_22 [2] : vector<2x16x16xf32> to vector<2x16xf32>
    %85 = vector.shape_cast %84 : vector<2x16xf32> to vector<2x16x1xf32>
    %86 = tpu.reciprocal %85 {approx = true} : vector<2x16x1xf32> -> vector<2x16x1xf32>
    %87 = vector.broadcast %86 : vector<2x16x1xf32> to vector<2x16x16xf32>
    %88 = arith.mulf %83, %87 : vector<2x16x16xf32>
    %89 = arith.truncf %88 : vector<2x16x16xf32> to vector<2x16x16xbf16>
    "tpu.trace_start"() <{level = 10 : i32, message = "bqk,bkd->bqd"}> : () -> ()
    %cst_23 = arith.constant dense<0.000000e+00> : vector<2x16x32xf32>
    %90 = tpu.matmul %89, %77, %cst_23 {dimension_numbers = #tpu.dot_dimension_numbers<[2], [1], [1], [2], [0, 0, 0, 1, 1, 2], [0], [0]>} : vector<2x16x16xbf16>, vector<2x16x32xbf16>, vector<2x16x32xf32> -> vector<2x16x32xf32>
    "tpu.trace_stop"() : () -> ()
    %91 = vector.shape_cast %90 : vector<2x16x32xf32> to vector<32x32xf32>
    %92 = vector.extract_strided_slice %22 {offsets = [0, 96], sizes = [32, 32], strides = [1, 1]} : vector<32x384xf32> to vector<32x32xf32>
    %93 = vector.shape_cast %92 : vector<32x32xf32> to vector<2x16x32xf32>
    %94 = arith.truncf %93 : vector<2x16x32xf32> to vector<2x16x32xbf16>
    %95 = vector.extract_strided_slice %22 {offsets = [0, 224], sizes = [32, 32], strides = [1, 1]} : vector<32x384xf32> to vector<32x32xf32>
    %96 = vector.shape_cast %95 : vector<32x32xf32> to vector<2x16x32xf32>
    %97 = arith.truncf %96 : vector<2x16x32xf32> to vector<2x16x32xbf16>
    %98 = vector.extract_strided_slice %22 {offsets = [0, 352], sizes = [32, 32], strides = [1, 1]} : vector<32x384xf32> to vector<32x32xf32>
    %99 = vector.shape_cast %98 : vector<32x32xf32> to vector<2x16x32xf32>
    %100 = arith.truncf %99 : vector<2x16x32xf32> to vector<2x16x32xbf16>
    "tpu.trace_start"() <{level = 10 : i32, message = "bqd,bkd->bqk"}> : () -> ()
    %cst_24 = arith.constant dense<0.000000e+00> : vector<2x16x16xf32>
    %101 = tpu.matmul %94, %97, %cst_24 {dimension_numbers = #tpu.dot_dimension_numbers<[2], [2], [1], [1], [0, 0, 0, 1, 1, 1], [0], [0]>} : vector<2x16x32xbf16>, vector<2x16x32xbf16>, vector<2x16x16xf32> -> vector<2x16x16xf32>
    "tpu.trace_stop"() : () -> ()
    %cst_25 = arith.constant dense<0xFF800000> : vector<2x16xf32>
    %102 = vector.multi_reduction <maximumf>, %101, %cst_25 [2] : vector<2x16x16xf32> to vector<2x16xf32>
    %103 = vector.shape_cast %102 : vector<2x16xf32> to vector<2x16x1xf32>
    %104 = vector.broadcast %103 : vector<2x16x1xf32> to vector<2x16x16xf32>
    %105 = arith.subf %101, %104 : vector<2x16x16xf32>
    %106 = math.exp %105 : vector<2x16x16xf32>
    %cst_26 = arith.constant dense<0.000000e+00> : vector<2x16xf32>
    %107 = vector.multi_reduction <add>, %106, %cst_26 [2] : vector<2x16x16xf32> to vector<2x16xf32>
    %108 = vector.shape_cast %107 : vector<2x16xf32> to vector<2x16x1xf32>
    %109 = tpu.reciprocal %108 {approx = true} : vector<2x16x1xf32> -> vector<2x16x1xf32>
    %110 = vector.broadcast %109 : vector<2x16x1xf32> to vector<2x16x16xf32>
    %111 = arith.mulf %106, %110 : vector<2x16x16xf32>
    %112 = arith.truncf %111 : vector<2x16x16xf32> to vector<2x16x16xbf16>
    "tpu.trace_start"() <{level = 10 : i32, message = "bqk,bkd->bqd"}> : () -> ()
    %cst_27 = arith.constant dense<0.000000e+00> : vector<2x16x32xf32>
    %113 = tpu.matmul %112, %100, %cst_27 {dimension_numbers = #tpu.dot_dimension_numbers<[2], [1], [1], [2], [0, 0, 0, 1, 1, 2], [0], [0]>} : vector<2x16x16xbf16>, vector<2x16x32xbf16>, vector<2x16x32xf32> -> vector<2x16x32xf32>
    "tpu.trace_stop"() : () -> ()
    %114 = vector.shape_cast %113 : vector<2x16x32xf32> to vector<32x32xf32>
    %115 = tpu.concatenate %45, %68, %91, %114 in 1 : vector<32x32xf32>, vector<32x32xf32>, vector<32x32xf32>, vector<32x32xf32> -> vector<32x128xf32>
    %116 = arith.truncf %115 : vector<32x128xf32> to vector<32x128xbf16>
    %c0_28 = arith.constant 0 : index
    %c0_29 = arith.constant 0 : index
    %c0_30 = arith.constant 0 : index
    %117 = vector.load %arg6[%c0_28, %c0_29, %c0_30] : memref<2x128x128xbf16, #tpu.memory_space<vmem>>, vector<1x128x128xbf16>
    %118 = vector.shape_cast %117 : vector<1x128x128xbf16> to vector<128x128xbf16>
    %cst_31 = arith.constant dense<0.000000e+00> : vector<32x128xf32>
    %119 = tpu.matmul %116, %118, %cst_31 {dimension_numbers = #tpu.dot_dimension_numbers<[1], [0], [0], [1], [0, 0, 1, 1], [], []>} : vector<32x128xbf16>, vector<128x128xbf16>, vector<32x128xf32> -> vector<32x128xf32>
    %c0_32 = arith.constant 0 : index
    %c0_33 = arith.constant 0 : index
    %c0_34 = arith.constant 0 : index
    %120 = vector.load %arg7[%c0_32, %c0_33, %c0_34] : memref<2x1x128xf32, #tpu.memory_space<vmem>>, vector<1x1x128xf32>
    %121 = vector.shape_cast %120 : vector<1x1x128xf32> to vector<1x128xf32>
    %122 = vector.broadcast %121 : vector<1x128xf32> to vector<32x128xf32>
    %123 = arith.addf %119, %122 : vector<32x128xf32>
    %124 = arith.addf %14, %123 : vector<32x128xf32>
    %c0_35 = arith.constant 0 : index
    %c0_36 = arith.constant 0 : index
    %c0_37 = arith.constant 0 : index
    %125 = vector.load %arg8[%c0_35, %c0_36, %c0_37] : memref<2x1x128xf32, #tpu.memory_space<vmem>>, vector<1x1x128xf32>
    %126 = vector.shape_cast %125 : vector<1x1x128xf32> to vector<1x128xf32>
    %c0_38 = arith.constant 0 : index
    %c0_39 = arith.constant 0 : index
    %c0_40 = arith.constant 0 : index
    %127 = vector.load %arg9[%c0_38, %c0_39, %c0_40] : memref<2x1x128xf32, #tpu.memory_space<vmem>>, vector<1x1x128xf32>
    %128 = vector.shape_cast %127 : vector<1x1x128xf32> to vector<1x128xf32>
    %cst_41 = arith.constant dense<0.000000e+00> : vector<32xf32>
    %129 = vector.multi_reduction <add>, %124, %cst_41 [1] : vector<32x128xf32> to vector<32xf32>
    %130 = vector.shape_cast %129 : vector<32xf32> to vector<32x1xf32>
    %cst_42 = arith.constant 1.280000e+02 : f32
    %131 = vector.broadcast %cst_42 : f32 to vector<32x1xf32>
    %132 = arith.divf %130, %131 : vector<32x1xf32>
    %133 = vector.broadcast %132 : vector<32x1xf32> to vector<32x128xf32>
    %134 = arith.subf %124, %133 : vector<32x128xf32>
    %135 = arith.mulf %134, %134 : vector<32x128xf32>
    %cst_43 = arith.constant dense<0.000000e+00> : vector<32xf32>
    %136 = vector.multi_reduction <add>, %135, %cst_43 [1] : vector<32x128xf32> to vector<32xf32>
    %137 = vector.shape_cast %136 : vector<32xf32> to vector<32x1xf32>
    %cst_44 = arith.constant 1.280000e+02 : f32
    %138 = vector.broadcast %cst_44 : f32 to vector<32x1xf32>
    %139 = arith.divf %137, %138 : vector<32x1xf32>
    %cst_45 = arith.constant 9.99999974E-6 : f32
    %140 = vector.broadcast %cst_45 : f32 to vector<32x1xf32>
    %141 = arith.addf %139, %140 : vector<32x1xf32>
    %142 = math.rsqrt %141 : vector<32x1xf32>
    %143 = vector.broadcast %142 : vector<32x1xf32> to vector<32x128xf32>
    %144 = arith.mulf %134, %143 : vector<32x128xf32>
    %145 = vector.broadcast %126 : vector<1x128xf32> to vector<32x128xf32>
    %146 = arith.mulf %144, %145 : vector<32x128xf32>
    %147 = vector.broadcast %128 : vector<1x128xf32> to vector<32x128xf32>
    %148 = arith.addf %146, %147 : vector<32x128xf32>
    %149 = arith.truncf %148 : vector<32x128xf32> to vector<32x128xbf16>
    %c0_46 = arith.constant 0 : index
    %c0_47 = arith.constant 0 : index
    %c0_48 = arith.constant 0 : index
    %150 = vector.load %arg10[%c0_46, %c0_47, %c0_48] : memref<2x128x512xbf16, #tpu.memory_space<vmem>>, vector<1x128x512xbf16>
    %151 = vector.shape_cast %150 : vector<1x128x512xbf16> to vector<128x512xbf16>
    %cst_49 = arith.constant dense<0.000000e+00> : vector<32x512xf32>
    %152 = tpu.matmul %149, %151, %cst_49 {dimension_numbers = #tpu.dot_dimension_numbers<[1], [0], [0], [1], [0, 0, 1, 1], [], []>} : vector<32x128xbf16>, vector<128x512xbf16>, vector<32x512xf32> -> vector<32x512xf32>
    %c0_50 = arith.constant 0 : index
    %c0_51 = arith.constant 0 : index
    %c0_52 = arith.constant 0 : index
    %153 = vector.load %arg11[%c0_50, %c0_51, %c0_52] : memref<2x1x512xf32, #tpu.memory_space<vmem>>, vector<1x1x512xf32>
    %154 = vector.shape_cast %153 : vector<1x1x512xf32> to vector<1x512xf32>
    %155 = vector.broadcast %154 : vector<1x512xf32> to vector<32x512xf32>
    %156 = arith.addf %152, %155 : vector<32x512xf32>
    %cst_53 = arith.constant 5.000000e-01 : f32
    %157 = vector.broadcast %cst_53 : f32 to vector<32x512xf32>
    %158 = arith.mulf %157, %156 : vector<32x512xf32>
    %cst_54 = arith.constant 0.707106769 : f32
    %159 = vector.broadcast %cst_54 : f32 to vector<32x512xf32>
    %160 = arith.mulf %156, %159 : vector<32x512xf32>
    %161 = math.erf %160 : vector<32x512xf32>
    %cst_55 = arith.constant 1.000000e+00 : f32
    %162 = vector.broadcast %cst_55 : f32 to vector<32x512xf32>
    %163 = arith.addf %162, %161 : vector<32x512xf32>
    %164 = arith.mulf %158, %163 : vector<32x512xf32>
    %165 = arith.truncf %164 : vector<32x512xf32> to vector<32x512xbf16>
    %c0_56 = arith.constant 0 : index
    %c0_57 = arith.constant 0 : index
    %c0_58 = arith.constant 0 : index
    %166 = vector.load %arg12[%c0_56, %c0_57, %c0_58] : memref<2x512x128xbf16, #tpu.memory_space<vmem>>, vector<1x512x128xbf16>
    %167 = vector.shape_cast %166 : vector<1x512x128xbf16> to vector<512x128xbf16>
    %cst_59 = arith.constant dense<0.000000e+00> : vector<32x128xf32>
    %168 = tpu.matmul %165, %167, %cst_59 {dimension_numbers = #tpu.dot_dimension_numbers<[1], [0], [0], [1], [0, 0, 1, 1], [], []>} : vector<32x512xbf16>, vector<512x128xbf16>, vector<32x128xf32> -> vector<32x128xf32>
    %c0_60 = arith.constant 0 : index
    %c0_61 = arith.constant 0 : index
    %c0_62 = arith.constant 0 : index
    %169 = vector.load %arg13[%c0_60, %c0_61, %c0_62] : memref<2x1x128xf32, #tpu.memory_space<vmem>>, vector<1x1x128xf32>
    %170 = vector.shape_cast %169 : vector<1x1x128xf32> to vector<1x128xf32>
    %171 = vector.broadcast %170 : vector<1x128xf32> to vector<32x128xf32>
    %172 = arith.addf %168, %171 : vector<32x128xf32>
    %173 = arith.addf %148, %172 : vector<32x128xf32>
    %c0_63 = arith.constant 0 : index
    %c0_64 = arith.constant 0 : index
    %c0_65 = arith.constant 0 : index
    %174 = vector.load %arg14[%c0_63, %c0_64, %c0_65] : memref<2x1x128xf32, #tpu.memory_space<vmem>>, vector<1x1x128xf32>
    %175 = vector.shape_cast %174 : vector<1x1x128xf32> to vector<1x128xf32>
    %c0_66 = arith.constant 0 : index
    %c0_67 = arith.constant 0 : index
    %c0_68 = arith.constant 0 : index
    %176 = vector.load %arg15[%c0_66, %c0_67, %c0_68] : memref<2x1x128xf32, #tpu.memory_space<vmem>>, vector<1x1x128xf32>
    %177 = vector.shape_cast %176 : vector<1x1x128xf32> to vector<1x128xf32>
    %cst_69 = arith.constant dense<0.000000e+00> : vector<32xf32>
    %178 = vector.multi_reduction <add>, %173, %cst_69 [1] : vector<32x128xf32> to vector<32xf32>
    %179 = vector.shape_cast %178 : vector<32xf32> to vector<32x1xf32>
    %cst_70 = arith.constant 1.280000e+02 : f32
    %180 = vector.broadcast %cst_70 : f32 to vector<32x1xf32>
    %181 = arith.divf %179, %180 : vector<32x1xf32>
    %182 = vector.broadcast %181 : vector<32x1xf32> to vector<32x128xf32>
    %183 = arith.subf %173, %182 : vector<32x128xf32>
    %184 = arith.mulf %183, %183 : vector<32x128xf32>
    %cst_71 = arith.constant dense<0.000000e+00> : vector<32xf32>
    %185 = vector.multi_reduction <add>, %184, %cst_71 [1] : vector<32x128xf32> to vector<32xf32>
    %186 = vector.shape_cast %185 : vector<32xf32> to vector<32x1xf32>
    %cst_72 = arith.constant 1.280000e+02 : f32
    %187 = vector.broadcast %cst_72 : f32 to vector<32x1xf32>
    %188 = arith.divf %186, %187 : vector<32x1xf32>
    %cst_73 = arith.constant 9.99999974E-6 : f32
    %189 = vector.broadcast %cst_73 : f32 to vector<32x1xf32>
    %190 = arith.addf %188, %189 : vector<32x1xf32>
    %191 = math.rsqrt %190 : vector<32x1xf32>
    %192 = vector.broadcast %191 : vector<32x1xf32> to vector<32x128xf32>
    %193 = arith.mulf %183, %192 : vector<32x128xf32>
    %194 = vector.broadcast %175 : vector<1x128xf32> to vector<32x128xf32>
    %195 = arith.mulf %193, %194 : vector<32x128xf32>
    %196 = vector.broadcast %177 : vector<1x128xf32> to vector<32x128xf32>
    %197 = arith.addf %195, %196 : vector<32x128xf32>
    %198 = arith.truncf %197 : vector<32x128xf32> to vector<32x128xbf16>
    %c1 = arith.constant 1 : index
    %c0_74 = arith.constant 0 : index
    %c0_75 = arith.constant 0 : index
    %199 = vector.load %arg4[%c1, %c0_74, %c0_75] : memref<2x128x384xbf16, #tpu.memory_space<vmem>>, vector<1x128x384xbf16>
    %200 = vector.shape_cast %199 : vector<1x128x384xbf16> to vector<128x384xbf16>
    %cst_76 = arith.constant dense<0.000000e+00> : vector<32x384xf32>
    %201 = tpu.matmul %198, %200, %cst_76 {dimension_numbers = #tpu.dot_dimension_numbers<[1], [0], [0], [1], [0, 0, 1, 1], [], []>} : vector<32x128xbf16>, vector<128x384xbf16>, vector<32x384xf32> -> vector<32x384xf32>
    %c1_77 = arith.constant 1 : index
    %c0_78 = arith.constant 0 : index
    %c0_79 = arith.constant 0 : index
    %202 = vector.load %arg5[%c1_77, %c0_78, %c0_79] : memref<2x1x384xf32, #tpu.memory_space<vmem>>, vector<1x1x384xf32>
    %203 = vector.shape_cast %202 : vector<1x1x384xf32> to vector<1x384xf32>
    %204 = vector.broadcast %203 : vector<1x384xf32> to vector<32x384xf32>
    %205 = arith.addf %201, %204 : vector<32x384xf32>
    %206 = vector.extract_strided_slice %205 {offsets = [0, 0], sizes = [32, 32], strides = [1, 1]} : vector<32x384xf32> to vector<32x32xf32>
    %207 = vector.shape_cast %206 : vector<32x32xf32> to vector<2x16x32xf32>
    %208 = arith.truncf %207 : vector<2x16x32xf32> to vector<2x16x32xbf16>
    %209 = vector.extract_strided_slice %205 {offsets = [0, 128], sizes = [32, 32], strides = [1, 1]} : vector<32x384xf32> to vector<32x32xf32>
    %210 = vector.shape_cast %209 : vector<32x32xf32> to vector<2x16x32xf32>
    %211 = arith.truncf %210 : vector<2x16x32xf32> to vector<2x16x32xbf16>
    %212 = vector.extract_strided_slice %205 {offsets = [0, 256], sizes = [32, 32], strides = [1, 1]} : vector<32x384xf32> to vector<32x32xf32>
    %213 = vector.shape_cast %212 : vector<32x32xf32> to vector<2x16x32xf32>
    %214 = arith.truncf %213 : vector<2x16x32xf32> to vector<2x16x32xbf16>
    "tpu.trace_start"() <{level = 10 : i32, message = "bqd,bkd->bqk"}> : () -> ()
    %cst_80 = arith.constant dense<0.000000e+00> : vector<2x16x16xf32>
    %215 = tpu.matmul %208, %211, %cst_80 {dimension_numbers = #tpu.dot_dimension_numbers<[2], [2], [1], [1], [0, 0, 0, 1, 1, 1], [0], [0]>} : vector<2x16x32xbf16>, vector<2x16x32xbf16>, vector<2x16x16xf32> -> vector<2x16x16xf32>
    "tpu.trace_stop"() : () -> ()
    %cst_81 = arith.constant dense<0xFF800000> : vector<2x16xf32>
    %216 = vector.multi_reduction <maximumf>, %215, %cst_81 [2] : vector<2x16x16xf32> to vector<2x16xf32>
    %217 = vector.shape_cast %216 : vector<2x16xf32> to vector<2x16x1xf32>
    %218 = vector.broadcast %217 : vector<2x16x1xf32> to vector<2x16x16xf32>
    %219 = arith.subf %215, %218 : vector<2x16x16xf32>
    %220 = math.exp %219 : vector<2x16x16xf32>
    %cst_82 = arith.constant dense<0.000000e+00> : vector<2x16xf32>
    %221 = vector.multi_reduction <add>, %220, %cst_82 [2] : vector<2x16x16xf32> to vector<2x16xf32>
    %222 = vector.shape_cast %221 : vector<2x16xf32> to vector<2x16x1xf32>
    %223 = tpu.reciprocal %222 {approx = true} : vector<2x16x1xf32> -> vector<2x16x1xf32>
    %224 = vector.broadcast %223 : vector<2x16x1xf32> to vector<2x16x16xf32>
    %225 = arith.mulf %220, %224 : vector<2x16x16xf32>
    %226 = arith.truncf %225 : vector<2x16x16xf32> to vector<2x16x16xbf16>
    "tpu.trace_start"() <{level = 10 : i32, message = "bqk,bkd->bqd"}> : () -> ()
    %cst_83 = arith.constant dense<0.000000e+00> : vector<2x16x32xf32>
    %227 = tpu.matmul %226, %214, %cst_83 {dimension_numbers = #tpu.dot_dimension_numbers<[2], [1], [1], [2], [0, 0, 0, 1, 1, 2], [0], [0]>} : vector<2x16x16xbf16>, vector<2x16x32xbf16>, vector<2x16x32xf32> -> vector<2x16x32xf32>
    "tpu.trace_stop"() : () -> ()
    %228 = vector.shape_cast %227 : vector<2x16x32xf32> to vector<32x32xf32>
    %229 = vector.extract_strided_slice %205 {offsets = [0, 32], sizes = [32, 32], strides = [1, 1]} : vector<32x384xf32> to vector<32x32xf32>
    %230 = vector.shape_cast %229 : vector<32x32xf32> to vector<2x16x32xf32>
    %231 = arith.truncf %230 : vector<2x16x32xf32> to vector<2x16x32xbf16>
    %232 = vector.extract_strided_slice %205 {offsets = [0, 160], sizes = [32, 32], strides = [1, 1]} : vector<32x384xf32> to vector<32x32xf32>
    %233 = vector.shape_cast %232 : vector<32x32xf32> to vector<2x16x32xf32>
    %234 = arith.truncf %233 : vector<2x16x32xf32> to vector<2x16x32xbf16>
    %235 = vector.extract_strided_slice %205 {offsets = [0, 288], sizes = [32, 32], strides = [1, 1]} : vector<32x384xf32> to vector<32x32xf32>
    %236 = vector.shape_cast %235 : vector<32x32xf32> to vector<2x16x32xf32>
    %237 = arith.truncf %236 : vector<2x16x32xf32> to vector<2x16x32xbf16>
    "tpu.trace_start"() <{level = 10 : i32, message = "bqd,bkd->bqk"}> : () -> ()
    %cst_84 = arith.constant dense<0.000000e+00> : vector<2x16x16xf32>
    %238 = tpu.matmul %231, %234, %cst_84 {dimension_numbers = #tpu.dot_dimension_numbers<[2], [2], [1], [1], [0, 0, 0, 1, 1, 1], [0], [0]>} : vector<2x16x32xbf16>, vector<2x16x32xbf16>, vector<2x16x16xf32> -> vector<2x16x16xf32>
    "tpu.trace_stop"() : () -> ()
    %cst_85 = arith.constant dense<0xFF800000> : vector<2x16xf32>
    %239 = vector.multi_reduction <maximumf>, %238, %cst_85 [2] : vector<2x16x16xf32> to vector<2x16xf32>
    %240 = vector.shape_cast %239 : vector<2x16xf32> to vector<2x16x1xf32>
    %241 = vector.broadcast %240 : vector<2x16x1xf32> to vector<2x16x16xf32>
    %242 = arith.subf %238, %241 : vector<2x16x16xf32>
    %243 = math.exp %242 : vector<2x16x16xf32>
    %cst_86 = arith.constant dense<0.000000e+00> : vector<2x16xf32>
    %244 = vector.multi_reduction <add>, %243, %cst_86 [2] : vector<2x16x16xf32> to vector<2x16xf32>
    %245 = vector.shape_cast %244 : vector<2x16xf32> to vector<2x16x1xf32>
    %246 = tpu.reciprocal %245 {approx = true} : vector<2x16x1xf32> -> vector<2x16x1xf32>
    %247 = vector.broadcast %246 : vector<2x16x1xf32> to vector<2x16x16xf32>
    %248 = arith.mulf %243, %247 : vector<2x16x16xf32>
    %249 = arith.truncf %248 : vector<2x16x16xf32> to vector<2x16x16xbf16>
    "tpu.trace_start"() <{level = 10 : i32, message = "bqk,bkd->bqd"}> : () -> ()
    %cst_87 = arith.constant dense<0.000000e+00> : vector<2x16x32xf32>
    %250 = tpu.matmul %249, %237, %cst_87 {dimension_numbers = #tpu.dot_dimension_numbers<[2], [1], [1], [2], [0, 0, 0, 1, 1, 2], [0], [0]>} : vector<2x16x16xbf16>, vector<2x16x32xbf16>, vector<2x16x32xf32> -> vector<2x16x32xf32>
    "tpu.trace_stop"() : () -> ()
    %251 = vector.shape_cast %250 : vector<2x16x32xf32> to vector<32x32xf32>
    %252 = vector.extract_strided_slice %205 {offsets = [0, 64], sizes = [32, 32], strides = [1, 1]} : vector<32x384xf32> to vector<32x32xf32>
    %253 = vector.shape_cast %252 : vector<32x32xf32> to vector<2x16x32xf32>
    %254 = arith.truncf %253 : vector<2x16x32xf32> to vector<2x16x32xbf16>
    %255 = vector.extract_strided_slice %205 {offsets = [0, 192], sizes = [32, 32], strides = [1, 1]} : vector<32x384xf32> to vector<32x32xf32>
    %256 = vector.shape_cast %255 : vector<32x32xf32> to vector<2x16x32xf32>
    %257 = arith.truncf %256 : vector<2x16x32xf32> to vector<2x16x32xbf16>
    %258 = vector.extract_strided_slice %205 {offsets = [0, 320], sizes = [32, 32], strides = [1, 1]} : vector<32x384xf32> to vector<32x32xf32>
    %259 = vector.shape_cast %258 : vector<32x32xf32> to vector<2x16x32xf32>
    %260 = arith.truncf %259 : vector<2x16x32xf32> to vector<2x16x32xbf16>
    "tpu.trace_start"() <{level = 10 : i32, message = "bqd,bkd->bqk"}> : () -> ()
    %cst_88 = arith.constant dense<0.000000e+00> : vector<2x16x16xf32>
    %261 = tpu.matmul %254, %257, %cst_88 {dimension_numbers = #tpu.dot_dimension_numbers<[2], [2], [1], [1], [0, 0, 0, 1, 1, 1], [0], [0]>} : vector<2x16x32xbf16>, vector<2x16x32xbf16>, vector<2x16x16xf32> -> vector<2x16x16xf32>
    "tpu.trace_stop"() : () -> ()
    %cst_89 = arith.constant dense<0xFF800000> : vector<2x16xf32>
    %262 = vector.multi_reduction <maximumf>, %261, %cst_89 [2] : vector<2x16x16xf32> to vector<2x16xf32>
    %263 = vector.shape_cast %262 : vector<2x16xf32> to vector<2x16x1xf32>
    %264 = vector.broadcast %263 : vector<2x16x1xf32> to vector<2x16x16xf32>
    %265 = arith.subf %261, %264 : vector<2x16x16xf32>
    %266 = math.exp %265 : vector<2x16x16xf32>
    %cst_90 = arith.constant dense<0.000000e+00> : vector<2x16xf32>
    %267 = vector.multi_reduction <add>, %266, %cst_90 [2] : vector<2x16x16xf32> to vector<2x16xf32>
    %268 = vector.shape_cast %267 : vector<2x16xf32> to vector<2x16x1xf32>
    %269 = tpu.reciprocal %268 {approx = true} : vector<2x16x1xf32> -> vector<2x16x1xf32>
    %270 = vector.broadcast %269 : vector<2x16x1xf32> to vector<2x16x16xf32>
    %271 = arith.mulf %266, %270 : vector<2x16x16xf32>
    %272 = arith.truncf %271 : vector<2x16x16xf32> to vector<2x16x16xbf16>
    "tpu.trace_start"() <{level = 10 : i32, message = "bqk,bkd->bqd"}> : () -> ()
    %cst_91 = arith.constant dense<0.000000e+00> : vector<2x16x32xf32>
    %273 = tpu.matmul %272, %260, %cst_91 {dimension_numbers = #tpu.dot_dimension_numbers<[2], [1], [1], [2], [0, 0, 0, 1, 1, 2], [0], [0]>} : vector<2x16x16xbf16>, vector<2x16x32xbf16>, vector<2x16x32xf32> -> vector<2x16x32xf32>
    "tpu.trace_stop"() : () -> ()
    %274 = vector.shape_cast %273 : vector<2x16x32xf32> to vector<32x32xf32>
    %275 = vector.extract_strided_slice %205 {offsets = [0, 96], sizes = [32, 32], strides = [1, 1]} : vector<32x384xf32> to vector<32x32xf32>
    %276 = vector.shape_cast %275 : vector<32x32xf32> to vector<2x16x32xf32>
    %277 = arith.truncf %276 : vector<2x16x32xf32> to vector<2x16x32xbf16>
    %278 = vector.extract_strided_slice %205 {offsets = [0, 224], sizes = [32, 32], strides = [1, 1]} : vector<32x384xf32> to vector<32x32xf32>
    %279 = vector.shape_cast %278 : vector<32x32xf32> to vector<2x16x32xf32>
    %280 = arith.truncf %279 : vector<2x16x32xf32> to vector<2x16x32xbf16>
    %281 = vector.extract_strided_slice %205 {offsets = [0, 352], sizes = [32, 32], strides = [1, 1]} : vector<32x384xf32> to vector<32x32xf32>
    %282 = vector.shape_cast %281 : vector<32x32xf32> to vector<2x16x32xf32>
    %283 = arith.truncf %282 : vector<2x16x32xf32> to vector<2x16x32xbf16>
    "tpu.trace_start"() <{level = 10 : i32, message = "bqd,bkd->bqk"}> : () -> ()
    %cst_92 = arith.constant dense<0.000000e+00> : vector<2x16x16xf32>
    %284 = tpu.matmul %277, %280, %cst_92 {dimension_numbers = #tpu.dot_dimension_numbers<[2], [2], [1], [1], [0, 0, 0, 1, 1, 1], [0], [0]>} : vector<2x16x32xbf16>, vector<2x16x32xbf16>, vector<2x16x16xf32> -> vector<2x16x16xf32>
    "tpu.trace_stop"() : () -> ()
    %cst_93 = arith.constant dense<0xFF800000> : vector<2x16xf32>
    %285 = vector.multi_reduction <maximumf>, %284, %cst_93 [2] : vector<2x16x16xf32> to vector<2x16xf32>
    %286 = vector.shape_cast %285 : vector<2x16xf32> to vector<2x16x1xf32>
    %287 = vector.broadcast %286 : vector<2x16x1xf32> to vector<2x16x16xf32>
    %288 = arith.subf %284, %287 : vector<2x16x16xf32>
    %289 = math.exp %288 : vector<2x16x16xf32>
    %cst_94 = arith.constant dense<0.000000e+00> : vector<2x16xf32>
    %290 = vector.multi_reduction <add>, %289, %cst_94 [2] : vector<2x16x16xf32> to vector<2x16xf32>
    %291 = vector.shape_cast %290 : vector<2x16xf32> to vector<2x16x1xf32>
    %292 = tpu.reciprocal %291 {approx = true} : vector<2x16x1xf32> -> vector<2x16x1xf32>
    %293 = vector.broadcast %292 : vector<2x16x1xf32> to vector<2x16x16xf32>
    %294 = arith.mulf %289, %293 : vector<2x16x16xf32>
    %295 = arith.truncf %294 : vector<2x16x16xf32> to vector<2x16x16xbf16>
    "tpu.trace_start"() <{level = 10 : i32, message = "bqk,bkd->bqd"}> : () -> ()
    %cst_95 = arith.constant dense<0.000000e+00> : vector<2x16x32xf32>
    %296 = tpu.matmul %295, %283, %cst_95 {dimension_numbers = #tpu.dot_dimension_numbers<[2], [1], [1], [2], [0, 0, 0, 1, 1, 2], [0], [0]>} : vector<2x16x16xbf16>, vector<2x16x32xbf16>, vector<2x16x32xf32> -> vector<2x16x32xf32>
    "tpu.trace_stop"() : () -> ()
    %297 = vector.shape_cast %296 : vector<2x16x32xf32> to vector<32x32xf32>
    %298 = tpu.concatenate %228, %251, %274, %297 in 1 : vector<32x32xf32>, vector<32x32xf32>, vector<32x32xf32>, vector<32x32xf32> -> vector<32x128xf32>
    %299 = arith.truncf %298 : vector<32x128xf32> to vector<32x128xbf16>
    %c1_96 = arith.constant 1 : index
    %c0_97 = arith.constant 0 : index
    %c0_98 = arith.constant 0 : index
    %300 = vector.load %arg6[%c1_96, %c0_97, %c0_98] : memref<2x128x128xbf16, #tpu.memory_space<vmem>>, vector<1x128x128xbf16>
    %301 = vector.shape_cast %300 : vector<1x128x128xbf16> to vector<128x128xbf16>
    %cst_99 = arith.constant dense<0.000000e+00> : vector<32x128xf32>
    %302 = tpu.matmul %299, %301, %cst_99 {dimension_numbers = #tpu.dot_dimension_numbers<[1], [0], [0], [1], [0, 0, 1, 1], [], []>} : vector<32x128xbf16>, vector<128x128xbf16>, vector<32x128xf32> -> vector<32x128xf32>
    %c1_100 = arith.constant 1 : index
    %c0_101 = arith.constant 0 : index
    %c0_102 = arith.constant 0 : index
    %303 = vector.load %arg7[%c1_100, %c0_101, %c0_102] : memref<2x1x128xf32, #tpu.memory_space<vmem>>, vector<1x1x128xf32>
    %304 = vector.shape_cast %303 : vector<1x1x128xf32> to vector<1x128xf32>
    %305 = vector.broadcast %304 : vector<1x128xf32> to vector<32x128xf32>
    %306 = arith.addf %302, %305 : vector<32x128xf32>
    %307 = arith.addf %197, %306 : vector<32x128xf32>
    %c1_103 = arith.constant 1 : index
    %c0_104 = arith.constant 0 : index
    %c0_105 = arith.constant 0 : index
    %308 = vector.load %arg8[%c1_103, %c0_104, %c0_105] : memref<2x1x128xf32, #tpu.memory_space<vmem>>, vector<1x1x128xf32>
    %309 = vector.shape_cast %308 : vector<1x1x128xf32> to vector<1x128xf32>
    %c1_106 = arith.constant 1 : index
    %c0_107 = arith.constant 0 : index
    %c0_108 = arith.constant 0 : index
    %310 = vector.load %arg9[%c1_106, %c0_107, %c0_108] : memref<2x1x128xf32, #tpu.memory_space<vmem>>, vector<1x1x128xf32>
    %311 = vector.shape_cast %310 : vector<1x1x128xf32> to vector<1x128xf32>
    %cst_109 = arith.constant dense<0.000000e+00> : vector<32xf32>
    %312 = vector.multi_reduction <add>, %307, %cst_109 [1] : vector<32x128xf32> to vector<32xf32>
    %313 = vector.shape_cast %312 : vector<32xf32> to vector<32x1xf32>
    %cst_110 = arith.constant 1.280000e+02 : f32
    %314 = vector.broadcast %cst_110 : f32 to vector<32x1xf32>
    %315 = arith.divf %313, %314 : vector<32x1xf32>
    %316 = vector.broadcast %315 : vector<32x1xf32> to vector<32x128xf32>
    %317 = arith.subf %307, %316 : vector<32x128xf32>
    %318 = arith.mulf %317, %317 : vector<32x128xf32>
    %cst_111 = arith.constant dense<0.000000e+00> : vector<32xf32>
    %319 = vector.multi_reduction <add>, %318, %cst_111 [1] : vector<32x128xf32> to vector<32xf32>
    %320 = vector.shape_cast %319 : vector<32xf32> to vector<32x1xf32>
    %cst_112 = arith.constant 1.280000e+02 : f32
    %321 = vector.broadcast %cst_112 : f32 to vector<32x1xf32>
    %322 = arith.divf %320, %321 : vector<32x1xf32>
    %cst_113 = arith.constant 9.99999974E-6 : f32
    %323 = vector.broadcast %cst_113 : f32 to vector<32x1xf32>
    %324 = arith.addf %322, %323 : vector<32x1xf32>
    %325 = math.rsqrt %324 : vector<32x1xf32>
    %326 = vector.broadcast %325 : vector<32x1xf32> to vector<32x128xf32>
    %327 = arith.mulf %317, %326 : vector<32x128xf32>
    %328 = vector.broadcast %309 : vector<1x128xf32> to vector<32x128xf32>
    %329 = arith.mulf %327, %328 : vector<32x128xf32>
    %330 = vector.broadcast %311 : vector<1x128xf32> to vector<32x128xf32>
    %331 = arith.addf %329, %330 : vector<32x128xf32>
    %332 = arith.truncf %331 : vector<32x128xf32> to vector<32x128xbf16>
    %c1_114 = arith.constant 1 : index
    %c0_115 = arith.constant 0 : index
    %c0_116 = arith.constant 0 : index
    %333 = vector.load %arg10[%c1_114, %c0_115, %c0_116] : memref<2x128x512xbf16, #tpu.memory_space<vmem>>, vector<1x128x512xbf16>
    %334 = vector.shape_cast %333 : vector<1x128x512xbf16> to vector<128x512xbf16>
    %cst_117 = arith.constant dense<0.000000e+00> : vector<32x512xf32>
    %335 = tpu.matmul %332, %334, %cst_117 {dimension_numbers = #tpu.dot_dimension_numbers<[1], [0], [0], [1], [0, 0, 1, 1], [], []>} : vector<32x128xbf16>, vector<128x512xbf16>, vector<32x512xf32> -> vector<32x512xf32>
    %c1_118 = arith.constant 1 : index
    %c0_119 = arith.constant 0 : index
    %c0_120 = arith.constant 0 : index
    %336 = vector.load %arg11[%c1_118, %c0_119, %c0_120] : memref<2x1x512xf32, #tpu.memory_space<vmem>>, vector<1x1x512xf32>
    %337 = vector.shape_cast %336 : vector<1x1x512xf32> to vector<1x512xf32>
    %338 = vector.broadcast %337 : vector<1x512xf32> to vector<32x512xf32>
    %339 = arith.addf %335, %338 : vector<32x512xf32>
    %cst_121 = arith.constant 5.000000e-01 : f32
    %340 = vector.broadcast %cst_121 : f32 to vector<32x512xf32>
    %341 = arith.mulf %340, %339 : vector<32x512xf32>
    %cst_122 = arith.constant 0.707106769 : f32
    %342 = vector.broadcast %cst_122 : f32 to vector<32x512xf32>
    %343 = arith.mulf %339, %342 : vector<32x512xf32>
    %344 = math.erf %343 : vector<32x512xf32>
    %cst_123 = arith.constant 1.000000e+00 : f32
    %345 = vector.broadcast %cst_123 : f32 to vector<32x512xf32>
    %346 = arith.addf %345, %344 : vector<32x512xf32>
    %347 = arith.mulf %341, %346 : vector<32x512xf32>
    %348 = arith.truncf %347 : vector<32x512xf32> to vector<32x512xbf16>
    %c1_124 = arith.constant 1 : index
    %c0_125 = arith.constant 0 : index
    %c0_126 = arith.constant 0 : index
    %349 = vector.load %arg12[%c1_124, %c0_125, %c0_126] : memref<2x512x128xbf16, #tpu.memory_space<vmem>>, vector<1x512x128xbf16>
    %350 = vector.shape_cast %349 : vector<1x512x128xbf16> to vector<512x128xbf16>
    %cst_127 = arith.constant dense<0.000000e+00> : vector<32x128xf32>
    %351 = tpu.matmul %348, %350, %cst_127 {dimension_numbers = #tpu.dot_dimension_numbers<[1], [0], [0], [1], [0, 0, 1, 1], [], []>} : vector<32x512xbf16>, vector<512x128xbf16>, vector<32x128xf32> -> vector<32x128xf32>
    %c1_128 = arith.constant 1 : index
    %c0_129 = arith.constant 0 : index
    %c0_130 = arith.constant 0 : index
    %352 = vector.load %arg13[%c1_128, %c0_129, %c0_130] : memref<2x1x128xf32, #tpu.memory_space<vmem>>, vector<1x1x128xf32>
    %353 = vector.shape_cast %352 : vector<1x1x128xf32> to vector<1x128xf32>
    %354 = vector.broadcast %353 : vector<1x128xf32> to vector<32x128xf32>
    %355 = arith.addf %351, %354 : vector<32x128xf32>
    %356 = arith.addf %331, %355 : vector<32x128xf32>
    %c1_131 = arith.constant 1 : index
    %c0_132 = arith.constant 0 : index
    %c0_133 = arith.constant 0 : index
    %357 = vector.load %arg14[%c1_131, %c0_132, %c0_133] : memref<2x1x128xf32, #tpu.memory_space<vmem>>, vector<1x1x128xf32>
    %358 = vector.shape_cast %357 : vector<1x1x128xf32> to vector<1x128xf32>
    %c1_134 = arith.constant 1 : index
    %c0_135 = arith.constant 0 : index
    %c0_136 = arith.constant 0 : index
    %359 = vector.load %arg15[%c1_134, %c0_135, %c0_136] : memref<2x1x128xf32, #tpu.memory_space<vmem>>, vector<1x1x128xf32>
    %360 = vector.shape_cast %359 : vector<1x1x128xf32> to vector<1x128xf32>
    %cst_137 = arith.constant dense<0.000000e+00> : vector<32xf32>
    %361 = vector.multi_reduction <add>, %356, %cst_137 [1] : vector<32x128xf32> to vector<32xf32>
    %362 = vector.shape_cast %361 : vector<32xf32> to vector<32x1xf32>
    %cst_138 = arith.constant 1.280000e+02 : f32
    %363 = vector.broadcast %cst_138 : f32 to vector<32x1xf32>
    %364 = arith.divf %362, %363 : vector<32x1xf32>
    %365 = vector.broadcast %364 : vector<32x1xf32> to vector<32x128xf32>
    %366 = arith.subf %356, %365 : vector<32x128xf32>
    %367 = arith.mulf %366, %366 : vector<32x128xf32>
    %cst_139 = arith.constant dense<0.000000e+00> : vector<32xf32>
    %368 = vector.multi_reduction <add>, %367, %cst_139 [1] : vector<32x128xf32> to vector<32xf32>
    %369 = vector.shape_cast %368 : vector<32xf32> to vector<32x1xf32>
    %cst_140 = arith.constant 1.280000e+02 : f32
    %370 = vector.broadcast %cst_140 : f32 to vector<32x1xf32>
    %371 = arith.divf %369, %370 : vector<32x1xf32>
    %cst_141 = arith.constant 9.99999974E-6 : f32
    %372 = vector.broadcast %cst_141 : f32 to vector<32x1xf32>
    %373 = arith.addf %371, %372 : vector<32x1xf32>
    %374 = math.rsqrt %373 : vector<32x1xf32>
    %375 = vector.broadcast %374 : vector<32x1xf32> to vector<32x128xf32>
    %376 = arith.mulf %366, %375 : vector<32x128xf32>
    %377 = vector.broadcast %358 : vector<1x128xf32> to vector<32x128xf32>
    %378 = arith.mulf %376, %377 : vector<32x128xf32>
    %379 = vector.broadcast %360 : vector<1x128xf32> to vector<32x128xf32>
    %380 = arith.addf %378, %379 : vector<32x128xf32>
    %c0_142 = arith.constant 0 : index
    %c0_143 = arith.constant 0 : index
    %381 = vector.load %arg16[%c0_142, %c0_143] : memref<1x128xf32, #tpu.memory_space<vmem>>, vector<1x128xf32>
    %c0_144 = arith.constant 0 : index
    %c0_145 = arith.constant 0 : index
    %382 = vector.load %arg17[%c0_144, %c0_145] : memref<1x128xf32, #tpu.memory_space<vmem>>, vector<1x128xf32>
    %cst_146 = arith.constant dense<0.000000e+00> : vector<32xf32>
    %383 = vector.multi_reduction <add>, %380, %cst_146 [1] : vector<32x128xf32> to vector<32xf32>
    %384 = vector.shape_cast %383 : vector<32xf32> to vector<32x1xf32>
    %cst_147 = arith.constant 1.280000e+02 : f32
    %385 = vector.broadcast %cst_147 : f32 to vector<32x1xf32>
    %386 = arith.divf %384, %385 : vector<32x1xf32>
    %387 = vector.broadcast %386 : vector<32x1xf32> to vector<32x128xf32>
    %388 = arith.subf %380, %387 : vector<32x128xf32>
    %389 = arith.mulf %388, %388 : vector<32x128xf32>
    %cst_148 = arith.constant dense<0.000000e+00> : vector<32xf32>
    %390 = vector.multi_reduction <add>, %389, %cst_148 [1] : vector<32x128xf32> to vector<32xf32>
    %391 = vector.shape_cast %390 : vector<32xf32> to vector<32x1xf32>
    %cst_149 = arith.constant 1.280000e+02 : f32
    %392 = vector.broadcast %cst_149 : f32 to vector<32x1xf32>
    %393 = arith.divf %391, %392 : vector<32x1xf32>
    %cst_150 = arith.constant 9.99999974E-6 : f32
    %394 = vector.broadcast %cst_150 : f32 to vector<32x1xf32>
    %395 = arith.addf %393, %394 : vector<32x1xf32>
    %396 = math.rsqrt %395 : vector<32x1xf32>
    %397 = vector.broadcast %396 : vector<32x1xf32> to vector<32x128xf32>
    %398 = arith.mulf %388, %397 : vector<32x128xf32>
    %399 = vector.broadcast %381 : vector<1x128xf32> to vector<32x128xf32>
    %400 = arith.mulf %398, %399 : vector<32x128xf32>
    %401 = vector.broadcast %382 : vector<1x128xf32> to vector<32x128xf32>
    %402 = arith.addf %400, %401 : vector<32x128xf32>
    %403 = arith.truncf %402 : vector<32x128xf32> to vector<32x128xbf16>
    %c0_151 = arith.constant 0 : index
    %c0_152 = arith.constant 0 : index
    %404 = vector.load %arg18[%c0_151, %c0_152] : memref<128x128xbf16, #tpu.memory_space<vmem>>, vector<128x128xbf16>
    %cst_153 = arith.constant dense<0.000000e+00> : vector<32x128xf32>
    %405 = tpu.matmul %403, %404, %cst_153 {dimension_numbers = #tpu.dot_dimension_numbers<[1], [0], [0], [1], [0, 0, 1, 1], [], []>} : vector<32x128xbf16>, vector<128x128xbf16>, vector<32x128xf32> -> vector<32x128xf32>
    %c0_154 = arith.constant 0 : index
    %c0_155 = arith.constant 0 : index
    %406 = vector.load %arg19[%c0_154, %c0_155] : memref<1x128xf32, #tpu.memory_space<vmem>>, vector<1x128xf32>
    %407 = vector.broadcast %406 : vector<1x128xf32> to vector<32x128xf32>
    %408 = arith.addf %405, %407 : vector<32x128xf32>
    %c0_156 = arith.constant 0 : index
    %c0_157 = arith.constant 0 : index
    %409 = vector.load %arg20[%c0_156, %c0_157] : memref<32x128xf32, #tpu.memory_space<vmem>>, vector<32x128xf32>
    tpu.vector_store %arg20[%c0_156, %c0_157], %408 {strides = array<i32>} : memref<32x128xf32, #tpu.memory_space<vmem>>, vector<32x128xf32>,
    return
  }
  func.func @transform_0(%arg0: i32) -> (i32, i32) {
    %c0_i32 = arith.constant 0 : i32
    %c0_i32_0 = arith.constant 0 : i32
    %c0_i32_1 = arith.constant 0 : i32
    return %c0_i32, %c0_i32_0 : i32, i32
  }
  func.func @transform_1(%arg0: i32) -> (i32, i32) {
    %c0_i32 = arith.constant 0 : i32
    %c0_i32_0 = arith.constant 0 : i32
    %c0_i32_1 = arith.constant 0 : i32
    return %c0_i32, %c0_i32_0 : i32, i32
  }
  func.func @transform_2(%arg0: i32) -> (i32, i32) {
    %c0_i32 = arith.constant 0 : i32
    %c0_i32_0 = arith.constant 0 : i32
    %c0_i32_1 = arith.constant 0 : i32
    return %c0_i32, %c0_i32_0 : i32, i32
  }
  func.func @transform_3(%arg0: i32) -> (i32, i32, i32) {
    %c0_i32 = arith.constant 0 : i32
    %c0_i32_0 = arith.constant 0 : i32
    %c0_i32_1 = arith.constant 0 : i32
    %c0_i32_2 = arith.constant 0 : i32
    return %c0_i32, %c0_i32_0, %c0_i32_1 : i32, i32, i32
  }
  func.func @transform_4(%arg0: i32) -> (i32, i32, i32) {
    %c0_i32 = arith.constant 0 : i32
    %c0_i32_0 = arith.constant 0 : i32
    %c0_i32_1 = arith.constant 0 : i32
    %c0_i32_2 = arith.constant 0 : i32
    return %c0_i32, %c0_i32_0, %c0_i32_1 : i32, i32, i32
  }
  func.func @transform_5(%arg0: i32) -> (i32, i32, i32) {
    %c0_i32 = arith.constant 0 : i32
    %c0_i32_0 = arith.constant 0 : i32
    %c0_i32_1 = arith.constant 0 : i32
    %c0_i32_2 = arith.constant 0 : i32
    return %c0_i32, %c0_i32_0, %c0_i32_1 : i32, i32, i32
  }
  func.func @transform_6(%arg0: i32) -> (i32, i32, i32) {
    %c0_i32 = arith.constant 0 : i32
    %c0_i32_0 = arith.constant 0 : i32
    %c0_i32_1 = arith.constant 0 : i32
    %c0_i32_2 = arith.constant 0 : i32
    return %c0_i32, %c0_i32_0, %c0_i32_1 : i32, i32, i32
  }
  func.func @transform_7(%arg0: i32) -> (i32, i32, i32) {
    %c0_i32 = arith.constant 0 : i32
    %c0_i32_0 = arith.constant 0 : i32
    %c0_i32_1 = arith.constant 0 : i32
    %c0_i32_2 = arith.constant 0 : i32
    return %c0_i32, %c0_i32_0, %c0_i32_1 : i32, i32, i32
  }
  func.func @transform_8(%arg0: i32) -> (i32, i32, i32) {
    %c0_i32 = arith.constant 0 : i32
    %c0_i32_0 = arith.constant 0 : i32
    %c0_i32_1 = arith.constant 0 : i32
    %c0_i32_2 = arith.constant 0 : i32
    return %c0_i32, %c0_i32_0, %c0_i32_1 : i32, i32, i32
  }
  func.func @transform_9(%arg0: i32) -> (i32, i32, i32) {
    %c0_i32 = arith.constant 0 : i32
    %c0_i32_0 = arith.constant 0 : i32
    %c0_i32_1 = arith.constant 0 : i32
    %c0_i32_2 = arith.constant 0 : i32
    return %c0_i32, %c0_i32_0, %c0_i32_1 : i32, i32, i32
  }
  func.func @transform_10(%arg0: i32) -> (i32, i32, i32) {
    %c0_i32 = arith.constant 0 : i32
    %c0_i32_0 = arith.constant 0 : i32
    %c0_i32_1 = arith.constant 0 : i32
    %c0_i32_2 = arith.constant 0 : i32
    return %c0_i32, %c0_i32_0, %c0_i32_1 : i32, i32, i32
  }
  func.func @transform_11(%arg0: i32) -> (i32, i32, i32) {
    %c0_i32 = arith.constant 0 : i32
    %c0_i32_0 = arith.constant 0 : i32
    %c0_i32_1 = arith.constant 0 : i32
    %c0_i32_2 = arith.constant 0 : i32
    return %c0_i32, %c0_i32_0, %c0_i32_1 : i32, i32, i32
  }
  func.func @transform_12(%arg0: i32) -> (i32, i32, i32) {
    %c0_i32 = arith.constant 0 : i32
    %c0_i32_0 = arith.constant 0 : i32
    %c0_i32_1 = arith.constant 0 : i32
    %c0_i32_2 = arith.constant 0 : i32
    return %c0_i32, %c0_i32_0, %c0_i32_1 : i32, i32, i32
  }
  func.func @transform_13(%arg0: i32) -> (i32, i32, i32) {
    %c0_i32 = arith.constant 0 : i32
    %c0_i32_0 = arith.constant 0 : i32
    %c0_i32_1 = arith.constant 0 : i32
    %c0_i32_2 = arith.constant 0 : i32
    return %c0_i32, %c0_i32_0, %c0_i32_1 : i32, i32, i32
  }
  func.func @transform_14(%arg0: i32) -> (i32, i32, i32) {
    %c0_i32 = arith.constant 0 : i32
    %c0_i32_0 = arith.constant 0 : i32
    %c0_i32_1 = arith.constant 0 : i32
    %c0_i32_2 = arith.constant 0 : i32
    return %c0_i32, %c0_i32_0, %c0_i32_1 : i32, i32, i32
  }
  func.func @transform_15(%arg0: i32) -> (i32, i32) {
    %c0_i32 = arith.constant 0 : i32
    %c0_i32_0 = arith.constant 0 : i32
    %c0_i32_1 = arith.constant 0 : i32
    return %c0_i32, %c0_i32_0 : i32, i32
  }
  func.func @transform_16(%arg0: i32) -> (i32, i32) {
    %c0_i32 = arith.constant 0 : i32
    %c0_i32_0 = arith.constant 0 : i32
    %c0_i32_1 = arith.constant 0 : i32
    return %c0_i32, %c0_i32_0 : i32, i32
  }
  func.func @transform_17(%arg0: i32) -> (i32, i32) {
    %c0_i32 = arith.constant 0 : i32
    %c0_i32_0 = arith.constant 0 : i32
    %c0_i32_1 = arith.constant 0 : i32
    return %c0_i32, %c0_i32_0 : i32, i32
  }
  func.func @transform_18(%arg0: i32) -> (i32, i32) {
    %c0_i32 = arith.constant 0 : i32
    %c0_i32_0 = arith.constant 0 : i32
    %c0_i32_1 = arith.constant 0 : i32
    return %c0_i32, %c0_i32_0 : i32, i32
  }
  func.func @transform_19(%arg0: i32) -> (i32, i32) {
    %c0_i32 = arith.constant 0 : i32
    %c0_i32_0 = arith.constant 0 : i32
    %c0_i32_1 = arith.constant 0 : i32
    return %c0_i32, %c0_i32_0 : i32, i32
  }
}

</mosaic_0001>

<llo_original>
// kernel: mini_gpt2_forward.1
$region0: #{mini_gpt2_forward.1}
  #allocation0 [shape = 'u32[]', space=smem, size = 0x4, offset = 0x4, fixed_abs, tag = 'smem constant byte address 0x4 - core index']
  #allocation1 [shape = 'u32[72,128]{1,0:T(1,128)}', space=vmem, size = 0x9000, scoped, tag = 'internal scratch']
  %s0 = inlined_call_operand.vmem [shape: s32[32,1], index: 0, kind: input, shape index: {}]
  %s1 = inlined_call_operand.vmem [shape: bf16[128,128], index: 1, kind: input, shape index: {}]
  %s2 = inlined_call_operand.vmem [shape: f32[16,128], index: 2, kind: input, shape index: {}]
  %s3 = inlined_call_operand.vmem [shape: bf16[2,128,384], index: 3, kind: input, shape index: {}]
  %s4 = inlined_call_operand.vmem [shape: f32[2,1,384], index: 4, kind: input, shape index: {}]
  %s5 = inlined_call_operand.vmem [shape: bf16[2,128,128], index: 5, kind: input, shape index: {}]
  %s6 = inlined_call_operand.vmem [shape: f32[2,1,128], index: 6, kind: input, shape index: {}]
  %s7 = inlined_call_operand.vmem [shape: f32[2,1,128], index: 7, kind: input, shape index: {}]
  %s8 = inlined_call_operand.vmem [shape: f32[2,1,128], index: 8, kind: input, shape index: {}]
  %s9 = inlined_call_operand.vmem [shape: bf16[2,128,512], index: 9, kind: input, shape index: {}]
  %s10 = inlined_call_operand.vmem [shape: f32[2,1,512], index: 10, kind: input, shape index: {}]
  %s11 = inlined_call_operand.vmem [shape: bf16[2,512,128], index: 11, kind: input, shape index: {}]
  %s12 = inlined_call_operand.vmem [shape: f32[2,1,128], index: 12, kind: input, shape index: {}]
  %s13 = inlined_call_operand.vmem [shape: f32[2,1,128], index: 13, kind: input, shape index: {}]
  %s14 = inlined_call_operand.vmem [shape: f32[2,1,128], index: 14, kind: input, shape index: {}]
  %s15 = inlined_call_operand.vmem [shape: f32[1,128], index: 15, kind: input, shape index: {}]
  %s16 = inlined_call_operand.vmem [shape: f32[1,128], index: 16, kind: input, shape index: {}]
  %s17 = inlined_call_operand.vmem [shape: bf16[128,128], index: 17, kind: input, shape index: {}]
  %s18 = inlined_call_operand.vmem [shape: f32[1,128], index: 18, kind: input, shape index: {}]
  %s19 = inlined_call_operand.hbm [shape: f32[32,128], index: 19, kind: output, shape index: {}]
  %s20 = sld [smem:[#allocation0]]
  $region86: #{mini_gpt2_forward.1} parent=0
    _
  %s22 = ssub.s32 1, %s20
  %s23 = scalar_select 0, %s22, %s20
  $region1: #{mini_gpt2_forward.1} parent=0
    #allocation2 [shape = 'u8[16384]{0}', space=vmem, size = 0x4000, scoped, tag = 'output window, operand 0, single buffered']
    #allocation3 [shape = 's32[1]{0}', space=sflag, size = 0x4, scoped, tag = 'scoped memory for mini_gpt2_forward.1']
    %24 = vsyncpa [#allocation3], 0
    // Predicated region
    $region2: #{mini_gpt2_forward.1} parent=1 // pred_check
      _
    $region3: #{mini_gpt2_forward.1} parent=1 // pred_check_branch
      %26 = sbr.rel (0) target = $region5
    $region4: #{mini_gpt2_forward.1} parent=1 // pred_region
      _
    $region5: #{mini_gpt2_forward.1} parent=1 // pred_fallthru
      _
    // Predicated region
    $region6: #{mini_gpt2_forward.1} parent=1 // pred_check
      _
    $region7: #{mini_gpt2_forward.1} parent=1 // pred_check_branch
      %28 = sbr.rel (0) target = $region9
    $region8: #{mini_gpt2_forward.1} parent=1 // pred_region
      _
    $region9: #{mini_gpt2_forward.1} parent=1 // pred_fallthru
      _
    // Predicated region
    $region10: #{mini_gpt2_forward.1} parent=1 // pred_check
      _
    $region11: #{mini_gpt2_forward.1} parent=1 // pred_check_branch
      %30 = sbr.rel (0) target = $region13
    $region12: #{mini_gpt2_forward.1} parent=1 // pred_region
      _
    $region13: #{mini_gpt2_forward.1} parent=1 // pred_fallthru
      _
    // Predicated region
    $region14: #{mini_gpt2_forward.1} parent=1 // pred_check
      _
    $region15: #{mini_gpt2_forward.1} parent=1 // pred_check_branch
      %32 = sbr.rel (0) target = $region17
    $region16: #{mini_gpt2_forward.1} parent=1 // pred_region
      _
    $region17: #{mini_gpt2_forward.1} parent=1 // pred_fallthru
      _
    // Predicated region
    $region18: #{mini_gpt2_forward.1} parent=1 // pred_check
      _
    $region19: #{mini_gpt2_forward.1} parent=1 // pred_check_branch
      %34 = sbr.rel (0) target = $region21
    $region20: #{mini_gpt2_forward.1} parent=1 // pred_region
      _
    $region21: #{mini_gpt2_forward.1} parent=1 // pred_fallthru
      _
    // Predicated region
    $region22: #{mini_gpt2_forward.1} parent=1 // pred_check
      _
    $region23: #{mini_gpt2_forward.1} parent=1 // pred_check_branch
      %36 = sbr.rel (0) target = $region25
    $region24: #{mini_gpt2_forward.1} parent=1 // pred_region
      _
    $region25: #{mini_gpt2_forward.1} parent=1 // pred_fallthru
      _
    // Predicated region
    $region26: #{mini_gpt2_forward.1} parent=1 // pred_check
      _
    $region27: #{mini_gpt2_forward.1} parent=1 // pred_check_branch
      %38 = sbr.rel (0) target = $region29
    $region28: #{mini_gpt2_forward.1} parent=1 // pred_region
      _
    $region29: #{mini_gpt2_forward.1} parent=1 // pred_fallthru
      _
    // Predicated region
    $region30: #{mini_gpt2_forward.1} parent=1 // pred_check
      _
    $region31: #{mini_gpt2_forward.1} parent=1 // pred_check_branch
      %40 = sbr.rel (0) target = $region33
    $region32: #{mini_gpt2_forward.1} parent=1 // pred_region
      _
    $region33: #{mini_gpt2_forward.1} parent=1 // pred_fallthru
      _
    // Predicated region
    $region34: #{mini_gpt2_forward.1} parent=1 // pred_check
      _
    $region35: #{mini_gpt2_forward.1} parent=1 // pred_check_branch
      %42 = sbr.rel (0) target = $region37
    $region36: #{mini_gpt2_forward.1} parent=1 // pred_region
      _
    $region37: #{mini_gpt2_forward.1} parent=1 // pred_fallthru
      _
    // Predicated region
    $region38: #{mini_gpt2_forward.1} parent=1 // pred_check
      _
    $region39: #{mini_gpt2_forward.1} parent=1 // pred_check_branch
      %44 = sbr.rel (0) target = $region41
    $region40: #{mini_gpt2_forward.1} parent=1 // pred_region
      _
    $region41: #{mini_gpt2_forward.1} parent=1 // pred_fallthru
      _
    // Predicated region
    $region42: #{mini_gpt2_forward.1} parent=1 // pred_check
      _
    $region43: #{mini_gpt2_forward.1} parent=1 // pred_check_branch
      %46 = sbr.rel (0) target = $region45
    $region44: #{mini_gpt2_forward.1} parent=1 // pred_region
      _
    $region45: #{mini_gpt2_forward.1} parent=1 // pred_fallthru
      _
    // Predicated region
    $region46: #{mini_gpt2_forward.1} parent=1 // pred_check
      _
    $region47: #{mini_gpt2_forward.1} parent=1 // pred_check_branch
      %48 = sbr.rel (0) target = $region49
    $region48: #{mini_gpt2_forward.1} parent=1 // pred_region
      _
    $region49: #{mini_gpt2_forward.1} parent=1 // pred_fallthru
      _
    // Predicated region
    $region50: #{mini_gpt2_forward.1} parent=1 // pred_check
      _
    $region51: #{mini_gpt2_forward.1} parent=1 // pred_check_branch
      %50 = sbr.rel (0) target = $region53
    $region52: #{mini_gpt2_forward.1} parent=1 // pred_region
      _
    $region53: #{mini_gpt2_forward.1} parent=1 // pred_fallthru
      _
    // Predicated region
    $region54: #{mini_gpt2_forward.1} parent=1 // pred_check
      _
    $region55: #{mini_gpt2_forward.1} parent=1 // pred_check_branch
      %52 = sbr.rel (0) target = $region57
    $region56: #{mini_gpt2_forward.1} parent=1 // pred_region
      _
    $region57: #{mini_gpt2_forward.1} parent=1 // pred_fallthru
      _
    // Predicated region
    $region58: #{mini_gpt2_forward.1} parent=1 // pred_check
      _
    $region59: #{mini_gpt2_forward.1} parent=1 // pred_check_branch
      %54 = sbr.rel (0) target = $region61
    $region60: #{mini_gpt2_forward.1} parent=1 // pred_region
      _
    $region61: #{mini_gpt2_forward.1} parent=1 // pred_fallthru
      _
    // Predicated region
    $region62: #{mini_gpt2_forward.1} parent=1 // pred_check
      _
    $region63: #{mini_gpt2_forward.1} parent=1 // pred_check_branch
      %56 = sbr.rel (0) target = $region65
    $region64: #{mini_gpt2_forward.1} parent=1 // pred_region
      _
    $region65: #{mini_gpt2_forward.1} parent=1 // pred_fallthru
      _
    // Predicated region
    $region66: #{mini_gpt2_forward.1} parent=1 // pred_check
      _
    $region67: #{mini_gpt2_forward.1} parent=1 // pred_check_branch
      %58 = sbr.rel (0) target = $region69
    $region68: #{mini_gpt2_forward.1} parent=1 // pred_region
      _
    $region69: #{mini_gpt2_forward.1} parent=1 // pred_fallthru
      _
    // Predicated region
    $region70: #{mini_gpt2_forward.1} parent=1 // pred_check
      _
    $region71: #{mini_gpt2_forward.1} parent=1 // pred_check_branch
      %60 = sbr.rel (0) target = $region73
    $region72: #{mini_gpt2_forward.1} parent=1 // pred_region
      _
    $region73: #{mini_gpt2_forward.1} parent=1 // pred_fallthru
      _
    // Predicated region
    $region74: #{mini_gpt2_forward.1} parent=1 // pred_check
      _
    $region75: #{mini_gpt2_forward.1} parent=1 // pred_check_branch
      %62 = sbr.rel (0) target = $region77
    $region76: #{mini_gpt2_forward.1} parent=1 // pred_region
      _
    $region77: #{mini_gpt2_forward.1} parent=1 // pred_fallthru
      _
    %v64 = vld [vmem:[%s0] sm:$0xff]
    %v65 = vld [vmem:[%s0 + $0x8] sm:$0xff]
    %v66 = vld [vmem:[%s0 + $0x10] sm:$0xff]
    %v67 = vld [vmem:[%s0 + $0x18] sm:$0xff]
    %v68 = vlaneseq
    %v69 = vand.u32 %v68, 127
    %70 = vset.pattern.permute.xlu0 0
    %71 = vperm.xlu0 %70, %v64
    %v72 = vpop.permute.xlu0 %71
    %73 = vset.pattern.permute.xlu0 0
    %74 = vperm.xlu0 %73, %v65
    %v75 = vpop.permute.xlu0 %74
    %76 = vset.pattern.permute.xlu0 0
    %77 = vperm.xlu0 %76, %v66
    %v78 = vpop.permute.xlu0 %77
    %79 = vset.pattern.permute.xlu0 0
    %80 = vperm.xlu0 %79, %v67
    %v81 = vpop.permute.xlu0 %80
    %vm82 = vcmp.eq.s32.totalorder %v69, %v72
    %vm83 = vcmp.eq.s32.totalorder %v69, %v75
    %vm84 = vcmp.eq.s32.totalorder %v69, %v78
    %vm85 = vcmp.eq.s32.totalorder %v69, %v81
    %v86 = vsel %vm82, 1, 0
    %v87 = vsel %vm83, 1, 0
    %v88 = vsel %vm84, 1, 0
    %v89 = vsel %vm85, 1, 0
    %v90 = vcvt.s32.f32 %v86
    %v91 = vcvt.s32.f32 %v87
    %v92 = vcvt.s32.f32 %v88
    %v93 = vcvt.s32.f32 %v89
    %v94 = vpack.c.bf16 %v91, %v90
    %v95 = vpack.c.bf16 %v93, %v92
    %v96 = vld [vmem:[%s1] sm:$0xf]
    %v97 = vld [vmem:[%s1 + $0x4] sm:$0xf]
    %v98 = vld [vmem:[%s1 + $0x8] sm:$0xf]
    %v99 = vld [vmem:[%s1 + $0xc] sm:$0xf]
    %v100 = vld [vmem:[%s1 + $0x10] sm:$0xf]
    %v101 = vld [vmem:[%s1 + $0x14] sm:$0xf]
    %v102 = vld [vmem:[%s1 + $0x18] sm:$0xf]
    %v103 = vld [vmem:[%s1 + $0x1c] sm:$0xf]
    %v104 = vld [vmem:[%s1 + $0x20] sm:$0xf]
    %v105 = vld [vmem:[%s1 + $0x24] sm:$0xf]
    %v106 = vld [vmem:[%s1 + $0x28] sm:$0xf]
    %v107 = vld [vmem:[%s1 + $0x2c] sm:$0xf]
    %v108 = vld [vmem:[%s1 + $0x30] sm:$0xf]
    %v109 = vld [vmem:[%s1 + $0x34] sm:$0xf]
    %v110 = vld [vmem:[%s1 + $0x38] sm:$0xf]
    %v111 = vld [vmem:[%s1 + $0x3c] sm:$0xf]
    %v128 = vunpack.c.l.b16 %v96
    %v129 = vunpack.c.l.b16 %v97
    %v130 = vunpack.c.l.b16 %v98
    %v131 = vunpack.c.l.b16 %v99
    %v132 = vunpack.c.l.b16 %v100
    %v133 = vunpack.c.l.b16 %v101
    %v134 = vunpack.c.l.b16 %v102
    %v135 = vunpack.c.l.b16 %v103
    %v136 = vunpack.c.l.b16 %v104
    %v137 = vunpack.c.l.b16 %v105
    %v138 = vunpack.c.l.b16 %v106
    %v139 = vunpack.c.l.b16 %v107
    %v140 = vunpack.c.l.b16 %v108
    %v141 = vunpack.c.l.b16 %v109
    %v142 = vunpack.c.l.b16 %v110
    %v143 = vunpack.c.l.b16 %v111
    %v144 = vpack.c.b16 %v129, %v128
    %v145 = vpack.c.b16 %v131, %v130
    %v146 = vpack.c.b16 %v133, %v132
    %v147 = vpack.c.b16 %v135, %v134
    %v148 = vpack.c.b16 %v137, %v136
    %v149 = vpack.c.b16 %v139, %v138
    %v150 = vpack.c.b16 %v141, %v140
    %v151 = vpack.c.b16 %v143, %v142
    %160 = vmatpush.bf16.msra.mxu0 %v151
    %161 = vmatpush.bf16.msra.mxu0 %v150
    %162 = vmatpush.bf16.msra.mxu0 %v149
    %163 = vmatpush.bf16.msra.mxu0 %v148
    %164 = vmatpush.bf16.msra.mxu0 %v147
    %165 = vmatpush.bf16.msra.mxu0 %v146
    %166 = vmatpush.bf16.msra.mxu0 %v145
    %167 = vmatpush.bf16.msra.mxu0 %v144
    %168 = vmatmul.bf16.gmra.mxu0 %v94
    %v169 = vpop.f32.mrf.mxu0
    %v170 = vadd.f32 0.0, %v169
    %v171 = vpop.f32.mrf.mxu0
    %v172 = vadd.f32 0.0, %v171
    %173 = vmatmul.bf16.gmra.mxu0 %v95
    %v174 = vpop.f32.mrf.mxu0
    %v175 = vadd.f32 0.0, %v174
    %v176 = vpop.f32.mrf.mxu0
    %v177 = vadd.f32 0.0, %v176
    %178 = vdwg.mxu0
    %v179 = vld [vmem:[%s2] sm:$0xff]
    %v180 = vld [vmem:[%s2 + $0x8] sm:$0xff]
    %v181 = vadd.f32 %v170, %v179
    %v182 = vadd.f32 %v172, %v180
    %v183 = vadd.f32 %v175, %v179
    %v184 = vadd.f32 %v177, %v180
    %v185 = vpack.c.bf16 %v182, %v181
    %v186 = vpack.c.bf16 %v184, %v183
    %v187 = vld [vmem:[%s3] sm:$0xff]
    %v188 = vld [vmem:[%s3 + $0x8] sm:$0xf]
    %v189 = vld [vmem:[%s3 + $0xc] sm:$0xff]
    %v190 = vld [vmem:[%s3 + $0x14] sm:$0xf]
    %v191 = vld [vmem:[%s3 + $0x18] sm:$0xff]
    %v192 = vld [vmem:[%s3 + $0x20] sm:$0xf]
    %v193 = vld [vmem:[%s3 + $0x24] sm:$0xff]
    %v194 = vld [vmem:[%s3 + $0x2c] sm:$0xf]
    %v195 = vld [vmem:[%s3 + $0x30] sm:$0xff]
    %v196 = vld [vmem:[%s3 + $0x38] sm:$0xf]
    %v197 = vld [vmem:[%s3 + $0x3c] sm:$0xff]
    %v198 = vld [vmem:[%s3 + $0x44] sm:$0xf]
    %v199 = vld [vmem:[%s3 + $0x48] sm:$0xff]
    %v200 = vld [vmem:[%s3 + $0x50] sm:$0xf]
    %v201 = vld [vmem:[%s3 + $0x54] sm:$0xff]
    %v202 = vld [vmem:[%s3 + $0x5c] sm:$0xf]
    %v203 = vld [vmem:[%s3 + $0x60] sm:$0xff]
    %v204 = vld [vmem:[%s3 + $0x68] sm:$0xf]
    %v205 = vld [vmem:[%s3 + $0x6c] sm:$0xff]
    %v206 = vld [vmem:[%s3 + $0x74] sm:$0xf]
    %v207 = vld [vmem:[%s3 + $0x78] sm:$0xff]
    %v208 = vld [vmem:[%s3 + $0x80] sm:$0xf]
    %v209 = vld [vmem:[%s3 + $0x84] sm:$0xff]
    %v210 = vld [vmem:[%s3 + $0x8c] sm:$0xf]
    %v211 = vld [vmem:[%s3 + $0x90] sm:$0xff]
    %v212 = vld [vmem:[%s3 + $0x98] sm:$0xf]
    %v213 = vld [vmem:[%s3 + $0x9c] sm:$0xff]
    %v214 = vld [vmem:[%s3 + $0xa4] sm:$0xf]
    %v215 = vld [vmem:[%s3 + $0xa8] sm:$0xff]
    %v216 = vld [vmem:[%s3 + $0xb0] sm:$0xf]
    %v217 = vld [vmem:[%s3 + $0xb4] sm:$0xff]
    %v218 = vld [vmem:[%s3 + $0xbc] sm:$0xf]
    %v219 = vld [vmem:[%s4] sm:$0x7]
    %v221 = vperm.slane %v219, 0
    %v222 = vperm.slane %v219, 1
    %v223 = vperm.slane %v219, 2
    %v259 = vunpack.c.l.b16 %v187
    %v260 = vunpack.c.h.b16 %v187
    %v261 = vunpack.c.l.b16 %v188
    %v262 = vunpack.c.l.b16 %v189
    %v263 = vunpack.c.h.b16 %v189
    %v264 = vunpack.c.l.b16 %v190
    %v265 = vunpack.c.l.b16 %v191
    %v266 = vunpack.c.h.b16 %v191
    %v267 = vunpack.c.l.b16 %v192
    %v268 = vunpack.c.l.b16 %v193
    %v269 = vunpack.c.h.b16 %v193
    %v270 = vunpack.c.l.b16 %v194
    %v271 = vunpack.c.l.b16 %v195
    %v272 = vunpack.c.h.b16 %v195
    %v273 = vunpack.c.l.b16 %v196
    %v274 = vunpack.c.l.b16 %v197
    %v275 = vunpack.c.h.b16 %v197
    %v276 = vunpack.c.l.b16 %v198
    %v277 = vunpack.c.l.b16 %v199
    %v278 = vunpack.c.h.b16 %v199
    %v279 = vunpack.c.l.b16 %v200
    %v280 = vunpack.c.l.b16 %v201
    %v281 = vunpack.c.h.b16 %v201
    %v282 = vunpack.c.l.b16 %v202
    %v283 = vunpack.c.l.b16 %v203
    %v284 = vunpack.c.h.b16 %v203
    %v285 = vunpack.c.l.b16 %v204
    %v286 = vunpack.c.l.b16 %v205
    %v287 = vunpack.c.h.b16 %v205
    %v288 = vunpack.c.l.b16 %v206
    %v289 = vunpack.c.l.b16 %v207
    %v290 = vunpack.c.h.b16 %v207
    %v291 = vunpack.c.l.b16 %v208
    %v292 = vunpack.c.l.b16 %v209
    %v293 = vunpack.c.h.b16 %v209
    %v294 = vunpack.c.l.b16 %v210
    %v295 = vunpack.c.l.b16 %v211
    %v296 = vunpack.c.h.b16 %v211
    %v297 = vunpack.c.l.b16 %v212
    %v298 = vunpack.c.l.b16 %v213
    %v299 = vunpack.c.h.b16 %v213
    %v300 = vunpack.c.l.b16 %v214
    %v301 = vunpack.c.l.b16 %v215
    %v302 = vunpack.c.h.b16 %v215
    %v303 = vunpack.c.l.b16 %v216
    %v304 = vunpack.c.l.b16 %v217
    %v305 = vunpack.c.h.b16 %v217
    %v306 = vunpack.c.l.b16 %v218
    %v307 = vpack.c.b16 %v262, %v259
    %v308 = vpack.c.b16 %v263, %v260
    %v309 = vpack.c.b16 %v264, %v261
    %v310 = vpack.c.b16 %v268, %v265
    %v311 = vpack.c.b16 %v269, %v266
    %v312 = vpack.c.b16 %v270, %v267
    %v313 = vpack.c.b16 %v274, %v271
    %v314 = vpack.c.b16 %v275, %v272
    %v315 = vpack.c.b16 %v276, %v273
    %v316 = vpack.c.b16 %v280, %v277
    %v317 = vpack.c.b16 %v281, %v278
    %v318 = vpack.c.b16 %v282, %v279
    %v319 = vpack.c.b16 %v286, %v283
    %v320 = vpack.c.b16 %v287, %v284
    %v321 = vpack.c.b16 %v288, %v285
    %v322 = vpack.c.b16 %v292, %v289
    %v323 = vpack.c.b16 %v293, %v290
    %v324 = vpack.c.b16 %v294, %v291
    %v325 = vpack.c.b16 %v298, %v295
    %v326 = vpack.c.b16 %v299, %v296
    %v327 = vpack.c.b16 %v300, %v297
    %v328 = vpack.c.b16 %v304, %v301
    %v329 = vpack.c.b16 %v305, %v302
    %v330 = vpack.c.b16 %v306, %v303
    %355 = vmatpush.bf16.msra.mxu0 %v328
    %356 = vmatpush.bf16.msra.mxu0 %v325
    %357 = vmatpush.bf16.msra.mxu0 %v322
    %358 = vmatpush.bf16.msra.mxu0 %v319
    %359 = vmatpush.bf16.msra.mxu0 %v316
    %360 = vmatpush.bf16.msra.mxu0 %v313
    %361 = vmatpush.bf16.msra.mxu0 %v310
    %362 = vmatpush.bf16.msra.mxu0 %v307
    %363 = vmatmul.bf16.gmra.mxu0 %v185
    %v364 = vpop.f32.mrf.mxu0
    %v365 = vadd.f32 %v221, %v364
    %v366 = vpop.f32.mrf.mxu0
    %v367 = vadd.f32 %v221, %v366
    %368 = vmatmul.bf16.gmra.mxu0 %v186
    %v369 = vpop.f32.mrf.mxu0
    %v370 = vadd.f32 %v221, %v369
    %v371 = vpop.f32.mrf.mxu0
    %v372 = vadd.f32 %v221, %v371
    %373 = vdwg.mxu0
    %374 = vmatpush.bf16.msra.mxu0 %v329
    %375 = vmatpush.bf16.msra.mxu0 %v326
    %376 = vmatpush.bf16.msra.mxu0 %v323
    %377 = vmatpush.bf16.msra.mxu0 %v320
    %378 = vmatpush.bf16.msra.mxu0 %v317
    %379 = vmatpush.bf16.msra.mxu0 %v314
    %380 = vmatpush.bf16.msra.mxu0 %v311
    %381 = vmatpush.bf16.msra.mxu0 %v308
    %382 = vmatmul.bf16.gmra.mxu0 %v185
    %v383 = vpop.f32.mrf.mxu0
    %v384 = vadd.f32 %v222, %v383
    %v385 = vpop.f32.mrf.mxu0
    %v386 = vadd.f32 %v222, %v385
    %387 = vmatmul.bf16.gmra.mxu0 %v186
    %v388 = vpop.f32.mrf.mxu0
    %v389 = vadd.f32 %v222, %v388
    %v390 = vpop.f32.mrf.mxu0
    %v391 = vadd.f32 %v222, %v390
    %392 = vdwg.mxu0
    %393 = vmatpush.bf16.msra.mxu0 %v330
    %394 = vmatpush.bf16.msra.mxu0 %v327
    %395 = vmatpush.bf16.msra.mxu0 %v324
    %396 = vmatpush.bf16.msra.mxu0 %v321
    %397 = vmatpush.bf16.msra.mxu0 %v318
    %398 = vmatpush.bf16.msra.mxu0 %v315
    %399 = vmatpush.bf16.msra.mxu0 %v312
    %400 = vmatpush.bf16.msra.mxu0 %v309
    %401 = vmatmul.bf16.gmra.mxu0 %v185
    %v402 = vpop.f32.mrf.mxu0
    %v403 = vadd.f32 %v223, %v402
    %v404 = vpop.f32.mrf.mxu0
    %v405 = vadd.f32 %v223, %v404
    %406 = vmatmul.bf16.gmra.mxu0 %v186
    %v407 = vpop.f32.mrf.mxu0
    %v408 = vadd.f32 %v223, %v407
    %v409 = vpop.f32.mrf.mxu0
    %v410 = vadd.f32 %v223, %v409
    %411 = vdwg.mxu0
    %v412 = vpack.c.bf16 %v365, %v365
    %v413 = vpack.c.bf16 %v367, %v367
    %v414 = vpack.c.bf16 %v370, %v370
    %v415 = vpack.c.bf16 %v372, %v372
    %v416 = vpack.c.bf16 %v384, %v384
    %v417 = vpack.c.bf16 %v386, %v386
    %v418 = vpack.c.bf16 %v389, %v389
    %v419 = vpack.c.bf16 %v391, %v391
    %v420 = vpack.c.bf16 %v403, %v403
    %v421 = vpack.c.bf16 %v405, %v405
    %v422 = vpack.c.bf16 %v408, %v408
    %v423 = vpack.c.bf16 %v410, %v410
    %v426 = vunpack.c.l.b16 %v412
    %v427 = vunpack.c.l.b16 %v413
    %v428 = vpack.c.b16 %v427, %v426
    %v431 = vunpack.c.l.b16 %v416
    %v432 = vunpack.c.l.b16 %v417
    %v433 = vpack.c.b16 %v432, %v431
    %vm434 = vcmask 261120
    %v436 = vsel %vm434, %v428, 0
    %v439 = vsel %vm434, %v433, 0
    %441 = vmatpush.bf16.xpose.msra.mxu0 0
    %442 = vmatpush.bf16.xpose.msra.mxu0 0
    %443 = vmatpush.bf16.xpose.msra.mxu0 0
    %444 = vmatpush.bf16.xpose.msra.mxu0 0
    %445 = vmatpush.bf16.xpose.msra.mxu0 0
    %446 = vmatpush.bf16.xpose.msra.mxu0 0
    %447 = vmatpush.bf16.xpose.msra.mxu0 0
    %448 = vmatpush.bf16.xpose.msra.mxu0 %v439
    %449 = vmatmul.bf16.gmra.mxu0 %v436
    %v450 = vpop.f32.mrf.mxu0
    %v451 = vadd.f32 0.0, %v450
    %v452 = vpop.f32.mrf.mxu0
    %v453 = vadd.f32 0.0, %v452
    %454 = vdwg.mxu0
    %v457 = vunpack.c.l.b16 %v414
    %v458 = vunpack.c.l.b16 %v415
    %v459 = vpack.c.b16 %v458, %v457
    %v462 = vunpack.c.l.b16 %v418
    %v463 = vunpack.c.l.b16 %v419
    %v464 = vpack.c.b16 %v463, %v462
    %v466 = vsel %vm434, %v459, 0
    %v469 = vsel %vm434, %v464, 0
    %471 = vmatpush.bf16.xpose.msra.mxu0 0
    %472 = vmatpush.bf16.xpose.msra.mxu0 0
    %473 = vmatpush.bf16.xpose.msra.mxu0 0
    %474 = vmatpush.bf16.xpose.msra.mxu0 0
    %475 = vmatpush.bf16.xpose.msra.mxu0 0
    %476 = vmatpush.bf16.xpose.msra.mxu0 0
    %477 = vmatpush.bf16.xpose.msra.mxu0 0
    %478 = vmatpush.bf16.xpose.msra.mxu0 %v469
    %479 = vmatmul.bf16.gmra.mxu0 %v466
    %v480 = vpop.f32.mrf.mxu0
    %v481 = vadd.f32 0.0, %v480
    %v482 = vpop.f32.mrf.mxu0
    %v483 = vadd.f32 0.0, %v482
    %484 = vdwg.mxu0
    %vm485 = vcmask 130048
    %v486 = vsel %vm485, %v451, -inf
    %487 = vmax.xlane.f32.xlu0 %v486
    %v488 = vpop.xlane.xlu0 %487
    %v489 = vsel %vm485, %v453, -inf
    %490 = vmax.xlane.f32.xlu0 %v489
    %v491 = vpop.xlane.xlu0 %490
    %v492 = vsel %vm485, %v481, -inf
    %493 = vmax.xlane.f32.xlu0 %v492
    %v494 = vpop.xlane.xlu0 %493
    %v495 = vsel %vm485, %v483, -inf
    %496 = vmax.xlane.f32.xlu0 %v495
    %v497 = vpop.xlane.xlu0 %496
    %v498 = vsub.f32 %v451, %v488
    %v499 = vsub.f32 %v453, %v491
    %v500 = vsub.f32 %v481, %v494
    %v501 = vsub.f32 %v483, %v497
    %v502 = vmul.f32 %v498, 1.442695
    %v503 = vpow.pop %v502
    %v504 = vmul.f32 %v499, 1.442695
    %v505 = vpow.pop %v504
    %v506 = vmul.f32 %v500, 1.442695
    %v507 = vpow.pop %v506
    %v508 = vmul.f32 %v501, 1.442695
    %v509 = vpow.pop %v508
    %v510 = vsel %vm485, %v503, 0.0
    %511 = vadd.xlane.f32.xlu0 %v510
    %v512 = vpop.xlane.xlu0 %511
    %v513 = vsel %vm485, %v505, 0.0
    %514 = vadd.xlane.f32.xlu0 %v513
    %v515 = vpop.xlane.xlu0 %514
    %v516 = vsel %vm485, %v507, 0.0
    %517 = vadd.xlane.f32.xlu0 %v516
    %v518 = vpop.xlane.xlu0 %517
    %v519 = vsel %vm485, %v509, 0.0
    %520 = vadd.xlane.f32.xlu0 %v519
    %v521 = vpop.xlane.xlu0 %520
    %v522 = vrcp.pop %v512
    %v523 = vrcp.pop %v515
    %v524 = vrcp.pop %v518
    %v525 = vrcp.pop %v521
    %v526 = vmul.f32 %v503, %v522
    %v527 = vmul.f32 %v505, %v523
    %v528 = vmul.f32 %v507, %v524
    %v529 = vmul.f32 %v509, %v525
    %v530 = vpack.c.bf16 %v526, %v526
    %v531 = vpack.c.bf16 %v527, %v527
    %v532 = vpack.c.bf16 %v528, %v528
    %v533 = vpack.c.bf16 %v529, %v529
    %v536 = vunpack.c.l.b16 %v530
    %v537 = vunpack.c.l.b16 %v531
    %v538 = vpack.c.b16 %v537, %v536
    %v541 = vunpack.c.l.b16 %v420
    %v542 = vunpack.c.l.b16 %v421
    %v543 = vpack.c.b16 %v542, %v541
    %v546 = vsel %vm485, %v538, 0
    %548 = vmatpush.bf16.msra.mxu0 0
    %549 = vmatpush.bf16.msra.mxu0 0
    %550 = vmatpush.bf16.msra.mxu0 0
    %551 = vmatpush.bf16.msra.mxu0 0
    %552 = vmatpush.bf16.msra.mxu0 0
    %553 = vmatpush.bf16.msra.mxu0 0
    %554 = vmatpush.bf16.msra.mxu0 0
    %555 = vmatpush.bf16.msra.mxu0 %v543
    %556 = vmatmul.bf16.gmra.mxu0 %v546
    %v557 = vpop.f32.mrf.mxu0
    %v558 = vadd.f32 0.0, %v557
    %v559 = vpop.f32.mrf.mxu0
    %v560 = vadd.f32 0.0, %v559
    %561 = vdwg.mxu0
    %v564 = vunpack.c.l.b16 %v532
    %v565 = vunpack.c.l.b16 %v533
    %v566 = vpack.c.b16 %v565, %v564
    %v569 = vunpack.c.l.b16 %v422
    %v570 = vunpack.c.l.b16 %v423
    %v571 = vpack.c.b16 %v570, %v569
    %v574 = vsel %vm485, %v566, 0
    %576 = vmatpush.bf16.msra.mxu0 0
    %577 = vmatpush.bf16.msra.mxu0 0
    %578 = vmatpush.bf16.msra.mxu0 0
    %579 = vmatpush.bf16.msra.mxu0 0
    %580 = vmatpush.bf16.msra.mxu0 0
    %581 = vmatpush.bf16.msra.mxu0 0
    %582 = vmatpush.bf16.msra.mxu0 0
    %583 = vmatpush.bf16.msra.mxu0 %v571
    %584 = vmatmul.bf16.gmra.mxu0 %v574
    %v585 = vpop.f32.mrf.mxu0
    %v586 = vadd.f32 0.0, %v585
    %v587 = vpop.f32.mrf.mxu0
    %v588 = vadd.f32 0.0, %v587
    %589 = vdwg.mxu0
    %590 = vrot.lane.b32.xlu0 %v428, 96
    %v591 = vpop.permute.xlu0 %590
    %592 = vrot.lane.b32.xlu0 %v433, 96
    %v593 = vpop.permute.xlu0 %592
    %v595 = vsel %vm434, %v591, 0
    %v598 = vsel %vm434, %v593, 0
    %600 = vmatpush.bf16.xpose.msra.mxu0 0
    %601 = vmatpush.bf16.xpose.msra.mxu0 0
    %602 = vmatpush.bf16.xpose.msra.mxu0 0
    %603 = vmatpush.bf16.xpose.msra.mxu0 0
    %604 = vmatpush.bf16.xpose.msra.mxu0 0
    %605 = vmatpush.bf16.xpose.msra.mxu0 0
    %606 = vmatpush.bf16.xpose.msra.mxu0 0
    %607 = vmatpush.bf16.xpose.msra.mxu0 %v598
    %608 = vmatmul.bf16.gmra.mxu0 %v595
    %v609 = vpop.f32.mrf.mxu0
    %v610 = vadd.f32 0.0, %v609
    %v611 = vpop.f32.mrf.mxu0
    %v612 = vadd.f32 0.0, %v611
    %613 = vdwg.mxu0
    %614 = vrot.lane.b32.xlu0 %v459, 96
    %v615 = vpop.permute.xlu0 %614
    %616 = vrot.lane.b32.xlu0 %v464, 96
    %v617 = vpop.permute.xlu0 %616
    %v619 = vsel %vm434, %v615, 0
    %v622 = vsel %vm434, %v617, 0
    %624 = vmatpush.bf16.xpose.msra.mxu0 0
    %625 = vmatpush.bf16.xpose.msra.mxu0 0
    %626 = vmatpush.bf16.xpose.msra.mxu0 0
    %627 = vmatpush.bf16.xpose.msra.mxu0 0
    %628 = vmatpush.bf16.xpose.msra.mxu0 0
    %629 = vmatpush.bf16.xpose.msra.mxu0 0
    %630 = vmatpush.bf16.xpose.msra.mxu0 0
    %631 = vmatpush.bf16.xpose.msra.mxu0 %v622
    %632 = vmatmul.bf16.gmra.mxu0 %v619
    %v633 = vpop.f32.mrf.mxu0
    %v634 = vadd.f32 0.0, %v633
    %v635 = vpop.f32.mrf.mxu0
    %v636 = vadd.f32 0.0, %v635
    %637 = vdwg.mxu0
    %v638 = vsel %vm485, %v610, -inf
    %639 = vmax.xlane.f32.xlu0 %v638
    %v640 = vpop.xlane.xlu0 %639
    %v641 = vsel %vm485, %v612, -inf
    %642 = vmax.xlane.f32.xlu0 %v641
    %v643 = vpop.xlane.xlu0 %642
    %v644 = vsel %vm485, %v634, -inf
    %645 = vmax.xlane.f32.xlu0 %v644
    %v646 = vpop.xlane.xlu0 %645
    %v647 = vsel %vm485, %v636, -inf
    %648 = vmax.xlane.f32.xlu0 %v647
    %v649 = vpop.xlane.xlu0 %648
    %v650 = vsub.f32 %v610, %v640
    %v651 = vsub.f32 %v612, %v643
    %v652 = vsub.f32 %v634, %v646
    %v653 = vsub.f32 %v636, %v649
    %v654 = vmul.f32 %v650, 1.442695
    %v655 = vpow.pop %v654
    %v656 = vmul.f32 %v651, 1.442695
    %v657 = vpow.pop %v656
    %v658 = vmul.f32 %v652, 1.442695
    %v659 = vpow.pop %v658
    %v660 = vmul.f32 %v653, 1.442695
    %v661 = vpow.pop %v660
    %v662 = vsel %vm485, %v655, 0.0
    %663 = vadd.xlane.f32.xlu0 %v662
    %v664 = vpop.xlane.xlu0 %663
    %v665 = vsel %vm485, %v657, 0.0
    %666 = vadd.xlane.f32.xlu0 %v665
    %v667 = vpop.xlane.xlu0 %666
    %v668 = vsel %vm485, %v659, 0.0
    %669 = vadd.xlane.f32.xlu0 %v668
    %v670 = vpop.xlane.xlu0 %669
    %v671 = vsel %vm485, %v661, 0.0
    %672 = vadd.xlane.f32.xlu0 %v671
    %v673 = vpop.xlane.xlu0 %672
    %v674 = vrcp.pop %v664
    %v675 = vrcp.pop %v667
    %v676 = vrcp.pop %v670
    %v677 = vrcp.pop %v673
    %v678 = vmul.f32 %v655, %v674
    %v679 = vmul.f32 %v657, %v675
    %v680 = vmul.f32 %v659, %v676
    %v681 = vmul.f32 %v661, %v677
    %v682 = vpack.c.bf16 %v678, %v678
    %v683 = vpack.c.bf16 %v679, %v679
    %v684 = vpack.c.bf16 %v680, %v680
    %v685 = vpack.c.bf16 %v681, %v681
    %v688 = vunpack.c.l.b16 %v682
    %v689 = vunpack.c.l.b16 %v683
    %v690 = vpack.c.b16 %v689, %v688
    %691 = vrot.lane.b32.xlu0 %v543, 96
    %v692 = vpop.permute.xlu0 %691
    %v695 = vsel %vm485, %v690, 0
    %697 = vmatpush.bf16.msra.mxu0 0
    %698 = vmatpush.bf16.msra.mxu0 0
    %699 = vmatpush.bf16.msra.mxu0 0
    %700 = vmatpush.bf16.msra.mxu0 0
    %701 = vmatpush.bf16.msra.mxu0 0
    %702 = vmatpush.bf16.msra.mxu0 0
    %703 = vmatpush.bf16.msra.mxu0 0
    %704 = vmatpush.bf16.msra.mxu0 %v692
    %705 = vmatmul.bf16.gmra.mxu0 %v695
    %v706 = vpop.f32.mrf.mxu0
    %v707 = vadd.f32 0.0, %v706
    %v708 = vpop.f32.mrf.mxu0
    %v709 = vadd.f32 0.0, %v708
    %710 = vdwg.mxu0
    %v713 = vunpack.c.l.b16 %v684
    %v714 = vunpack.c.l.b16 %v685
    %v715 = vpack.c.b16 %v714, %v713
    %716 = vrot.lane.b32.xlu0 %v571, 96
    %v717 = vpop.permute.xlu0 %716
    %v720 = vsel %vm485, %v715, 0
    %722 = vmatpush.bf16.msra.mxu0 0
    %723 = vmatpush.bf16.msra.mxu0 0
    %724 = vmatpush.bf16.msra.mxu0 0
    %725 = vmatpush.bf16.msra.mxu0 0
    %726 = vmatpush.bf16.msra.mxu0 0
    %727 = vmatpush.bf16.msra.mxu0 0
    %728 = vmatpush.bf16.msra.mxu0 0
    %729 = vmatpush.bf16.msra.mxu0 %v717
    %730 = vmatmul.bf16.gmra.mxu0 %v720
    %v731 = vpop.f32.mrf.mxu0
    %v732 = vadd.f32 0.0, %v731
    %v733 = vpop.f32.mrf.mxu0
    %v734 = vadd.f32 0.0, %v733
    %735 = vdwg.mxu0
    %736 = vrot.lane.b32.xlu0 %v428, 64
    %v737 = vpop.permute.xlu0 %736
    %738 = vrot.lane.b32.xlu0 %v433, 64
    %v739 = vpop.permute.xlu0 %738
    %v741 = vsel %vm434, %v737, 0
    %v744 = vsel %vm434, %v739, 0
    %746 = vmatpush.bf16.xpose.msra.mxu0 0
    %747 = vmatpush.bf16.xpose.msra.mxu0 0
    %748 = vmatpush.bf16.xpose.msra.mxu0 0
    %749 = vmatpush.bf16.xpose.msra.mxu0 0
    %750 = vmatpush.bf16.xpose.msra.mxu0 0
    %751 = vmatpush.bf16.xpose.msra.mxu0 0
    %752 = vmatpush.bf16.xpose.msra.mxu0 0
    %753 = vmatpush.bf16.xpose.msra.mxu0 %v744
    %754 = vmatmul.bf16.gmra.mxu0 %v741
    %v755 = vpop.f32.mrf.mxu0
    %v756 = vadd.f32 0.0, %v755
    %v757 = vpop.f32.mrf.mxu0
    %v758 = vadd.f32 0.0, %v757
    %759 = vdwg.mxu0
    %760 = vrot.lane.b32.xlu0 %v459, 64
    %v761 = vpop.permute.xlu0 %760
    %762 = vrot.lane.b32.xlu0 %v464, 64
    %v763 = vpop.permute.xlu0 %762
    %v765 = vsel %vm434, %v761, 0
    %v768 = vsel %vm434, %v763, 0
    %770 = vmatpush.bf16.xpose.msra.mxu0 0
    %771 = vmatpush.bf16.xpose.msra.mxu0 0
    %772 = vmatpush.bf16.xpose.msra.mxu0 0
    %773 = vmatpush.bf16.xpose.msra.mxu0 0
    %774 = vmatpush.bf16.xpose.msra.mxu0 0
    %775 = vmatpush.bf16.xpose.msra.mxu0 0
    %776 = vmatpush.bf16.xpose.msra.mxu0 0
    %777 = vmatpush.bf16.xpose.msra.mxu0 %v768
    %778 = vmatmul.bf16.gmra.mxu0 %v765
    %v779 = vpop.f32.mrf.mxu0
    %v780 = vadd.f32 0.0, %v779
    %v781 = vpop.f32.mrf.mxu0
    %v782 = vadd.f32 0.0, %v781
    %783 = vdwg.mxu0
    %v784 = vsel %vm485, %v756, -inf
    %785 = vmax.xlane.f32.xlu0 %v784
    %v786 = vpop.xlane.xlu0 %785
    %v787 = vsel %vm485, %v758, -inf
    %788 = vmax.xlane.f32.xlu0 %v787
    %v789 = vpop.xlane.xlu0 %788
    %v790 = vsel %vm485, %v780, -inf
    %791 = vmax.xlane.f32.xlu0 %v790
    %v792 = vpop.xlane.xlu0 %791
    %v793 = vsel %vm485, %v782, -inf
    %794 = vmax.xlane.f32.xlu0 %v793
    %v795 = vpop.xlane.xlu0 %794
    %v796 = vsub.f32 %v756, %v786
    %v797 = vsub.f32 %v758, %v789
    %v798 = vsub.f32 %v780, %v792
    %v799 = vsub.f32 %v782, %v795
    %v800 = vmul.f32 %v796, 1.442695
    %v801 = vpow.pop %v800
    %v802 = vmul.f32 %v797, 1.442695
    %v803 = vpow.pop %v802
    %v804 = vmul.f32 %v798, 1.442695
    %v805 = vpow.pop %v804
    %v806 = vmul.f32 %v799, 1.442695
    %v807 = vpow.pop %v806
    %v808 = vsel %vm485, %v801, 0.0
    %809 = vadd.xlane.f32.xlu0 %v808
    %v810 = vpop.xlane.xlu0 %809
    %v811 = vsel %vm485, %v803, 0.0
    %812 = vadd.xlane.f32.xlu0 %v811
    %v813 = vpop.xlane.xlu0 %812
    %v814 = vsel %vm485, %v805, 0.0
    %815 = vadd.xlane.f32.xlu0 %v814
    %v816 = vpop.xlane.xlu0 %815
    %v817 = vsel %vm485, %v807, 0.0
    %818 = vadd.xlane.f32.xlu0 %v817
    %v819 = vpop.xlane.xlu0 %818
    %v820 = vrcp.pop %v810
    %v821 = vrcp.pop %v813
    %v822 = vrcp.pop %v816
    %v823 = vrcp.pop %v819
    %v824 = vmul.f32 %v801, %v820
    %v825 = vmul.f32 %v803, %v821
    %v826 = vmul.f32 %v805, %v822
    %v827 = vmul.f32 %v807, %v823
    %v828 = vpack.c.bf16 %v824, %v824
    %v829 = vpack.c.bf16 %v825, %v825
    %v830 = vpack.c.bf16 %v826, %v826
    %v831 = vpack.c.bf16 %v827, %v827
    %v834 = vunpack.c.l.b16 %v828
    %v835 = vunpack.c.l.b16 %v829
    %v836 = vpack.c.b16 %v835, %v834
    %837 = vrot.lane.b32.xlu0 %v543, 64
    %v838 = vpop.permute.xlu0 %837
    %v841 = vsel %vm485, %v836, 0
    %843 = vmatpush.bf16.msra.mxu0 0
    %844 = vmatpush.bf16.msra.mxu0 0
    %845 = vmatpush.bf16.msra.mxu0 0
    %846 = vmatpush.bf16.msra.mxu0 0
    %847 = vmatpush.bf16.msra.mxu0 0
    %848 = vmatpush.bf16.msra.mxu0 0
    %849 = vmatpush.bf16.msra.mxu0 0
    %850 = vmatpush.bf16.msra.mxu0 %v838
    %851 = vmatmul.bf16.gmra.mxu0 %v841
    %v852 = vpop.f32.mrf.mxu0
    %v853 = vadd.f32 0.0, %v852
    %v854 = vpop.f32.mrf.mxu0
    %v855 = vadd.f32 0.0, %v854
    %856 = vdwg.mxu0
    %v859 = vunpack.c.l.b16 %v830
    %v860 = vunpack.c.l.b16 %v831
    %v861 = vpack.c.b16 %v860, %v859
    %862 = vrot.lane.b32.xlu0 %v571, 64
    %v863 = vpop.permute.xlu0 %862
    %v866 = vsel %vm485, %v861, 0
    %868 = vmatpush.bf16.msra.mxu0 0
    %869 = vmatpush.bf16.msra.mxu0 0
    %870 = vmatpush.bf16.msra.mxu0 0
    %871 = vmatpush.bf16.msra.mxu0 0
    %872 = vmatpush.bf16.msra.mxu0 0
    %873 = vmatpush.bf16.msra.mxu0 0
    %874 = vmatpush.bf16.msra.mxu0 0
    %875 = vmatpush.bf16.msra.mxu0 %v863
    %876 = vmatmul.bf16.gmra.mxu0 %v866
    %v877 = vpop.f32.mrf.mxu0
    %v878 = vadd.f32 0.0, %v877
    %v879 = vpop.f32.mrf.mxu0
    %v880 = vadd.f32 0.0, %v879
    %881 = vdwg.mxu0
    %882 = vrot.lane.b32.xlu0 %v428, 32
    %v883 = vpop.permute.xlu0 %882
    %884 = vrot.lane.b32.xlu0 %v433, 32
    %v885 = vpop.permute.xlu0 %884
    %v887 = vsel %vm434, %v883, 0
    %v890 = vsel %vm434, %v885, 0
    %892 = vmatpush.bf16.xpose.msra.mxu0 0
    %893 = vmatpush.bf16.xpose.msra.mxu0 0
    %894 = vmatpush.bf16.xpose.msra.mxu0 0
    %895 = vmatpush.bf16.xpose.msra.mxu0 0
    %896 = vmatpush.bf16.xpose.msra.mxu0 0
    %897 = vmatpush.bf16.xpose.msra.mxu0 0
    %898 = vmatpush.bf16.xpose.msra.mxu0 0
    %899 = vmatpush.bf16.xpose.msra.mxu0 %v890
    %900 = vmatmul.bf16.gmra.mxu0 %v887
    %v901 = vpop.f32.mrf.mxu0
    %v902 = vadd.f32 0.0, %v901
    %v903 = vpop.f32.mrf.mxu0
    %v904 = vadd.f32 0.0, %v903
    %905 = vdwg.mxu0
    %906 = vrot.lane.b32.xlu0 %v459, 32
    %v907 = vpop.permute.xlu0 %906
    %908 = vrot.lane.b32.xlu0 %v464, 32
    %v909 = vpop.permute.xlu0 %908
    %v911 = vsel %vm434, %v907, 0
    %v914 = vsel %vm434, %v909, 0
    %916 = vmatpush.bf16.xpose.msra.mxu0 0
    %917 = vmatpush.bf16.xpose.msra.mxu0 0
    %918 = vmatpush.bf16.xpose.msra.mxu0 0
    %919 = vmatpush.bf16.xpose.msra.mxu0 0
    %920 = vmatpush.bf16.xpose.msra.mxu0 0
    %921 = vmatpush.bf16.xpose.msra.mxu0 0
    %922 = vmatpush.bf16.xpose.msra.mxu0 0
    %923 = vmatpush.bf16.xpose.msra.mxu0 %v914
    %924 = vmatmul.bf16.gmra.mxu0 %v911
    %v925 = vpop.f32.mrf.mxu0
    %v926 = vadd.f32 0.0, %v925
    %v927 = vpop.f32.mrf.mxu0
    %v928 = vadd.f32 0.0, %v927
    %929 = vdwg.mxu0
    %v930 = vsel %vm485, %v902, -inf
    %931 = vmax.xlane.f32.xlu0 %v930
    %v932 = vpop.xlane.xlu0 %931
    %v933 = vsel %vm485, %v904, -inf
    %934 = vmax.xlane.f32.xlu0 %v933
    %v935 = vpop.xlane.xlu0 %934
    %v936 = vsel %vm485, %v926, -inf
    %937 = vmax.xlane.f32.xlu0 %v936
    %v938 = vpop.xlane.xlu0 %937
    %v939 = vsel %vm485, %v928, -inf
    %940 = vmax.xlane.f32.xlu0 %v939
    %v941 = vpop.xlane.xlu0 %940
    %v942 = vsub.f32 %v902, %v932
    %v943 = vsub.f32 %v904, %v935
    %v944 = vsub.f32 %v926, %v938
    %v945 = vsub.f32 %v928, %v941
    %v946 = vmul.f32 %v942, 1.442695
    %v947 = vpow.pop %v946
    %v948 = vmul.f32 %v943, 1.442695
    %v949 = vpow.pop %v948
    %v950 = vmul.f32 %v944, 1.442695
    %v951 = vpow.pop %v950
    %v952 = vmul.f32 %v945, 1.442695
    %v953 = vpow.pop %v952
    %v954 = vsel %vm485, %v947, 0.0
    %955 = vadd.xlane.f32.xlu0 %v954
    %v956 = vpop.xlane.xlu0 %955
    %v957 = vsel %vm485, %v949, 0.0
    %958 = vadd.xlane.f32.xlu0 %v957
    %v959 = vpop.xlane.xlu0 %958
    %v960 = vsel %vm485, %v951, 0.0
    %961 = vadd.xlane.f32.xlu0 %v960
    %v962 = vpop.xlane.xlu0 %961
    %v963 = vsel %vm485, %v953, 0.0
    %964 = vadd.xlane.f32.xlu0 %v963
    %v965 = vpop.xlane.xlu0 %964
    %v966 = vrcp.pop %v956
    %v967 = vrcp.pop %v959
    %v968 = vrcp.pop %v962
    %v969 = vrcp.pop %v965
    %v970 = vmul.f32 %v947, %v966
    %v971 = vmul.f32 %v949, %v967
    %v972 = vmul.f32 %v951, %v968
    %v973 = vmul.f32 %v953, %v969
    %v974 = vpack.c.bf16 %v970, %v970
    %v975 = vpack.c.bf16 %v971, %v971
    %v976 = vpack.c.bf16 %v972, %v972
    %v977 = vpack.c.bf16 %v973, %v973
    %v980 = vunpack.c.l.b16 %v974
    %v981 = vunpack.c.l.b16 %v975
    %v982 = vpack.c.b16 %v981, %v980
    %983 = vrot.lane.b32.xlu0 %v543, 32
    %v984 = vpop.permute.xlu0 %983
    %v987 = vsel %vm485, %v982, 0
    %989 = vmatpush.bf16.msra.mxu0 0
    %990 = vmatpush.bf16.msra.mxu0 0
    %991 = vmatpush.bf16.msra.mxu0 0
    %992 = vmatpush.bf16.msra.mxu0 0
    %993 = vmatpush.bf16.msra.mxu0 0
    %994 = vmatpush.bf16.msra.mxu0 0
    %995 = vmatpush.bf16.msra.mxu0 0
    %996 = vmatpush.bf16.msra.mxu0 %v984
    %997 = vmatmul.bf16.gmra.mxu0 %v987
    %v998 = vpop.f32.mrf.mxu0
    %v999 = vadd.f32 0.0, %v998
    %v1000 = vpop.f32.mrf.mxu0
    %v1001 = vadd.f32 0.0, %v1000
    %1002 = vdwg.mxu0
    %v1005 = vunpack.c.l.b16 %v976
    %v1006 = vunpack.c.l.b16 %v977
    %v1007 = vpack.c.b16 %v1006, %v1005
    %1008 = vrot.lane.b32.xlu0 %v571, 32
    %v1009 = vpop.permute.xlu0 %1008
    %v1012 = vsel %vm485, %v1007, 0
    %1014 = vmatpush.bf16.msra.mxu0 0
    %1015 = vmatpush.bf16.msra.mxu0 0
    %1016 = vmatpush.bf16.msra.mxu0 0
    %1017 = vmatpush.bf16.msra.mxu0 0
    %1018 = vmatpush.bf16.msra.mxu0 0
    %1019 = vmatpush.bf16.msra.mxu0 0
    %1020 = vmatpush.bf16.msra.mxu0 0
    %1021 = vmatpush.bf16.msra.mxu0 %v1009
    %1022 = vmatmul.bf16.gmra.mxu0 %v1012
    %v1023 = vpop.f32.mrf.mxu0
    %v1024 = vadd.f32 0.0, %v1023
    %v1025 = vpop.f32.mrf.mxu0
    %v1026 = vadd.f32 0.0, %v1025
    %1027 = vdwg.mxu0
    %1032 = vrot.lane.b32.xlu0 %v707, 32
    %v1033 = vpop.permute.xlu0 %1032
    %1034 = vrot.lane.b32.xlu0 %v709, 32
    %v1035 = vpop.permute.xlu0 %1034
    %1036 = vrot.lane.b32.xlu0 %v732, 32
    %v1037 = vpop.permute.xlu0 %1036
    %1038 = vrot.lane.b32.xlu0 %v734, 32
    %v1039 = vpop.permute.xlu0 %1038
    %1048 = vrot.lane.b32.xlu0 %v853, 64
    %v1049 = vpop.permute.xlu0 %1048
    %1050 = vrot.lane.b32.xlu0 %v855, 64
    %v1051 = vpop.permute.xlu0 %1050
    %1052 = vrot.lane.b32.xlu0 %v878, 64
    %v1053 = vpop.permute.xlu0 %1052
    %1054 = vrot.lane.b32.xlu0 %v880, 64
    %v1055 = vpop.permute.xlu0 %1054
    %1064 = vrot.lane.b32.xlu0 %v999, 96
    %v1065 = vpop.permute.xlu0 %1064
    %1066 = vrot.lane.b32.xlu0 %v1001, 96
    %v1067 = vpop.permute.xlu0 %1066
    %1068 = vrot.lane.b32.xlu0 %v1024, 96
    %v1069 = vpop.permute.xlu0 %1068
    %1070 = vrot.lane.b32.xlu0 %v1026, 96
    %v1071 = vpop.permute.xlu0 %1070
    %v1076 = vsel %vm434, %v558, %v1033
    %v1077 = vsel %vm434, %v560, %v1035
    %v1078 = vsel %vm434, %v586, %v1037
    %v1079 = vsel %vm434, %v588, %v1039
    %vm1080 = vcmask 523264
    %v1081 = vsel %vm1080, %v1076, %v1049
    %v1082 = vsel %vm1080, %v1077, %v1051
    %v1083 = vsel %vm1080, %v1078, %v1053
    %v1084 = vsel %vm1080, %v1079, %v1055
    %vm1085 = vcmask 785408
    %v1086 = vsel %vm1085, %v1081, %v1065
    %v1087 = vsel %vm1085, %v1082, %v1067
    %v1088 = vsel %vm1085, %v1083, %v1069
    %v1089 = vsel %vm1085, %v1084, %v1071
    %v1090 = vpack.c.bf16 %v1087, %v1086
    %v1091 = vpack.c.bf16 %v1089, %v1088
    %v1092 = vld [vmem:[%s5] sm:$0xf]
    %v1093 = vld [vmem:[%s5 + $0x4] sm:$0xf]
    %v1094 = vld [vmem:[%s5 + $0x8] sm:$0xf]
    %v1095 = vld [vmem:[%s5 + $0xc] sm:$0xf]
    %v1096 = vld [vmem:[%s5 + $0x10] sm:$0xf]
    %v1097 = vld [vmem:[%s5 + $0x14] sm:$0xf]
    %v1098 = vld [vmem:[%s5 + $0x18] sm:$0xf]
    %v1099 = vld [vmem:[%s5 + $0x1c] sm:$0xf]
    %v1100 = vld [vmem:[%s5 + $0x20] sm:$0xf]
    %v1101 = vld [vmem:[%s5 + $0x24] sm:$0xf]
    %v1102 = vld [vmem:[%s5 + $0x28] sm:$0xf]
    %v1103 = vld [vmem:[%s5 + $0x2c] sm:$0xf]
    %v1104 = vld [vmem:[%s5 + $0x30] sm:$0xf]
    %v1105 = vld [vmem:[%s5 + $0x34] sm:$0xf]
    %v1106 = vld [vmem:[%s5 + $0x38] sm:$0xf]
    %v1107 = vld [vmem:[%s5 + $0x3c] sm:$0xf]
    %v1108 = vld [vmem:[%s6] sm:$0x1]
    %v1110 = vperm.slane %v1108, 0
    %v1128 = vunpack.c.l.b16 %v1092
    %v1129 = vunpack.c.l.b16 %v1093
    %v1130 = vunpack.c.l.b16 %v1094
    %v1131 = vunpack.c.l.b16 %v1095
    %v1132 = vunpack.c.l.b16 %v1096
    %v1133 = vunpack.c.l.b16 %v1097
    %v1134 = vunpack.c.l.b16 %v1098
    %v1135 = vunpack.c.l.b16 %v1099
    %v1136 = vunpack.c.l.b16 %v1100
    %v1137 = vunpack.c.l.b16 %v1101
    %v1138 = vunpack.c.l.b16 %v1102
    %v1139 = vunpack.c.l.b16 %v1103
    %v1140 = vunpack.c.l.b16 %v1104
    %v1141 = vunpack.c.l.b16 %v1105
    %v1142 = vunpack.c.l.b16 %v1106
    %v1143 = vunpack.c.l.b16 %v1107
    %v1144 = vpack.c.b16 %v1129, %v1128
    %v1145 = vpack.c.b16 %v1131, %v1130
    %v1146 = vpack.c.b16 %v1133, %v1132
    %v1147 = vpack.c.b16 %v1135, %v1134
    %v1148 = vpack.c.b16 %v1137, %v1136
    %v1149 = vpack.c.b16 %v1139, %v1138
    %v1150 = vpack.c.b16 %v1141, %v1140
    %v1151 = vpack.c.b16 %v1143, %v1142
    %1160 = vmatpush.bf16.msra.mxu0 %v1151
    %1161 = vmatpush.bf16.msra.mxu0 %v1150
    %1162 = vmatpush.bf16.msra.mxu0 %v1149
    %1163 = vmatpush.bf16.msra.mxu0 %v1148
    %1164 = vmatpush.bf16.msra.mxu0 %v1147
    %1165 = vmatpush.bf16.msra.mxu0 %v1146
    %1166 = vmatpush.bf16.msra.mxu0 %v1145
    %1167 = vmatpush.bf16.msra.mxu0 %v1144
    %1168 = vmatmul.bf16.gmra.mxu0 %v1090
    %v1169 = vpop.f32.mrf.mxu0
    %v1170 = vadd.f32 %v1110, %v1169
    %v1171 = vpop.f32.mrf.mxu0
    %v1172 = vadd.f32 %v1110, %v1171
    %1173 = vmatmul.bf16.gmra.mxu0 %v1091
    %v1174 = vpop.f32.mrf.mxu0
    %v1175 = vadd.f32 %v1110, %v1174
    %v1176 = vpop.f32.mrf.mxu0
    %v1177 = vadd.f32 %v1110, %v1176
    %1178 = vdwg.mxu0
    %v1179 = vadd.f32 %v181, %v1170
    %v1180 = vadd.f32 %v182, %v1172
    %v1181 = vadd.f32 %v183, %v1175
    %v1182 = vadd.f32 %v184, %v1177
    %v1183 = vld [vmem:[%s7] sm:$0x1]
    %v1184 = vld [vmem:[%s8] sm:$0x1]
    %1185 = vadd.xlane.f32.xlu0 %v1179
    %v1186 = vpop.xlane.xlu0 %1185
    %1187 = vadd.xlane.f32.xlu0 %v1180
    %v1188 = vpop.xlane.xlu0 %1187
    %1189 = vadd.xlane.f32.xlu0 %v1181
    %v1190 = vpop.xlane.xlu0 %1189
    %1191 = vadd.xlane.f32.xlu0 %v1182
    %v1192 = vpop.xlane.xlu0 %1191
    %v1193 = vrcp.pop 128.0
    %v1194 = vmul.f32 128.0, %v1193
    %v1195 = vsub.f32 1.0, %v1194
    %v1196 = vmul.f32 %v1193, %v1195
    %v1197 = vadd.f32 %v1193, %v1196
    %vm1198 = vweird.f32 %v1193
    %v1199 = vsel %vm1198, %v1193, %v1197
    %v1200 = vmul.f32 %v1186, %v1199
    %v1201 = vmul.f32 %v1188, %v1199
    %v1202 = vmul.f32 %v1190, %v1199
    %v1203 = vmul.f32 %v1192, %v1199
    %v1204 = vsub.f32 %v1179, %v1200
    %v1205 = vsub.f32 %v1180, %v1201
    %v1206 = vsub.f32 %v1181, %v1202
    %v1207 = vsub.f32 %v1182, %v1203
    %v1208 = vmul.f32 %v1204, %v1204
    %v1209 = vmul.f32 %v1205, %v1205
    %v1210 = vmul.f32 %v1206, %v1206
    %v1211 = vmul.f32 %v1207, %v1207
    %1212 = vadd.xlane.f32.xlu0 %v1208
    %v1213 = vpop.xlane.xlu0 %1212
    %1214 = vadd.xlane.f32.xlu0 %v1209
    %v1215 = vpop.xlane.xlu0 %1214
    %1216 = vadd.xlane.f32.xlu0 %v1210
    %v1217 = vpop.xlane.xlu0 %1216
    %1218 = vadd.xlane.f32.xlu0 %v1211
    %v1219 = vpop.xlane.xlu0 %1218
    %v1220 = vmul.f32 %v1213, %v1199
    %v1221 = vmul.f32 %v1215, %v1199
    %v1222 = vmul.f32 %v1217, %v1199
    %v1223 = vmul.f32 %v1219, %v1199
    %v1224 = vadd.f32 %v1220, 1e-05
    %v1225 = vadd.f32 %v1221, 1e-05
    %v1226 = vadd.f32 %v1222, 1e-05
    %v1227 = vadd.f32 %v1223, 1e-05
    %v1228 = vrsqrt.pop %v1224
    %v1229 = vmul.f32 %v1228, %v1224
    %v1230 = vmul.f32 %v1229, %v1228
    %v1231 = vmul.f32 0.5, %v1230
    %v1232 = vsub.f32 1.5, %v1231
    %v1233 = vmul.f32 %v1228, %v1232
    %vm1234 = vweird.f32 %v1224
    %vm1235 = vweird.f32 %v1228
    %vm1236 = vmor %vm1234, %vm1235
    %v1237 = vsel %vm1236, %v1228, %v1233
    %v1238 = vrsqrt.pop %v1225
    %v1239 = vmul.f32 %v1238, %v1225
    %v1240 = vmul.f32 %v1239, %v1238
    %v1241 = vmul.f32 0.5, %v1240
    %v1242 = vsub.f32 1.5, %v1241
    %v1243 = vmul.f32 %v1238, %v1242
    %vm1244 = vweird.f32 %v1225
    %vm1245 = vweird.f32 %v1238
    %vm1246 = vmor %vm1244, %vm1245
    %v1247 = vsel %vm1246, %v1238, %v1243
    %v1248 = vrsqrt.pop %v1226
    %v1249 = vmul.f32 %v1248, %v1226
    %v1250 = vmul.f32 %v1249, %v1248
    %v1251 = vmul.f32 0.5, %v1250
    %v1252 = vsub.f32 1.5, %v1251
    %v1253 = vmul.f32 %v1248, %v1252
    %vm1254 = vweird.f32 %v1226
    %vm1255 = vweird.f32 %v1248
    %vm1256 = vmor %vm1254, %vm1255
    %v1257 = vsel %vm1256, %v1248, %v1253
    %v1258 = vrsqrt.pop %v1227
    %v1259 = vmul.f32 %v1258, %v1227
    %v1260 = vmul.f32 %v1259, %v1258
    %v1261 = vmul.f32 0.5, %v1260
    %v1262 = vsub.f32 1.5, %v1261
    %v1263 = vmul.f32 %v1258, %v1262
    %vm1264 = vweird.f32 %v1227
    %vm1265 = vweird.f32 %v1258
    %vm1266 = vmor %vm1264, %vm1265
    %v1267 = vsel %vm1266, %v1258, %v1263
    %v1268 = vmul.f32 %v1204, %v1237
    %v1269 = vmul.f32 %v1205, %v1247
    %v1270 = vmul.f32 %v1206, %v1257
    %v1271 = vmul.f32 %v1207, %v1267
    %v1273 = vperm.slane %v1183, 0
    %v1275 = vmul.f32 %v1268, %v1273
    %v1276 = vmul.f32 %v1269, %v1273
    %v1277 = vmul.f32 %v1270, %v1273
    %v1278 = vmul.f32 %v1271, %v1273
    %v1280 = vperm.slane %v1184, 0
    %v1282 = vadd.f32 %v1275, %v1280
    %v1283 = vadd.f32 %v1276, %v1280
    %v1284 = vadd.f32 %v1277, %v1280
    %v1285 = vadd.f32 %v1278, %v1280
    %v1286 = vpack.c.bf16 %v1283, %v1282
    %v1287 = vpack.c.bf16 %v1285, %v1284
    %v1288 = vld [vmem:[%s9] sm:$0xff]
    %v1289 = vld [vmem:[%s9 + $0x8] sm:$0xff]
    %v1290 = vld [vmem:[%s9 + $0x10] sm:$0xff]
    %v1291 = vld [vmem:[%s9 + $0x18] sm:$0xff]
    %v1292 = vld [vmem:[%s9 + $0x20] sm:$0xff]
    %v1293 = vld [vmem:[%s9 + $0x28] sm:$0xff]
    %v1294 = vld [vmem:[%s9 + $0x30] sm:$0xff]
    %v1295 = vld [vmem:[%s9 + $0x38] sm:$0xff]
    %v1296 = vld [vmem:[%s9 + $0x40] sm:$0xff]
    %v1297 = vld [vmem:[%s9 + $0x48] sm:$0xff]
    %v1298 = vld [vmem:[%s9 + $0x50] sm:$0xff]
    %v1299 = vld [vmem:[%s9 + $0x58] sm:$0xff]
    %v1300 = vld [vmem:[%s9 + $0x60] sm:$0xff]
    %v1301 = vld [vmem:[%s9 + $0x68] sm:$0xff]
    %v1302 = vld [vmem:[%s9 + $0x70] sm:$0xff]
    %v1303 = vld [vmem:[%s9 + $0x78] sm:$0xff]
    %v1304 = vld [vmem:[%s9 + $0x80] sm:$0xff]
    %v1305 = vld [vmem:[%s9 + $0x88] sm:$0xff]
    %v1306 = vld [vmem:[%s9 + $0x90] sm:$0xff]
    %v1307 = vld [vmem:[%s9 + $0x98] sm:$0xff]
    %v1308 = vld [vmem:[%s9 + $0xa0] sm:$0xff]
    %v1309 = vld [vmem:[%s9 + $0xa8] sm:$0xff]
    %v1310 = vld [vmem:[%s9 + $0xb0] sm:$0xff]
    %v1311 = vld [vmem:[%s9 + $0xb8] sm:$0xff]
    %v1312 = vld [vmem:[%s9 + $0xc0] sm:$0xff]
    %v1313 = vld [vmem:[%s9 + $0xc8] sm:$0xff]
    %v1314 = vld [vmem:[%s9 + $0xd0] sm:$0xff]
    %v1315 = vld [vmem:[%s9 + $0xd8] sm:$0xff]
    %v1316 = vld [vmem:[%s9 + $0xe0] sm:$0xff]
    %v1317 = vld [vmem:[%s9 + $0xe8] sm:$0xff]
    %v1318 = vld [vmem:[%s9 + $0xf0] sm:$0xff]
    %v1319 = vld [vmem:[%s9 + $0xf8] sm:$0xff]
    %v1320 = vld [vmem:[%s10] sm:$0xf]
    %v1322 = vperm.slane %v1320, 0
    %v1323 = vperm.slane %v1320, 1
    %v1324 = vperm.slane %v1320, 2
    %v1325 = vperm.slane %v1320, 3
    %v1362 = vunpack.c.l.b16 %v1288
    %v1363 = vunpack.c.h.b16 %v1288
    %v1364 = vunpack.c.l.b16 %v1289
    %v1365 = vunpack.c.h.b16 %v1289
    %v1366 = vunpack.c.l.b16 %v1290
    %v1367 = vunpack.c.h.b16 %v1290
    %v1368 = vunpack.c.l.b16 %v1291
    %v1369 = vunpack.c.h.b16 %v1291
    %v1370 = vunpack.c.l.b16 %v1292
    %v1371 = vunpack.c.h.b16 %v1292
    %v1372 = vunpack.c.l.b16 %v1293
    %v1373 = vunpack.c.h.b16 %v1293
    %v1374 = vunpack.c.l.b16 %v1294
    %v1375 = vunpack.c.h.b16 %v1294
    %v1376 = vunpack.c.l.b16 %v1295
    %v1377 = vunpack.c.h.b16 %v1295
    %v1378 = vunpack.c.l.b16 %v1296
    %v1379 = vunpack.c.h.b16 %v1296
    %v1380 = vunpack.c.l.b16 %v1297
    %v1381 = vunpack.c.h.b16 %v1297
    %v1382 = vunpack.c.l.b16 %v1298
    %v1383 = vunpack.c.h.b16 %v1298
    %v1384 = vunpack.c.l.b16 %v1299
    %v1385 = vunpack.c.h.b16 %v1299
    %v1386 = vunpack.c.l.b16 %v1300
    %v1387 = vunpack.c.h.b16 %v1300
    %v1388 = vunpack.c.l.b16 %v1301
    %v1389 = vunpack.c.h.b16 %v1301
    %v1390 = vunpack.c.l.b16 %v1302
    %v1391 = vunpack.c.h.b16 %v1302
    %v1392 = vunpack.c.l.b16 %v1303
    %v1393 = vunpack.c.h.b16 %v1303
    %v1394 = vunpack.c.l.b16 %v1304
    %v1395 = vunpack.c.h.b16 %v1304
    %v1396 = vunpack.c.l.b16 %v1305
    %v1397 = vunpack.c.h.b16 %v1305
    %v1398 = vunpack.c.l.b16 %v1306
    %v1399 = vunpack.c.h.b16 %v1306
    %v1400 = vunpack.c.l.b16 %v1307
    %v1401 = vunpack.c.h.b16 %v1307
    %v1402 = vunpack.c.l.b16 %v1308
    %v1403 = vunpack.c.h.b16 %v1308
    %v1404 = vunpack.c.l.b16 %v1309
    %v1405 = vunpack.c.h.b16 %v1309
    %v1406 = vunpack.c.l.b16 %v1310
    %v1407 = vunpack.c.h.b16 %v1310
    %v1408 = vunpack.c.l.b16 %v1311
    %v1409 = vunpack.c.h.b16 %v1311
    %v1410 = vunpack.c.l.b16 %v1312
    %v1411 = vunpack.c.h.b16 %v1312
    %v1412 = vunpack.c.l.b16 %v1313
    %v1413 = vunpack.c.h.b16 %v1313
    %v1414 = vunpack.c.l.b16 %v1314
    %v1415 = vunpack.c.h.b16 %v1314
    %v1416 = vunpack.c.l.b16 %v1315
    %v1417 = vunpack.c.h.b16 %v1315
    %v1418 = vunpack.c.l.b16 %v1316
    %v1419 = vunpack.c.h.b16 %v1316
    %v1420 = vunpack.c.l.b16 %v1317
    %v1421 = vunpack.c.h.b16 %v1317
    %v1422 = vunpack.c.l.b16 %v1318
    %v1423 = vunpack.c.h.b16 %v1318
    %v1424 = vunpack.c.l.b16 %v1319
    %v1425 = vunpack.c.h.b16 %v1319
    %v1426 = vpack.c.b16 %v1366, %v1362
    %v1427 = vpack.c.b16 %v1367, %v1363
    %v1428 = vpack.c.b16 %v1368, %v1364
    %v1429 = vpack.c.b16 %v1369, %v1365
    %v1430 = vpack.c.b16 %v1374, %v1370
    %v1431 = vpack.c.b16 %v1375, %v1371
    %v1432 = vpack.c.b16 %v1376, %v1372
    %v1433 = vpack.c.b16 %v1377, %v1373
    %v1434 = vpack.c.b16 %v1382, %v1378
    %v1435 = vpack.c.b16 %v1383, %v1379
    %v1436 = vpack.c.b16 %v1384, %v1380
    %v1437 = vpack.c.b16 %v1385, %v1381
    %v1438 = vpack.c.b16 %v1390, %v1386
    %v1439 = vpack.c.b16 %v1391, %v1387
    %v1440 = vpack.c.b16 %v1392, %v1388
    %v1441 = vpack.c.b16 %v1393, %v1389
    %v1442 = vpack.c.b16 %v1398, %v1394
    %v1443 = vpack.c.b16 %v1399, %v1395
    %v1444 = vpack.c.b16 %v1400, %v1396
    %v1445 = vpack.c.b16 %v1401, %v1397
    %v1446 = vpack.c.b16 %v1406, %v1402
    %v1447 = vpack.c.b16 %v1407, %v1403
    %v1448 = vpack.c.b16 %v1408, %v1404
    %v1449 = vpack.c.b16 %v1409, %v1405
    %v1450 = vpack.c.b16 %v1414, %v1410
    %v1451 = vpack.c.b16 %v1415, %v1411
    %v1452 = vpack.c.b16 %v1416, %v1412
    %v1453 = vpack.c.b16 %v1417, %v1413
    %v1454 = vpack.c.b16 %v1422, %v1418
    %v1455 = vpack.c.b16 %v1423, %v1419
    %v1456 = vpack.c.b16 %v1424, %v1420
    %v1457 = vpack.c.b16 %v1425, %v1421
    %1490 = vmatpush.bf16.msra.mxu0 %v1454
    %1491 = vmatpush.bf16.msra.mxu0 %v1450
    %1492 = vmatpush.bf16.msra.mxu0 %v1446
    %1493 = vmatpush.bf16.msra.mxu0 %v1442
    %1494 = vmatpush.bf16.msra.mxu0 %v1438
    %1495 = vmatpush.bf16.msra.mxu0 %v1434
    %1496 = vmatpush.bf16.msra.mxu0 %v1430
    %1497 = vmatpush.bf16.msra.mxu0 %v1426
    %1498 = vmatmul.bf16.gmra.mxu0 %v1286
    %v1499 = vpop.f32.mrf.mxu0
    %v1500 = vadd.f32 %v1322, %v1499
    %v1501 = vpop.f32.mrf.mxu0
    %v1502 = vadd.f32 %v1322, %v1501
    %1503 = vmatmul.bf16.gmra.mxu0 %v1287
    %v1504 = vpop.f32.mrf.mxu0
    %v1505 = vadd.f32 %v1322, %v1504
    %v1506 = vpop.f32.mrf.mxu0
    %v1507 = vadd.f32 %v1322, %v1506
    %1508 = vdwg.mxu0
    %1509 = vmatpush.bf16.msra.mxu0 %v1455
    %1510 = vmatpush.bf16.msra.mxu0 %v1451
    %1511 = vmatpush.bf16.msra.mxu0 %v1447
    %1512 = vmatpush.bf16.msra.mxu0 %v1443
    %1513 = vmatpush.bf16.msra.mxu0 %v1439
    %1514 = vmatpush.bf16.msra.mxu0 %v1435
    %1515 = vmatpush.bf16.msra.mxu0 %v1431
    %1516 = vmatpush.bf16.msra.mxu0 %v1427
    %1517 = vmatmul.bf16.gmra.mxu0 %v1286
    %v1518 = vpop.f32.mrf.mxu0
    %v1519 = vadd.f32 %v1323, %v1518
    %v1520 = vpop.f32.mrf.mxu0
    %v1521 = vadd.f32 %v1323, %v1520
    %1522 = vmatmul.bf16.gmra.mxu0 %v1287
    %v1523 = vpop.f32.mrf.mxu0
    %v1524 = vadd.f32 %v1323, %v1523
    %v1525 = vpop.f32.mrf.mxu0
    %v1526 = vadd.f32 %v1323, %v1525
    %1527 = vdwg.mxu0
    %1528 = vmatpush.bf16.msra.mxu0 %v1456
    %1529 = vmatpush.bf16.msra.mxu0 %v1452
    %1530 = vmatpush.bf16.msra.mxu0 %v1448
    %1531 = vmatpush.bf16.msra.mxu0 %v1444
    %1532 = vmatpush.bf16.msra.mxu0 %v1440
    %1533 = vmatpush.bf16.msra.mxu0 %v1436
    %1534 = vmatpush.bf16.msra.mxu0 %v1432
    %1535 = vmatpush.bf16.msra.mxu0 %v1428
    %1536 = vmatmul.bf16.gmra.mxu0 %v1286
    %v1537 = vpop.f32.mrf.mxu0
    %v1538 = vadd.f32 %v1324, %v1537
    %v1539 = vpop.f32.mrf.mxu0
    %v1540 = vadd.f32 %v1324, %v1539
    %1541 = vmatmul.bf16.gmra.mxu0 %v1287
    %v1542 = vpop.f32.mrf.mxu0
    %v1543 = vadd.f32 %v1324, %v1542
    %v1544 = vpop.f32.mrf.mxu0
    %v1545 = vadd.f32 %v1324, %v1544
    %1546 = vdwg.mxu0
    %1547 = vmatpush.bf16.msra.mxu0 %v1457
    %1548 = vmatpush.bf16.msra.mxu0 %v1453
    %1549 = vmatpush.bf16.msra.mxu0 %v1449
    %1550 = vmatpush.bf16.msra.mxu0 %v1445
    %1551 = vmatpush.bf16.msra.mxu0 %v1441
    %1552 = vmatpush.bf16.msra.mxu0 %v1437
    %1553 = vmatpush.bf16.msra.mxu0 %v1433
    %1554 = vmatpush.bf16.msra.mxu0 %v1429
    %1555 = vmatmul.bf16.gmra.mxu0 %v1286
    %v1556 = vpop.f32.mrf.mxu0
    %v1557 = vadd.f32 %v1325, %v1556
    %v1558 = vpop.f32.mrf.mxu0
    %v1559 = vadd.f32 %v1325, %v1558
    %1560 = vmatmul.bf16.gmra.mxu0 %v1287
    %v1561 = vpop.f32.mrf.mxu0
    %v1562 = vadd.f32 %v1325, %v1561
    %v1563 = vpop.f32.mrf.mxu0
    %v1564 = vadd.f32 %v1325, %v1563
    %1565 = vdwg.mxu0
    %v1566 = vmul.f32 %v1500, 0.5
    %v1567 = vmul.f32 %v1519, 0.5
    %v1568 = vmul.f32 %v1538, 0.5
    %v1569 = vmul.f32 %v1557, 0.5
    %v1570 = vmul.f32 %v1502, 0.5
    %v1571 = vmul.f32 %v1521, 0.5
    %v1572 = vmul.f32 %v1540, 0.5
    %v1573 = vmul.f32 %v1559, 0.5
    %v1574 = vmul.f32 %v1505, 0.5
    %v1575 = vmul.f32 %v1524, 0.5
    %v1576 = vmul.f32 %v1543, 0.5
    %v1577 = vmul.f32 %v1562, 0.5
    %v1578 = vmul.f32 %v1507, 0.5
    %v1579 = vmul.f32 %v1526, 0.5
    %v1580 = vmul.f32 %v1545, 0.5
    %v1581 = vmul.f32 %v1564, 0.5
    %v1582 = vmul.f32 %v1500, 0.70710677
    %v1583 = vmul.f32 %v1519, 0.70710677
    %v1584 = vmul.f32 %v1538, 0.70710677
    %v1585 = vmul.f32 %v1557, 0.70710677
    %v1586 = vmul.f32 %v1502, 0.70710677
    %v1587 = vmul.f32 %v1521, 0.70710677
    %v1588 = vmul.f32 %v1540, 0.70710677
    %v1589 = vmul.f32 %v1559, 0.70710677
    %v1590 = vmul.f32 %v1505, 0.70710677
    %v1591 = vmul.f32 %v1524, 0.70710677
    %v1592 = vmul.f32 %v1543, 0.70710677
    %v1593 = vmul.f32 %v1562, 0.70710677
    %v1594 = vmul.f32 %v1507, 0.70710677
    %v1595 = vmul.f32 %v1526, 0.70710677
    %v1596 = vmul.f32 %v1545, 0.70710677
    %v1597 = vmul.f32 %v1564, 0.70710677
    %v1598 = vmul.f32 %v1582, %v1582
    %v1599 = vmin.f32 16.0, %v1598
    %v1600 = vmul.f32 %v1599, 2.1237322e-06
    %v1601 = vadd.f32 %v1600, 0.00028619796
    %v1602 = vmul.f32 %v1599, %v1601
    %v1603 = vadd.f32 %v1602, 0.0036580483
    %v1604 = vmul.f32 %v1599, %v1603
    %v1605 = vadd.f32 %v1604, 0.05243302
    %v1606 = vmul.f32 %v1599, %v1605
    %v1607 = vadd.f32 %v1606, 0.18741608
    %v1608 = vmul.f32 %v1599, %v1607
    %v1609 = vadd.f32 %v1608, 1.1283791
    %v1610 = vmul.f32 %v1582, %v1609
    %v1611 = vmul.f32 %v1599, 3.8918573e-05
    %v1612 = vadd.f32 %v1611, 0.001143296
    %v1613 = vmul.f32 %v1599, %v1612
    %v1614 = vadd.f32 %v1613, 0.014752088
    %v1615 = vmul.f32 %v1599, %v1614
    %v1616 = vadd.f32 %v1615, 0.112945676
    %v1617 = vmul.f32 %v1599, %v1616
    %v1618 = vadd.f32 %v1617, 0.4994258
    %v1619 = vmul.f32 %v1599, %v1618
    %v1620 = vadd.f32 %v1619, 1.0
    %v1621 = vrcp.pop %v1620
    %v1622 = vmul.f32 %v1620, %v1621
    %v1623 = vsub.f32 1.0, %v1622
    %v1624 = vmul.f32 %v1621, %v1623
    %v1625 = vadd.f32 %v1621, %v1624
    %vm1626 = vweird.f32 %v1620
    %vm1627 = vweird.f32 %v1621
    %vm1628 = vmor %vm1626, %vm1627
    %v1629 = vsel %vm1628, %v1621, %v1625
    %v1630 = vand.u32 2147483647, %v1620
    %vm1631 = vcmp.eq.f32.partialorder %v1630, 8.507059e+37
    %v1632 = vand.u32 %v1620, 2147483648
    %v1633 = vor.u32 1.1754944e-38, %v1632
    %v1634 = vsel %vm1631, %v1633, %v1629
    %v1635 = vmul.f32 %v1610, %v1634
    %v1636 = vmin.f32 %v1635, 1.0
    %v1637 = vmax.f32 %v1636, -1.0
    %v1638 = vmul.f32 %v1583, %v1583
    %v1639 = vmin.f32 16.0, %v1638
    %v1640 = vmul.f32 %v1639, 2.1237322e-06
    %v1641 = vadd.f32 %v1640, 0.00028619796
    %v1642 = vmul.f32 %v1639, %v1641
    %v1643 = vadd.f32 %v1642, 0.0036580483
    %v1644 = vmul.f32 %v1639, %v1643
    %v1645 = vadd.f32 %v1644, 0.05243302
    %v1646 = vmul.f32 %v1639, %v1645
    %v1647 = vadd.f32 %v1646, 0.18741608
    %v1648 = vmul.f32 %v1639, %v1647
    %v1649 = vadd.f32 %v1648, 1.1283791
    %v1650 = vmul.f32 %v1583, %v1649
    %v1651 = vmul.f32 %v1639, 3.8918573e-05
    %v1652 = vadd.f32 %v1651, 0.001143296
    %v1653 = vmul.f32 %v1639, %v1652
    %v1654 = vadd.f32 %v1653, 0.014752088
    %v1655 = vmul.f32 %v1639, %v1654
    %v1656 = vadd.f32 %v1655, 0.112945676
    %v1657 = vmul.f32 %v1639, %v1656
    %v1658 = vadd.f32 %v1657, 0.4994258
    %v1659 = vmul.f32 %v1639, %v1658
    %v1660 = vadd.f32 %v1659, 1.0
    %v1661 = vrcp.pop %v1660
    %v1662 = vmul.f32 %v1660, %v1661
    %v1663 = vsub.f32 1.0, %v1662
    %v1664 = vmul.f32 %v1661, %v1663
    %v1665 = vadd.f32 %v1661, %v1664
    %vm1666 = vweird.f32 %v1660
    %vm1667 = vweird.f32 %v1661
    %vm1668 = vmor %vm1666, %vm1667
    %v1669 = vsel %vm1668, %v1661, %v1665
    %v1670 = vand.u32 2147483647, %v1660
    %vm1671 = vcmp.eq.f32.partialorder %v1670, 8.507059e+37
    %v1672 = vand.u32 %v1660, 2147483648
    %v1673 = vor.u32 1.1754944e-38, %v1672
    %v1674 = vsel %vm1671, %v1673, %v1669
    %v1675 = vmul.f32 %v1650, %v1674
    %v1676 = vmin.f32 %v1675, 1.0
    %v1677 = vmax.f32 %v1676, -1.0
    %v1678 = vmul.f32 %v1584, %v1584
    %v1679 = vmin.f32 16.0, %v1678
    %v1680 = vmul.f32 %v1679, 2.1237322e-06
    %v1681 = vadd.f32 %v1680, 0.00028619796
    %v1682 = vmul.f32 %v1679, %v1681
    %v1683 = vadd.f32 %v1682, 0.0036580483
    %v1684 = vmul.f32 %v1679, %v1683
    %v1685 = vadd.f32 %v1684, 0.05243302
    %v1686 = vmul.f32 %v1679, %v1685
    %v1687 = vadd.f32 %v1686, 0.18741608
    %v1688 = vmul.f32 %v1679, %v1687
    %v1689 = vadd.f32 %v1688, 1.1283791
    %v1690 = vmul.f32 %v1584, %v1689
    %v1691 = vmul.f32 %v1679, 3.8918573e-05
    %v1692 = vadd.f32 %v1691, 0.001143296
    %v1693 = vmul.f32 %v1679, %v1692
    %v1694 = vadd.f32 %v1693, 0.014752088
    %v1695 = vmul.f32 %v1679, %v1694
    %v1696 = vadd.f32 %v1695, 0.112945676
    %v1697 = vmul.f32 %v1679, %v1696
    %v1698 = vadd.f32 %v1697, 0.4994258
    %v1699 = vmul.f32 %v1679, %v1698
    %v1700 = vadd.f32 %v1699, 1.0
    %v1701 = vrcp.pop %v1700
    %v1702 = vmul.f32 %v1700, %v1701
    %v1703 = vsub.f32 1.0, %v1702
    %v1704 = vmul.f32 %v1701, %v1703
    %v1705 = vadd.f32 %v1701, %v1704
    %vm1706 = vweird.f32 %v1700
    %vm1707 = vweird.f32 %v1701
    %vm1708 = vmor %vm1706, %vm1707
    %v1709 = vsel %vm1708, %v1701, %v1705
    %v1710 = vand.u32 2147483647, %v1700
    %vm1711 = vcmp.eq.f32.partialorder %v1710, 8.507059e+37
    %v1712 = vand.u32 %v1700, 2147483648
    %v1713 = vor.u32 1.1754944e-38, %v1712
    %v1714 = vsel %vm1711, %v1713, %v1709
    %v1715 = vmul.f32 %v1690, %v1714
    %v1716 = vmin.f32 %v1715, 1.0
    %v1717 = vmax.f32 %v1716, -1.0
    %v1718 = vmul.f32 %v1585, %v1585
    %v1719 = vmin.f32 16.0, %v1718
    %v1720 = vmul.f32 %v1719, 2.1237322e-06
    %v1721 = vadd.f32 %v1720, 0.00028619796
    %v1722 = vmul.f32 %v1719, %v1721
    %v1723 = vadd.f32 %v1722, 0.0036580483
    %v1724 = vmul.f32 %v1719, %v1723
    %v1725 = vadd.f32 %v1724, 0.05243302
    %v1726 = vmul.f32 %v1719, %v1725
    %v1727 = vadd.f32 %v1726, 0.18741608
    %v1728 = vmul.f32 %v1719, %v1727
    %v1729 = vadd.f32 %v1728, 1.1283791
    %v1730 = vmul.f32 %v1585, %v1729
    %v1731 = vmul.f32 %v1719, 3.8918573e-05
    %v1732 = vadd.f32 %v1731, 0.001143296
    %v1733 = vmul.f32 %v1719, %v1732
    %v1734 = vadd.f32 %v1733, 0.014752088
    %v1735 = vmul.f32 %v1719, %v1734
    %v1736 = vadd.f32 %v1735, 0.112945676
    %v1737 = vmul.f32 %v1719, %v1736
    %v1738 = vadd.f32 %v1737, 0.4994258
    %v1739 = vmul.f32 %v1719, %v1738
    %v1740 = vadd.f32 %v1739, 1.0
    %v1741 = vrcp.pop %v1740
    %v1742 = vmul.f32 %v1740, %v1741
    %v1743 = vsub.f32 1.0, %v1742
    %v1744 = vmul.f32 %v1741, %v1743
    %v1745 = vadd.f32 %v1741, %v1744
    %vm1746 = vweird.f32 %v1740
    %vm1747 = vweird.f32 %v1741
    %vm1748 = vmor %vm1746, %vm1747
    %v1749 = vsel %vm1748, %v1741, %v1745
    %v1750 = vand.u32 2147483647, %v1740
    %vm1751 = vcmp.eq.f32.partialorder %v1750, 8.507059e+37
    %v1752 = vand.u32 %v1740, 2147483648
    %v1753 = vor.u32 1.1754944e-38, %v1752
    %v1754 = vsel %vm1751, %v1753, %v1749
    %v1755 = vmul.f32 %v1730, %v1754
    %v1756 = vmin.f32 %v1755, 1.0
    %v1757 = vmax.f32 %v1756, -1.0
    %v1758 = vmul.f32 %v1586, %v1586
    %v1759 = vmin.f32 16.0, %v1758
    %v1760 = vmul.f32 %v1759, 2.1237322e-06
    %v1761 = vadd.f32 %v1760, 0.00028619796
    %v1762 = vmul.f32 %v1759, %v1761
    %v1763 = vadd.f32 %v1762, 0.0036580483
    %v1764 = vmul.f32 %v1759, %v1763
    %v1765 = vadd.f32 %v1764, 0.05243302
    %v1766 = vmul.f32 %v1759, %v1765
    %v1767 = vadd.f32 %v1766, 0.18741608
    %v1768 = vmul.f32 %v1759, %v1767
    %v1769 = vadd.f32 %v1768, 1.1283791
    %v1770 = vmul.f32 %v1586, %v1769
    %v1771 = vmul.f32 %v1759, 3.8918573e-05
    %v1772 = vadd.f32 %v1771, 0.001143296
    %v1773 = vmul.f32 %v1759, %v1772
    %v1774 = vadd.f32 %v1773, 0.014752088
    %v1775 = vmul.f32 %v1759, %v1774
    %v1776 = vadd.f32 %v1775, 0.112945676
    %v1777 = vmul.f32 %v1759, %v1776
    %v1778 = vadd.f32 %v1777, 0.4994258
    %v1779 = vmul.f32 %v1759, %v1778
    %v1780 = vadd.f32 %v1779, 1.0
    %v1781 = vrcp.pop %v1780
    %v1782 = vmul.f32 %v1780, %v1781
    %v1783 = vsub.f32 1.0, %v1782
    %v1784 = vmul.f32 %v1781, %v1783
    %v1785 = vadd.f32 %v1781, %v1784
    %vm1786 = vweird.f32 %v1780
    %vm1787 = vweird.f32 %v1781
    %vm1788 = vmor %vm1786, %vm1787
    %v1789 = vsel %vm1788, %v1781, %v1785
    %v1790 = vand.u32 2147483647, %v1780
    %vm1791 = vcmp.eq.f32.partialorder %v1790, 8.507059e+37
    %v1792 = vand.u32 %v1780, 2147483648
    %v1793 = vor.u32 1.1754944e-38, %v1792
    %v1794 = vsel %vm1791, %v1793, %v1789
    %v1795 = vmul.f32 %v1770, %v1794
    %v1796 = vmin.f32 %v1795, 1.0
    %v1797 = vmax.f32 %v1796, -1.0
    %v1798 = vmul.f32 %v1587, %v1587
    %v1799 = vmin.f32 16.0, %v1798
    %v1800 = vmul.f32 %v1799, 2.1237322e-06
    %v1801 = vadd.f32 %v1800, 0.00028619796
    %v1802 = vmul.f32 %v1799, %v1801
    %v1803 = vadd.f32 %v1802, 0.0036580483
    %v1804 = vmul.f32 %v1799, %v1803
    %v1805 = vadd.f32 %v1804, 0.05243302
    %v1806 = vmul.f32 %v1799, %v1805
    %v1807 = vadd.f32 %v1806, 0.18741608
    %v1808 = vmul.f32 %v1799, %v1807
    %v1809 = vadd.f32 %v1808, 1.1283791
    %v1810 = vmul.f32 %v1587, %v1809
    %v1811 = vmul.f32 %v1799, 3.8918573e-05
    %v1812 = vadd.f32 %v1811, 0.001143296
    %v1813 = vmul.f32 %v1799, %v1812
    %v1814 = vadd.f32 %v1813, 0.014752088
    %v1815 = vmul.f32 %v1799, %v1814
    %v1816 = vadd.f32 %v1815, 0.112945676
    %v1817 = vmul.f32 %v1799, %v1816
    %v1818 = vadd.f32 %v1817, 0.4994258
    %v1819 = vmul.f32 %v1799, %v1818
    %v1820 = vadd.f32 %v1819, 1.0
    %v1821 = vrcp.pop %v1820
    %v1822 = vmul.f32 %v1820, %v1821
    %v1823 = vsub.f32 1.0, %v1822
    %v1824 = vmul.f32 %v1821, %v1823
    %v1825 = vadd.f32 %v1821, %v1824
    %vm1826 = vweird.f32 %v1820
    %vm1827 = vweird.f32 %v1821
    %vm1828 = vmor %vm1826, %vm1827
    %v1829 = vsel %vm1828, %v1821, %v1825
    %v1830 = vand.u32 2147483647, %v1820
    %vm1831 = vcmp.eq.f32.partialorder %v1830, 8.507059e+37
    %v1832 = vand.u32 %v1820, 2147483648
    %v1833 = vor.u32 1.1754944e-38, %v1832
    %v1834 = vsel %vm1831, %v1833, %v1829
    %v1835 = vmul.f32 %v1810, %v1834
    %v1836 = vmin.f32 %v1835, 1.0
    %v1837 = vmax.f32 %v1836, -1.0
    %v1838 = vmul.f32 %v1588, %v1588
    %v1839 = vmin.f32 16.0, %v1838
    %v1840 = vmul.f32 %v1839, 2.1237322e-06
    %v1841 = vadd.f32 %v1840, 0.00028619796
    %v1842 = vmul.f32 %v1839, %v1841
    %v1843 = vadd.f32 %v1842, 0.0036580483
    %v1844 = vmul.f32 %v1839, %v1843
    %v1845 = vadd.f32 %v1844, 0.05243302
    %v1846 = vmul.f32 %v1839, %v1845
    %v1847 = vadd.f32 %v1846, 0.18741608
    %v1848 = vmul.f32 %v1839, %v1847
    %v1849 = vadd.f32 %v1848, 1.1283791
    %v1850 = vmul.f32 %v1588, %v1849
    %v1851 = vmul.f32 %v1839, 3.8918573e-05
    %v1852 = vadd.f32 %v1851, 0.001143296
    %v1853 = vmul.f32 %v1839, %v1852
    %v1854 = vadd.f32 %v1853, 0.014752088
    %v1855 = vmul.f32 %v1839, %v1854
    %v1856 = vadd.f32 %v1855, 0.112945676
    %v1857 = vmul.f32 %v1839, %v1856
    %v1858 = vadd.f32 %v1857, 0.4994258
    %v1859 = vmul.f32 %v1839, %v1858
    %v1860 = vadd.f32 %v1859, 1.0
    %v1861 = vrcp.pop %v1860
    %v1862 = vmul.f32 %v1860, %v1861
    %v1863 = vsub.f32 1.0, %v1862
    %v1864 = vmul.f32 %v1861, %v1863
    %v1865 = vadd.f32 %v1861, %v1864
    %vm1866 = vweird.f32 %v1860
    %vm1867 = vweird.f32 %v1861
    %vm1868 = vmor %vm1866, %vm1867
    %v1869 = vsel %vm1868, %v1861, %v1865
    %v1870 = vand.u32 2147483647, %v1860
    %vm1871 = vcmp.eq.f32.partialorder %v1870, 8.507059e+37
    %v1872 = vand.u32 %v1860, 2147483648
    %v1873 = vor.u32 1.1754944e-38, %v1872
    %v1874 = vsel %vm1871, %v1873, %v1869
    %v1875 = vmul.f32 %v1850, %v1874
    %v1876 = vmin.f32 %v1875, 1.0
    %v1877 = vmax.f32 %v1876, -1.0
    %v1878 = vmul.f32 %v1589, %v1589
    %v1879 = vmin.f32 16.0, %v1878
    %v1880 = vmul.f32 %v1879, 2.1237322e-06
    %v1881 = vadd.f32 %v1880, 0.00028619796
    %v1882 = vmul.f32 %v1879, %v1881
    %v1883 = vadd.f32 %v1882, 0.0036580483
    %v1884 = vmul.f32 %v1879, %v1883
    %v1885 = vadd.f32 %v1884, 0.05243302
    %v1886 = vmul.f32 %v1879, %v1885
    %v1887 = vadd.f32 %v1886, 0.18741608
    %v1888 = vmul.f32 %v1879, %v1887
    %v1889 = vadd.f32 %v1888, 1.1283791
    %v1890 = vmul.f32 %v1589, %v1889
    %v1891 = vmul.f32 %v1879, 3.8918573e-05
    %v1892 = vadd.f32 %v1891, 0.001143296
    %v1893 = vmul.f32 %v1879, %v1892
    %v1894 = vadd.f32 %v1893, 0.014752088
    %v1895 = vmul.f32 %v1879, %v1894
    %v1896 = vadd.f32 %v1895, 0.112945676
    %v1897 = vmul.f32 %v1879, %v1896
    %v1898 = vadd.f32 %v1897, 0.4994258
    %v1899 = vmul.f32 %v1879, %v1898
    %v1900 = vadd.f32 %v1899, 1.0
    %v1901 = vrcp.pop %v1900
    %v1902 = vmul.f32 %v1900, %v1901
    %v1903 = vsub.f32 1.0, %v1902
    %v1904 = vmul.f32 %v1901, %v1903
    %v1905 = vadd.f32 %v1901, %v1904
    %vm1906 = vweird.f32 %v1900
    %vm1907 = vweird.f32 %v1901
    %vm1908 = vmor %vm1906, %vm1907
    %v1909 = vsel %vm1908, %v1901, %v1905
    %v1910 = vand.u32 2147483647, %v1900
    %vm1911 = vcmp.eq.f32.partialorder %v1910, 8.507059e+37
    %v1912 = vand.u32 %v1900, 2147483648
    %v1913 = vor.u32 1.1754944e-38, %v1912
    %v1914 = vsel %vm1911, %v1913, %v1909
    %v1915 = vmul.f32 %v1890, %v1914
    %v1916 = vmin.f32 %v1915, 1.0
    %v1917 = vmax.f32 %v1916, -1.0
    %v1918 = vmul.f32 %v1590, %v1590
    %v1919 = vmin.f32 16.0, %v1918
    %v1920 = vmul.f32 %v1919, 2.1237322e-06
    %v1921 = vadd.f32 %v1920, 0.00028619796
    %v1922 = vmul.f32 %v1919, %v1921
    %v1923 = vadd.f32 %v1922, 0.0036580483
    %v1924 = vmul.f32 %v1919, %v1923
    %v1925 = vadd.f32 %v1924, 0.05243302
    %v1926 = vmul.f32 %v1919, %v1925
    %v1927 = vadd.f32 %v1926, 0.18741608
    %v1928 = vmul.f32 %v1919, %v1927
    %v1929 = vadd.f32 %v1928, 1.1283791
    %v1930 = vmul.f32 %v1590, %v1929
    %v1931 = vmul.f32 %v1919, 3.8918573e-05
    %v1932 = vadd.f32 %v1931, 0.001143296
    %v1933 = vmul.f32 %v1919, %v1932
    %v1934 = vadd.f32 %v1933, 0.014752088
    %v1935 = vmul.f32 %v1919, %v1934
    %v1936 = vadd.f32 %v1935, 0.112945676
    %v1937 = vmul.f32 %v1919, %v1936
    %v1938 = vadd.f32 %v1937, 0.4994258
    %v1939 = vmul.f32 %v1919, %v1938
    %v1940 = vadd.f32 %v1939, 1.0
    %v1941 = vrcp.pop %v1940
    %v1942 = vmul.f32 %v1940, %v1941
    %v1943 = vsub.f32 1.0, %v1942
    %v1944 = vmul.f32 %v1941, %v1943
    %v1945 = vadd.f32 %v1941, %v1944
    %vm1946 = vweird.f32 %v1940
    %vm1947 = vweird.f32 %v1941
    %vm1948 = vmor %vm1946, %vm1947
    %v1949 = vsel %vm1948, %v1941, %v1945
    %v1950 = vand.u32 2147483647, %v1940
    %vm1951 = vcmp.eq.f32.partialorder %v1950, 8.507059e+37
    %v1952 = vand.u32 %v1940, 2147483648
    %v1953 = vor.u32 1.1754944e-38, %v1952
    %v1954 = vsel %vm1951, %v1953, %v1949
    %v1955 = vmul.f32 %v1930, %v1954
    %v1956 = vmin.f32 %v1955, 1.0
    %v1957 = vmax.f32 %v1956, -1.0
    %v1958 = vmul.f32 %v1591, %v1591
    %v1959 = vmin.f32 16.0, %v1958
    %v1960 = vmul.f32 %v1959, 2.1237322e-06
    %v1961 = vadd.f32 %v1960, 0.00028619796
    %v1962 = vmul.f32 %v1959, %v1961
    %v1963 = vadd.f32 %v1962, 0.0036580483
    %v1964 = vmul.f32 %v1959, %v1963
    %v1965 = vadd.f32 %v1964, 0.05243302
    %v1966 = vmul.f32 %v1959, %v1965
    %v1967 = vadd.f32 %v1966, 0.18741608
    %v1968 = vmul.f32 %v1959, %v1967
    %v1969 = vadd.f32 %v1968, 1.1283791
    %v1970 = vmul.f32 %v1591, %v1969
    %v1971 = vmul.f32 %v1959, 3.8918573e-05
    %v1972 = vadd.f32 %v1971, 0.001143296
    %v1973 = vmul.f32 %v1959, %v1972
    %v1974 = vadd.f32 %v1973, 0.014752088
    %v1975 = vmul.f32 %v1959, %v1974
    %v1976 = vadd.f32 %v1975, 0.112945676
    %v1977 = vmul.f32 %v1959, %v1976
    %v1978 = vadd.f32 %v1977, 0.4994258
    %v1979 = vmul.f32 %v1959, %v1978
    %v1980 = vadd.f32 %v1979, 1.0
    %v1981 = vrcp.pop %v1980
    %v1982 = vmul.f32 %v1980, %v1981
    %v1983 = vsub.f32 1.0, %v1982
    %v1984 = vmul.f32 %v1981, %v1983
    %v1985 = vadd.f32 %v1981, %v1984
    %vm1986 = vweird.f32 %v1980
    %vm1987 = vweird.f32 %v1981
    %vm1988 = vmor %vm1986, %vm1987
    %v1989 = vsel %vm1988, %v1981, %v1985
    %v1990 = vand.u32 2147483647, %v1980
    %vm1991 = vcmp.eq.f32.partialorder %v1990, 8.507059e+37
    %v1992 = vand.u32 %v1980, 2147483648
    %v1993 = vor.u32 1.1754944e-38, %v1992
    %v1994 = vsel %vm1991, %v1993, %v1989
    %v1995 = vmul.f32 %v1970, %v1994
    %v1996 = vmin.f32 %v1995, 1.0
    %v1997 = vmax.f32 %v1996, -1.0
    %v1998 = vmul.f32 %v1592, %v1592
    %v1999 = vmin.f32 16.0, %v1998
    %v2000 = vmul.f32 %v1999, 2.1237322e-06
    %v2001 = vadd.f32 %v2000, 0.00028619796
    %v2002 = vmul.f32 %v1999, %v2001
    %v2003 = vadd.f32 %v2002, 0.0036580483
    %v2004 = vmul.f32 %v1999, %v2003
    %v2005 = vadd.f32 %v2004, 0.05243302
    %v2006 = vmul.f32 %v1999, %v2005
    %v2007 = vadd.f32 %v2006, 0.18741608
    %v2008 = vmul.f32 %v1999, %v2007
    %v2009 = vadd.f32 %v2008, 1.1283791
    %v2010 = vmul.f32 %v1592, %v2009
    %v2011 = vmul.f32 %v1999, 3.8918573e-05
    %v2012 = vadd.f32 %v2011, 0.001143296
    %v2013 = vmul.f32 %v1999, %v2012
    %v2014 = vadd.f32 %v2013, 0.014752088
    %v2015 = vmul.f32 %v1999, %v2014
    %v2016 = vadd.f32 %v2015, 0.112945676
    %v2017 = vmul.f32 %v1999, %v2016
    %v2018 = vadd.f32 %v2017, 0.4994258
    %v2019 = vmul.f32 %v1999, %v2018
    %v2020 = vadd.f32 %v2019, 1.0
    %v2021 = vrcp.pop %v2020
    %v2022 = vmul.f32 %v2020, %v2021
    %v2023 = vsub.f32 1.0, %v2022
    %v2024 = vmul.f32 %v2021, %v2023
    %v2025 = vadd.f32 %v2021, %v2024
    %vm2026 = vweird.f32 %v2020
    %vm2027 = vweird.f32 %v2021
    %vm2028 = vmor %vm2026, %vm2027
    %v2029 = vsel %vm2028, %v2021, %v2025
    %v2030 = vand.u32 2147483647, %v2020
    %vm2031 = vcmp.eq.f32.partialorder %v2030, 8.507059e+37
    %v2032 = vand.u32 %v2020, 2147483648
    %v2033 = vor.u32 1.1754944e-38, %v2032
    %v2034 = vsel %vm2031, %v2033, %v2029
    %v2035 = vmul.f32 %v2010, %v2034
    %v2036 = vmin.f32 %v2035, 1.0
    %v2037 = vmax.f32 %v2036, -1.0
    %v2038 = vmul.f32 %v1593, %v1593
    %v2039 = vmin.f32 16.0, %v2038
    %v2040 = vmul.f32 %v2039, 2.1237322e-06
    %v2041 = vadd.f32 %v2040, 0.00028619796
    %v2042 = vmul.f32 %v2039, %v2041
    %v2043 = vadd.f32 %v2042, 0.0036580483
    %v2044 = vmul.f32 %v2039, %v2043
    %v2045 = vadd.f32 %v2044, 0.05243302
    %v2046 = vmul.f32 %v2039, %v2045
    %v2047 = vadd.f32 %v2046, 0.18741608
    %v2048 = vmul.f32 %v2039, %v2047
    %v2049 = vadd.f32 %v2048, 1.1283791
    %v2050 = vmul.f32 %v1593, %v2049
    %v2051 = vmul.f32 %v2039, 3.8918573e-05
    %v2052 = vadd.f32 %v2051, 0.001143296
    %v2053 = vmul.f32 %v2039, %v2052
    %v2054 = vadd.f32 %v2053, 0.014752088
    %v2055 = vmul.f32 %v2039, %v2054
    %v2056 = vadd.f32 %v2055, 0.112945676
    %v2057 = vmul.f32 %v2039, %v2056
    %v2058 = vadd.f32 %v2057, 0.4994258
    %v2059 = vmul.f32 %v2039, %v2058
    %v2060 = vadd.f32 %v2059, 1.0
    %v2061 = vrcp.pop %v2060
    %v2062 = vmul.f32 %v2060, %v2061
    %v2063 = vsub.f32 1.0, %v2062
    %v2064 = vmul.f32 %v2061, %v2063
    %v2065 = vadd.f32 %v2061, %v2064
    %vm2066 = vweird.f32 %v2060
    %vm2067 = vweird.f32 %v2061
    %vm2068 = vmor %vm2066, %vm2067
    %v2069 = vsel %vm2068, %v2061, %v2065
    %v2070 = vand.u32 2147483647, %v2060
    %vm2071 = vcmp.eq.f32.partialorder %v2070, 8.507059e+37
    %v2072 = vand.u32 %v2060, 2147483648
    %v2073 = vor.u32 1.1754944e-38, %v2072
    %v2074 = vsel %vm2071, %v2073, %v2069
    %v2075 = vmul.f32 %v2050, %v2074
    %v2076 = vmin.f32 %v2075, 1.0
    %v2077 = vmax.f32 %v2076, -1.0
    %v2078 = vmul.f32 %v1594, %v1594
    %v2079 = vmin.f32 16.0, %v2078
    %v2080 = vmul.f32 %v2079, 2.1237322e-06
    %v2081 = vadd.f32 %v2080, 0.00028619796
    %v2082 = vmul.f32 %v2079, %v2081
    %v2083 = vadd.f32 %v2082, 0.0036580483
    %v2084 = vmul.f32 %v2079, %v2083
    %v2085 = vadd.f32 %v2084, 0.05243302
    %v2086 = vmul.f32 %v2079, %v2085
    %v2087 = vadd.f32 %v2086, 0.18741608
    %v2088 = vmul.f32 %v2079, %v2087
    %v2089 = vadd.f32 %v2088, 1.1283791
    %v2090 = vmul.f32 %v1594, %v2089
    %v2091 = vmul.f32 %v2079, 3.8918573e-05
    %v2092 = vadd.f32 %v2091, 0.001143296
    %v2093 = vmul.f32 %v2079, %v2092
    %v2094 = vadd.f32 %v2093, 0.014752088
    %v2095 = vmul.f32 %v2079, %v2094
    %v2096 = vadd.f32 %v2095, 0.112945676
    %v2097 = vmul.f32 %v2079, %v2096
    %v2098 = vadd.f32 %v2097, 0.4994258
    %v2099 = vmul.f32 %v2079, %v2098
    %v2100 = vadd.f32 %v2099, 1.0
    %v2101 = vrcp.pop %v2100
    %v2102 = vmul.f32 %v2100, %v2101
    %v2103 = vsub.f32 1.0, %v2102
    %v2104 = vmul.f32 %v2101, %v2103
    %v2105 = vadd.f32 %v2101, %v2104
    %vm2106 = vweird.f32 %v2100
    %vm2107 = vweird.f32 %v2101
    %vm2108 = vmor %vm2106, %vm2107
    %v2109 = vsel %vm2108, %v2101, %v2105
    %v2110 = vand.u32 2147483647, %v2100
    %vm2111 = vcmp.eq.f32.partialorder %v2110, 8.507059e+37
    %v2112 = vand.u32 %v2100, 2147483648
    %v2113 = vor.u32 1.1754944e-38, %v2112
    %v2114 = vsel %vm2111, %v2113, %v2109
    %v2115 = vmul.f32 %v2090, %v2114
    %v2116 = vmin.f32 %v2115, 1.0
    %v2117 = vmax.f32 %v2116, -1.0
    %v2118 = vmul.f32 %v1595, %v1595
    %v2119 = vmin.f32 16.0, %v2118
    %v2120 = vmul.f32 %v2119, 2.1237322e-06
    %v2121 = vadd.f32 %v2120, 0.00028619796
    %v2122 = vmul.f32 %v2119, %v2121
    %v2123 = vadd.f32 %v2122, 0.0036580483
    %v2124 = vmul.f32 %v2119, %v2123
    %v2125 = vadd.f32 %v2124, 0.05243302
    %v2126 = vmul.f32 %v2119, %v2125
    %v2127 = vadd.f32 %v2126, 0.18741608
    %v2128 = vmul.f32 %v2119, %v2127
    %v2129 = vadd.f32 %v2128, 1.1283791
    %v2130 = vmul.f32 %v1595, %v2129
    %v2131 = vmul.f32 %v2119, 3.8918573e-05
    %v2132 = vadd.f32 %v2131, 0.001143296
    %v2133 = vmul.f32 %v2119, %v2132
    %v2134 = vadd.f32 %v2133, 0.014752088
    %v2135 = vmul.f32 %v2119, %v2134
    %v2136 = vadd.f32 %v2135, 0.112945676
    %v2137 = vmul.f32 %v2119, %v2136
    %v2138 = vadd.f32 %v2137, 0.4994258
    %v2139 = vmul.f32 %v2119, %v2138
    %v2140 = vadd.f32 %v2139, 1.0
    %v2141 = vrcp.pop %v2140
    %v2142 = vmul.f32 %v2140, %v2141
    %v2143 = vsub.f32 1.0, %v2142
    %v2144 = vmul.f32 %v2141, %v2143
    %v2145 = vadd.f32 %v2141, %v2144
    %vm2146 = vweird.f32 %v2140
    %vm2147 = vweird.f32 %v2141
    %vm2148 = vmor %vm2146, %vm2147
    %v2149 = vsel %vm2148, %v2141, %v2145
    %v2150 = vand.u32 2147483647, %v2140
    %vm2151 = vcmp.eq.f32.partialorder %v2150, 8.507059e+37
    %v2152 = vand.u32 %v2140, 2147483648
    %v2153 = vor.u32 1.1754944e-38, %v2152
    %v2154 = vsel %vm2151, %v2153, %v2149
    %v2155 = vmul.f32 %v2130, %v2154
    %v2156 = vmin.f32 %v2155, 1.0
    %v2157 = vmax.f32 %v2156, -1.0
    %v2158 = vmul.f32 %v1596, %v1596
    %v2159 = vmin.f32 16.0, %v2158
    %v2160 = vmul.f32 %v2159, 2.1237322e-06
    %v2161 = vadd.f32 %v2160, 0.00028619796
    %v2162 = vmul.f32 %v2159, %v2161
    %v2163 = vadd.f32 %v2162, 0.0036580483
    %v2164 = vmul.f32 %v2159, %v2163
    %v2165 = vadd.f32 %v2164, 0.05243302
    %v2166 = vmul.f32 %v2159, %v2165
    %v2167 = vadd.f32 %v2166, 0.18741608
    %v2168 = vmul.f32 %v2159, %v2167
    %v2169 = vadd.f32 %v2168, 1.1283791
    %v2170 = vmul.f32 %v1596, %v2169
    %v2171 = vmul.f32 %v2159, 3.8918573e-05
    %v2172 = vadd.f32 %v2171, 0.001143296
    %v2173 = vmul.f32 %v2159, %v2172
    %v2174 = vadd.f32 %v2173, 0.014752088
    %v2175 = vmul.f32 %v2159, %v2174
    %v2176 = vadd.f32 %v2175, 0.112945676
    %v2177 = vmul.f32 %v2159, %v2176
    %v2178 = vadd.f32 %v2177, 0.4994258
    %v2179 = vmul.f32 %v2159, %v2178
    %v2180 = vadd.f32 %v2179, 1.0
    %v2181 = vrcp.pop %v2180
    %v2182 = vmul.f32 %v2180, %v2181
    %v2183 = vsub.f32 1.0, %v2182
    %v2184 = vmul.f32 %v2181, %v2183
    %v2185 = vadd.f32 %v2181, %v2184
    %vm2186 = vweird.f32 %v2180
    %vm2187 = vweird.f32 %v2181
    %vm2188 = vmor %vm2186, %vm2187
    %v2189 = vsel %vm2188, %v2181, %v2185
    %v2190 = vand.u32 2147483647, %v2180
    %vm2191 = vcmp.eq.f32.partialorder %v2190, 8.507059e+37
    %v2192 = vand.u32 %v2180, 2147483648
    %v2193 = vor.u32 1.1754944e-38, %v2192
    %v2194 = vsel %vm2191, %v2193, %v2189
    %v2195 = vmul.f32 %v2170, %v2194
    %v2196 = vmin.f32 %v2195, 1.0
    %v2197 = vmax.f32 %v2196, -1.0
    %v2198 = vmul.f32 %v1597, %v1597
    %v2199 = vmin.f32 16.0, %v2198
    %v2200 = vmul.f32 %v2199, 2.1237322e-06
    %v2201 = vadd.f32 %v2200, 0.00028619796
    %v2202 = vmul.f32 %v2199, %v2201
    %v2203 = vadd.f32 %v2202, 0.0036580483
    %v2204 = vmul.f32 %v2199, %v2203
    %v2205 = vadd.f32 %v2204, 0.05243302
    %v2206 = vmul.f32 %v2199, %v2205
    %v2207 = vadd.f32 %v2206, 0.18741608
    %v2208 = vmul.f32 %v2199, %v2207
    %v2209 = vadd.f32 %v2208, 1.1283791
    %v2210 = vmul.f32 %v1597, %v2209
    %v2211 = vmul.f32 %v2199, 3.8918573e-05
    %v2212 = vadd.f32 %v2211, 0.001143296
    %v2213 = vmul.f32 %v2199, %v2212
    %v2214 = vadd.f32 %v2213, 0.014752088
    %v2215 = vmul.f32 %v2199, %v2214
    %v2216 = vadd.f32 %v2215, 0.112945676
    %v2217 = vmul.f32 %v2199, %v2216
    %v2218 = vadd.f32 %v2217, 0.4994258
    %v2219 = vmul.f32 %v2199, %v2218
    %v2220 = vadd.f32 %v2219, 1.0
    %v2221 = vrcp.pop %v2220
    %v2222 = vmul.f32 %v2220, %v2221
    %v2223 = vsub.f32 1.0, %v2222
    %v2224 = vmul.f32 %v2221, %v2223
    %v2225 = vadd.f32 %v2221, %v2224
    %vm2226 = vweird.f32 %v2220
    %vm2227 = vweird.f32 %v2221
    %vm2228 = vmor %vm2226, %vm2227
    %v2229 = vsel %vm2228, %v2221, %v2225
    %v2230 = vand.u32 2147483647, %v2220
    %vm2231 = vcmp.eq.f32.partialorder %v2230, 8.507059e+37
    %v2232 = vand.u32 %v2220, 2147483648
    %v2233 = vor.u32 1.1754944e-38, %v2232
    %v2234 = vsel %vm2231, %v2233, %v2229
    %v2235 = vmul.f32 %v2210, %v2234
    %v2236 = vmin.f32 %v2235, 1.0
    %v2237 = vmax.f32 %v2236, -1.0
    %v2238 = vadd.f32 %v1637, 1.0
    %v2239 = vadd.f32 %v1677, 1.0
    %v2240 = vadd.f32 %v1717, 1.0
    %v2241 = vadd.f32 %v1757, 1.0
    %v2242 = vadd.f32 %v1797, 1.0
    %v2243 = vadd.f32 %v1837, 1.0
    %v2244 = vadd.f32 %v1877, 1.0
    %v2245 = vadd.f32 %v1917, 1.0
    %v2246 = vadd.f32 %v1957, 1.0
    %v2247 = vadd.f32 %v1997, 1.0
    %v2248 = vadd.f32 %v2037, 1.0
    %v2249 = vadd.f32 %v2077, 1.0
    %v2250 = vadd.f32 %v2117, 1.0
    %v2251 = vadd.f32 %v2157, 1.0
    %v2252 = vadd.f32 %v2197, 1.0
    %v2253 = vadd.f32 %v2237, 1.0
    %v2254 = vmul.f32 %v1566, %v2238
    %v2255 = vmul.f32 %v1567, %v2239
    %v2256 = vmul.f32 %v1568, %v2240
    %v2257 = vmul.f32 %v1569, %v2241
    %v2258 = vmul.f32 %v1570, %v2242
    %v2259 = vmul.f32 %v1571, %v2243
    %v2260 = vmul.f32 %v1572, %v2244
    %v2261 = vmul.f32 %v1573, %v2245
    %v2262 = vmul.f32 %v1574, %v2246
    %v2263 = vmul.f32 %v1575, %v2247
    %v2264 = vmul.f32 %v1576, %v2248
    %v2265 = vmul.f32 %v1577, %v2249
    %v2266 = vmul.f32 %v1578, %v2250
    %v2267 = vmul.f32 %v1579, %v2251
    %v2268 = vmul.f32 %v1580, %v2252
    %v2269 = vmul.f32 %v1581, %v2253
    %v2270 = vpack.c.bf16 %v2258, %v2254
    %v2271 = vpack.c.bf16 %v2259, %v2255
    %v2272 = vpack.c.bf16 %v2260, %v2256
    %v2273 = vpack.c.bf16 %v2261, %v2257
    %v2274 = vpack.c.bf16 %v2266, %v2262
    %v2275 = vpack.c.bf16 %v2267, %v2263
    %v2276 = vpack.c.bf16 %v2268, %v2264
    %v2277 = vpack.c.bf16 %v2269, %v2265
    %v2278 = vld [vmem:[%s11] sm:$0xf]
    %v2279 = vld [vmem:[%s11 + $0x4] sm:$0xf]
    %v2280 = vld [vmem:[%s11 + $0x8] sm:$0xf]
    %v2281 = vld [vmem:[%s11 + $0xc] sm:$0xf]
    %v2282 = vld [vmem:[%s11 + $0x10] sm:$0xf]
    %v2283 = vld [vmem:[%s11 + $0x14] sm:$0xf]
    %v2284 = vld [vmem:[%s11 + $0x18] sm:$0xf]
    %v2285 = vld [vmem:[%s11 + $0x1c] sm:$0xf]
    %v2286 = vld [vmem:[%s11 + $0x20] sm:$0xf]
    %v2287 = vld [vmem:[%s11 + $0x24] sm:$0xf]
    %v2288 = vld [vmem:[%s11 + $0x28] sm:$0xf]
    %v2289 = vld [vmem:[%s11 + $0x2c] sm:$0xf]
    %v2290 = vld [vmem:[%s11 + $0x30] sm:$0xf]
    %v2291 = vld [vmem:[%s11 + $0x34] sm:$0xf]
    %v2292 = vld [vmem:[%s11 + $0x38] sm:$0xf]
    %v2293 = vld [vmem:[%s11 + $0x3c] sm:$0xf]
    %v2294 = vld [vmem:[%s11 + $0x40] sm:$0xf]
    %v2295 = vld [vmem:[%s11 + $0x44] sm:$0xf]
    %v2296 = vld [vmem:[%s11 + $0x48] sm:$0xf]
    %v2297 = vld [vmem:[%s11 + $0x4c] sm:$0xf]
    %v2298 = vld [vmem:[%s11 + $0x50] sm:$0xf]
    %v2299 = vld [vmem:[%s11 + $0x54] sm:$0xf]
    %v2300 = vld [vmem:[%s11 + $0x58] sm:$0xf]
    %v2301 = vld [vmem:[%s11 + $0x5c] sm:$0xf]
    %v2302 = vld [vmem:[%s11 + $0x60] sm:$0xf]
    %v2303 = vld [vmem:[%s11 + $0x64] sm:$0xf]
    %v2304 = vld [vmem:[%s11 + $0x68] sm:$0xf]
    %v2305 = vld [vmem:[%s11 + $0x6c] sm:$0xf]
    %v2306 = vld [vmem:[%s11 + $0x70] sm:$0xf]
    %v2307 = vld [vmem:[%s11 + $0x74] sm:$0xf]
    %v2308 = vld [vmem:[%s11 + $0x78] sm:$0xf]
    %v2309 = vld [vmem:[%s11 + $0x7c] sm:$0xf]
    %v2310 = vld [vmem:[%s11 + $0x80] sm:$0xf]
    %v2311 = vld [vmem:[%s11 + $0x84] sm:$0xf]
    %v2312 = vld [vmem:[%s11 + $0x88] sm:$0xf]
    %v2313 = vld [vmem:[%s11 + $0x8c] sm:$0xf]
    %v2314 = vld [vmem:[%s11 + $0x90] sm:$0xf]
    %v2315 = vld [vmem:[%s11 + $0x94] sm:$0xf]
    %v2316 = vld [vmem:[%s11 + $0x98] sm:$0xf]
    %v2317 = vld [vmem:[%s11 + $0x9c] sm:$0xf]
    %v2318 = vld [vmem:[%s11 + $0xa0] sm:$0xf]
    %v2319 = vld [vmem:[%s11 + $0xa4] sm:$0xf]
    %v2320 = vld [vmem:[%s11 + $0xa8] sm:$0xf]
    %v2321 = vld [vmem:[%s11 + $0xac] sm:$0xf]
    %v2322 = vld [vmem:[%s11 + $0xb0] sm:$0xf]
    %v2323 = vld [vmem:[%s11 + $0xb4] sm:$0xf]
    %v2324 = vld [vmem:[%s11 + $0xb8] sm:$0xf]
    %v2325 = vld [vmem:[%s11 + $0xbc] sm:$0xf]
    %v2326 = vld [vmem:[%s11 + $0xc0] sm:$0xf]
    %v2327 = vld [vmem:[%s11 + $0xc4] sm:$0xf]
    %v2328 = vld [vmem:[%s11 + $0xc8] sm:$0xf]
    %v2329 = vld [vmem:[%s11 + $0xcc] sm:$0xf]
    %v2330 = vld [vmem:[%s11 + $0xd0] sm:$0xf]
    %v2331 = vld [vmem:[%s11 + $0xd4] sm:$0xf]
    %v2332 = vld [vmem:[%s11 + $0xd8] sm:$0xf]
    %v2333 = vld [vmem:[%s11 + $0xdc] sm:$0xf]
    %v2334 = vld [vmem:[%s11 + $0xe0] sm:$0xf]
    %v2335 = vld [vmem:[%s11 + $0xe4] sm:$0xf]
    %v2336 = vld [vmem:[%s11 + $0xe8] sm:$0xf]
    %v2337 = vld [vmem:[%s11 + $0xec] sm:$0xf]
    %v2338 = vld [vmem:[%s11 + $0xf0] sm:$0xf]
    %v2339 = vld [vmem:[%s11 + $0xf4] sm:$0xf]
    %v2340 = vld [vmem:[%s11 + $0xf8] sm:$0xf]
    %v2341 = vld [vmem:[%s11 + $0xfc] sm:$0xf]
    %v2342 = vld [vmem:[%s12] sm:$0x1]
    %v2344 = vperm.slane %v2342, 0
    %v2410 = vunpack.c.l.b16 %v2278
    %v2411 = vunpack.c.l.b16 %v2279
    %v2412 = vunpack.c.l.b16 %v2280
    %v2413 = vunpack.c.l.b16 %v2281
    %v2414 = vunpack.c.l.b16 %v2282
    %v2415 = vunpack.c.l.b16 %v2283
    %v2416 = vunpack.c.l.b16 %v2284
    %v2417 = vunpack.c.l.b16 %v2285
    %v2418 = vunpack.c.l.b16 %v2286
    %v2419 = vunpack.c.l.b16 %v2287
    %v2420 = vunpack.c.l.b16 %v2288
    %v2421 = vunpack.c.l.b16 %v2289
    %v2422 = vunpack.c.l.b16 %v2290
    %v2423 = vunpack.c.l.b16 %v2291
    %v2424 = vunpack.c.l.b16 %v2292
    %v2425 = vunpack.c.l.b16 %v2293
    %v2426 = vunpack.c.l.b16 %v2294
    %v2427 = vunpack.c.l.b16 %v2295
    %v2428 = vunpack.c.l.b16 %v2296
    %v2429 = vunpack.c.l.b16 %v2297
    %v2430 = vunpack.c.l.b16 %v2298
    %v2431 = vunpack.c.l.b16 %v2299
    %v2432 = vunpack.c.l.b16 %v2300
    %v2433 = vunpack.c.l.b16 %v2301
    %v2434 = vunpack.c.l.b16 %v2302
    %v2435 = vunpack.c.l.b16 %v2303
    %v2436 = vunpack.c.l.b16 %v2304
    %v2437 = vunpack.c.l.b16 %v2305
    %v2438 = vunpack.c.l.b16 %v2306
    %v2439 = vunpack.c.l.b16 %v2307
    %v2440 = vunpack.c.l.b16 %v2308
    %v2441 = vunpack.c.l.b16 %v2309
    %v2442 = vunpack.c.l.b16 %v2310
    %v2443 = vunpack.c.l.b16 %v2311
    %v2444 = vunpack.c.l.b16 %v2312
    %v2445 = vunpack.c.l.b16 %v2313
    %v2446 = vunpack.c.l.b16 %v2314
    %v2447 = vunpack.c.l.b16 %v2315
    %v2448 = vunpack.c.l.b16 %v2316
    %v2449 = vunpack.c.l.b16 %v2317
    %v2450 = vunpack.c.l.b16 %v2318
    %v2451 = vunpack.c.l.b16 %v2319
    %v2452 = vunpack.c.l.b16 %v2320
    %v2453 = vunpack.c.l.b16 %v2321
    %v2454 = vunpack.c.l.b16 %v2322
    %v2455 = vunpack.c.l.b16 %v2323
    %v2456 = vunpack.c.l.b16 %v2324
    %v2457 = vunpack.c.l.b16 %v2325
    %v2458 = vunpack.c.l.b16 %v2326
    %v2459 = vunpack.c.l.b16 %v2327
    %v2460 = vunpack.c.l.b16 %v2328
    %v2461 = vunpack.c.l.b16 %v2329
    %v2462 = vunpack.c.l.b16 %v2330
    %v2463 = vunpack.c.l.b16 %v2331
    %v2464 = vunpack.c.l.b16 %v2332
    %v2465 = vunpack.c.l.b16 %v2333
    %v2466 = vunpack.c.l.b16 %v2334
    %v2467 = vunpack.c.l.b16 %v2335
    %v2468 = vunpack.c.l.b16 %v2336
    %v2469 = vunpack.c.l.b16 %v2337
    %v2470 = vunpack.c.l.b16 %v2338
    %v2471 = vunpack.c.l.b16 %v2339
    %v2472 = vunpack.c.l.b16 %v2340
    %v2473 = vunpack.c.l.b16 %v2341
    %v2474 = vpack.c.b16 %v2411, %v2410
    %v2475 = vpack.c.b16 %v2413, %v2412
    %v2476 = vpack.c.b16 %v2415, %v2414
    %v2477 = vpack.c.b16 %v2417, %v2416
    %v2478 = vpack.c.b16 %v2419, %v2418
    %v2479 = vpack.c.b16 %v2421, %v2420
    %v2480 = vpack.c.b16 %v2423, %v2422
    %v2481 = vpack.c.b16 %v2425, %v2424
    %v2482 = vpack.c.b16 %v2427, %v2426
    %v2483 = vpack.c.b16 %v2429, %v2428
    %v2484 = vpack.c.b16 %v2431, %v2430
    %v2485 = vpack.c.b16 %v2433, %v2432
    %v2486 = vpack.c.b16 %v2435, %v2434
    %v2487 = vpack.c.b16 %v2437, %v2436
    %v2488 = vpack.c.b16 %v2439, %v2438
    %v2489 = vpack.c.b16 %v2441, %v2440
    %v2490 = vpack.c.b16 %v2443, %v2442
    %v2491 = vpack.c.b16 %v2445, %v2444
    %v2492 = vpack.c.b16 %v2447, %v2446
    %v2493 = vpack.c.b16 %v2449, %v2448
    %v2494 = vpack.c.b16 %v2451, %v2450
    %v2495 = vpack.c.b16 %v2453, %v2452
    %v2496 = vpack.c.b16 %v2455, %v2454
    %v2497 = vpack.c.b16 %v2457, %v2456
    %v2498 = vpack.c.b16 %v2459, %v2458
    %v2499 = vpack.c.b16 %v2461, %v2460
    %v2500 = vpack.c.b16 %v2463, %v2462
    %v2501 = vpack.c.b16 %v2465, %v2464
    %v2502 = vpack.c.b16 %v2467, %v2466
    %v2503 = vpack.c.b16 %v2469, %v2468
    %v2504 = vpack.c.b16 %v2471, %v2470
    %v2505 = vpack.c.b16 %v2473, %v2472
    %2538 = vmatpush.bf16.msra.mxu0 %v2481
    %2539 = vmatpush.bf16.msra.mxu0 %v2480
    %2540 = vmatpush.bf16.msra.mxu0 %v2479
    %2541 = vmatpush.bf16.msra.mxu0 %v2478
    %2542 = vmatpush.bf16.msra.mxu0 %v2477
    %2543 = vmatpush.bf16.msra.mxu0 %v2476
    %2544 = vmatpush.bf16.msra.mxu0 %v2475
    %2545 = vmatpush.bf16.msra.mxu0 %v2474
    %2546 = vmatmul.bf16.gmra.mxu0 %v2270
    %v2547 = vpop.f32.mrf.mxu0
    %v2548 = vadd.f32 %v2344, %v2547
    %v2549 = vpop.f32.mrf.mxu0
    %v2550 = vadd.f32 %v2344, %v2549
    %2551 = vmatmul.bf16.gmra.mxu0 %v2274
    %v2552 = vpop.f32.mrf.mxu0
    %v2553 = vadd.f32 %v2344, %v2552
    %v2554 = vpop.f32.mrf.mxu0
    %v2555 = vadd.f32 %v2344, %v2554
    %2556 = vdwg.mxu0
    %2557 = vmatpush.bf16.msra.mxu0 %v2489
    %2558 = vmatpush.bf16.msra.mxu0 %v2488
    %2559 = vmatpush.bf16.msra.mxu0 %v2487
    %2560 = vmatpush.bf16.msra.mxu0 %v2486
    %2561 = vmatpush.bf16.msra.mxu0 %v2485
    %2562 = vmatpush.bf16.msra.mxu0 %v2484
    %2563 = vmatpush.bf16.msra.mxu0 %v2483
    %2564 = vmatpush.bf16.msra.mxu0 %v2482
    %2565 = vmatmul.bf16.gmra.mxu0 %v2271
    %v2566 = vpop.f32.mrf.mxu0
    %v2567 = vadd.f32 %v2548, %v2566
    %v2568 = vpop.f32.mrf.mxu0
    %v2569 = vadd.f32 %v2550, %v2568
    %2570 = vmatmul.bf16.gmra.mxu0 %v2275
    %v2571 = vpop.f32.mrf.mxu0
    %v2572 = vadd.f32 %v2553, %v2571
    %v2573 = vpop.f32.mrf.mxu0
    %v2574 = vadd.f32 %v2555, %v2573
    %2575 = vdwg.mxu0
    %2576 = vmatpush.bf16.msra.mxu0 %v2497
    %2577 = vmatpush.bf16.msra.mxu0 %v2496
    %2578 = vmatpush.bf16.msra.mxu0 %v2495
    %2579 = vmatpush.bf16.msra.mxu0 %v2494
    %2580 = vmatpush.bf16.msra.mxu0 %v2493
    %2581 = vmatpush.bf16.msra.mxu0 %v2492
    %2582 = vmatpush.bf16.msra.mxu0 %v2491
    %2583 = vmatpush.bf16.msra.mxu0 %v2490
    %2584 = vmatmul.bf16.gmra.mxu0 %v2272
    %v2585 = vpop.f32.mrf.mxu0
    %v2586 = vadd.f32 %v2567, %v2585
    %v2587 = vpop.f32.mrf.mxu0
    %v2588 = vadd.f32 %v2569, %v2587
    %2589 = vmatmul.bf16.gmra.mxu0 %v2276
    %v2590 = vpop.f32.mrf.mxu0
    %v2591 = vadd.f32 %v2572, %v2590
    %v2592 = vpop.f32.mrf.mxu0
    %v2593 = vadd.f32 %v2574, %v2592
    %2594 = vdwg.mxu0
    %2595 = vmatpush.bf16.msra.mxu0 %v2505
    %2596 = vmatpush.bf16.msra.mxu0 %v2504
    %2597 = vmatpush.bf16.msra.mxu0 %v2503
    %2598 = vmatpush.bf16.msra.mxu0 %v2502
    %2599 = vmatpush.bf16.msra.mxu0 %v2501
    %2600 = vmatpush.bf16.msra.mxu0 %v2500
    %2601 = vmatpush.bf16.msra.mxu0 %v2499
    %2602 = vmatpush.bf16.msra.mxu0 %v2498
    %2603 = vmatmul.bf16.gmra.mxu0 %v2273
    %v2604 = vpop.f32.mrf.mxu0
    %v2605 = vadd.f32 %v2586, %v2604
    %v2606 = vpop.f32.mrf.mxu0
    %v2607 = vadd.f32 %v2588, %v2606
    %2608 = vmatmul.bf16.gmra.mxu0 %v2277
    %v2609 = vpop.f32.mrf.mxu0
    %v2610 = vadd.f32 %v2591, %v2609
    %v2611 = vpop.f32.mrf.mxu0
    %v2612 = vadd.f32 %v2593, %v2611
    %2613 = vdwg.mxu0
    %v2614 = vadd.f32 %v1282, %v2605
    %v2615 = vadd.f32 %v1283, %v2607
    %v2616 = vadd.f32 %v1284, %v2610
    %v2617 = vadd.f32 %v1285, %v2612
    %v2618 = vld [vmem:[%s13] sm:$0x1]
    %v2619 = vld [vmem:[%s14] sm:$0x1]
    %2620 = vadd.xlane.f32.xlu0 %v2614
    %v2621 = vpop.xlane.xlu0 %2620
    %2622 = vadd.xlane.f32.xlu0 %v2615
    %v2623 = vpop.xlane.xlu0 %2622
    %2624 = vadd.xlane.f32.xlu0 %v2616
    %v2625 = vpop.xlane.xlu0 %2624
    %2626 = vadd.xlane.f32.xlu0 %v2617
    %v2627 = vpop.xlane.xlu0 %2626
    %v2628 = vmul.f32 %v2621, %v1199
    %v2629 = vmul.f32 %v2623, %v1199
    %v2630 = vmul.f32 %v2625, %v1199
    %v2631 = vmul.f32 %v2627, %v1199
    %v2632 = vsub.f32 %v2614, %v2628
    %v2633 = vsub.f32 %v2615, %v2629
    %v2634 = vsub.f32 %v2616, %v2630
    %v2635 = vsub.f32 %v2617, %v2631
    %v2636 = vmul.f32 %v2632, %v2632
    %v2637 = vmul.f32 %v2633, %v2633
    %v2638 = vmul.f32 %v2634, %v2634
    %v2639 = vmul.f32 %v2635, %v2635
    %2640 = vadd.xlane.f32.xlu0 %v2636
    %v2641 = vpop.xlane.xlu0 %2640
    %2642 = vadd.xlane.f32.xlu0 %v2637
    %v2643 = vpop.xlane.xlu0 %2642
    %2644 = vadd.xlane.f32.xlu0 %v2638
    %v2645 = vpop.xlane.xlu0 %2644
    %2646 = vadd.xlane.f32.xlu0 %v2639
    %v2647 = vpop.xlane.xlu0 %2646
    %v2648 = vmul.f32 %v2641, %v1199
    %v2649 = vmul.f32 %v2643, %v1199
    %v2650 = vmul.f32 %v2645, %v1199
    %v2651 = vmul.f32 %v2647, %v1199
    %v2652 = vadd.f32 %v2648, 1e-05
    %v2653 = vadd.f32 %v2649, 1e-05
    %v2654 = vadd.f32 %v2650, 1e-05
    %v2655 = vadd.f32 %v2651, 1e-05
    %v2656 = vrsqrt.pop %v2652
    %v2657 = vmul.f32 %v2656, %v2652
    %v2658 = vmul.f32 %v2657, %v2656
    %v2659 = vmul.f32 0.5, %v2658
    %v2660 = vsub.f32 1.5, %v2659
    %v2661 = vmul.f32 %v2656, %v2660
    %vm2662 = vweird.f32 %v2652
    %vm2663 = vweird.f32 %v2656
    %vm2664 = vmor %vm2662, %vm2663
    %v2665 = vsel %vm2664, %v2656, %v2661
    %v2666 = vrsqrt.pop %v2653
    %v2667 = vmul.f32 %v2666, %v2653
    %v2668 = vmul.f32 %v2667, %v2666
    %v2669 = vmul.f32 0.5, %v2668
    %v2670 = vsub.f32 1.5, %v2669
    %v2671 = vmul.f32 %v2666, %v2670
    %vm2672 = vweird.f32 %v2653
    %vm2673 = vweird.f32 %v2666
    %vm2674 = vmor %vm2672, %vm2673
    %v2675 = vsel %vm2674, %v2666, %v2671
    %v2676 = vrsqrt.pop %v2654
    %v2677 = vmul.f32 %v2676, %v2654
    %v2678 = vmul.f32 %v2677, %v2676
    %v2679 = vmul.f32 0.5, %v2678
    %v2680 = vsub.f32 1.5, %v2679
    %v2681 = vmul.f32 %v2676, %v2680
    %vm2682 = vweird.f32 %v2654
    %vm2683 = vweird.f32 %v2676
    %vm2684 = vmor %vm2682, %vm2683
    %v2685 = vsel %vm2684, %v2676, %v2681
    %v2686 = vrsqrt.pop %v2655
    %v2687 = vmul.f32 %v2686, %v2655
    %v2688 = vmul.f32 %v2687, %v2686
    %v2689 = vmul.f32 0.5, %v2688
    %v2690 = vsub.f32 1.5, %v2689
    %v2691 = vmul.f32 %v2686, %v2690
    %vm2692 = vweird.f32 %v2655
    %vm2693 = vweird.f32 %v2686
    %vm2694 = vmor %vm2692, %vm2693
    %v2695 = vsel %vm2694, %v2686, %v2691
    %v2696 = vmul.f32 %v2632, %v2665
    %v2697 = vmul.f32 %v2633, %v2675
    %v2698 = vmul.f32 %v2634, %v2685
    %v2699 = vmul.f32 %v2635, %v2695
    %v2701 = vperm.slane %v2618, 0
    %v2703 = vmul.f32 %v2696, %v2701
    %v2704 = vmul.f32 %v2697, %v2701
    %v2705 = vmul.f32 %v2698, %v2701
    %v2706 = vmul.f32 %v2699, %v2701
    %v2708 = vperm.slane %v2619, 0
    %v2710 = vadd.f32 %v2703, %v2708
    %v2711 = vadd.f32 %v2704, %v2708
    %v2712 = vadd.f32 %v2705, %v2708
    %v2713 = vadd.f32 %v2706, %v2708
    %v2714 = vpack.c.bf16 %v2711, %v2710
    %v2715 = vpack.c.bf16 %v2713, %v2712
    %s2716 = scalar_lea.vmem %s3, 192
    %v2717 = vld [vmem:[%s2716] sm:$0xff]
    %v2718 = vld [vmem:[%s2716 + $0x8] sm:$0xf]
    %v2719 = vld [vmem:[%s2716 + $0xc] sm:$0xff]
    %v2720 = vld [vmem:[%s2716 + $0x14] sm:$0xf]
    %v2721 = vld [vmem:[%s2716 + $0x18] sm:$0xff]
    %v2722 = vld [vmem:[%s2716 + $0x20] sm:$0xf]
    %v2723 = vld [vmem:[%s2716 + $0x24] sm:$0xff]
    %v2724 = vld [vmem:[%s2716 + $0x2c] sm:$0xf]
    %v2725 = vld [vmem:[%s2716 + $0x30] sm:$0xff]
    %v2726 = vld [vmem:[%s2716 + $0x38] sm:$0xf]
    %v2727 = vld [vmem:[%s2716 + $0x3c] sm:$0xff]
    %v2728 = vld [vmem:[%s2716 + $0x44] sm:$0xf]
    %v2729 = vld [vmem:[%s2716 + $0x48] sm:$0xff]
    %v2730 = vld [vmem:[%s2716 + $0x50] sm:$0xf]
    %v2731 = vld [vmem:[%s2716 + $0x54] sm:$0xff]
    %v2732 = vld [vmem:[%s2716 + $0x5c] sm:$0xf]
    %v2733 = vld [vmem:[%s2716 + $0x60] sm:$0xff]
    %v2734 = vld [vmem:[%s2716 + $0x68] sm:$0xf]
    %v2735 = vld [vmem:[%s2716 + $0x6c] sm:$0xff]
    %v2736 = vld [vmem:[%s2716 + $0x74] sm:$0xf]
    %v2737 = vld [vmem:[%s2716 + $0x78] sm:$0xff]
    %v2738 = vld [vmem:[%s2716 + $0x80] sm:$0xf]
    %v2739 = vld [vmem:[%s2716 + $0x84] sm:$0xff]
    %v2740 = vld [vmem:[%s2716 + $0x8c] sm:$0xf]
    %v2741 = vld [vmem:[%s2716 + $0x90] sm:$0xff]
    %v2742 = vld [vmem:[%s2716 + $0x98] sm:$0xf]
    %v2743 = vld [vmem:[%s2716 + $0x9c] sm:$0xff]
    %v2744 = vld [vmem:[%s2716 + $0xa4] sm:$0xf]
    %v2745 = vld [vmem:[%s2716 + $0xa8] sm:$0xff]
    %v2746 = vld [vmem:[%s2716 + $0xb0] sm:$0xf]
    %v2747 = vld [vmem:[%s2716 + $0xb4] sm:$0xff]
    %v2748 = vld [vmem:[%s2716 + $0xbc] sm:$0xf]
    %s2749 = scalar_lea.vmem %s4, 3
    %v2750 = vld [vmem:[%s2749] sm:$0x7]
    %v2752 = vperm.slane %v2750, 0
    %v2753 = vperm.slane %v2750, 1
    %v2754 = vperm.slane %v2750, 2
    %v2790 = vunpack.c.l.b16 %v2717
    %v2791 = vunpack.c.h.b16 %v2717
    %v2792 = vunpack.c.l.b16 %v2718
    %v2793 = vunpack.c.l.b16 %v2719
    %v2794 = vunpack.c.h.b16 %v2719
    %v2795 = vunpack.c.l.b16 %v2720
    %v2796 = vunpack.c.l.b16 %v2721
    %v2797 = vunpack.c.h.b16 %v2721
    %v2798 = vunpack.c.l.b16 %v2722
    %v2799 = vunpack.c.l.b16 %v2723
    %v2800 = vunpack.c.h.b16 %v2723
    %v2801 = vunpack.c.l.b16 %v2724
    %v2802 = vunpack.c.l.b16 %v2725
    %v2803 = vunpack.c.h.b16 %v2725
    %v2804 = vunpack.c.l.b16 %v2726
    %v2805 = vunpack.c.l.b16 %v2727
    %v2806 = vunpack.c.h.b16 %v2727
    %v2807 = vunpack.c.l.b16 %v2728
    %v2808 = vunpack.c.l.b16 %v2729
    %v2809 = vunpack.c.h.b16 %v2729
    %v2810 = vunpack.c.l.b16 %v2730
    %v2811 = vunpack.c.l.b16 %v2731
    %v2812 = vunpack.c.h.b16 %v2731
    %v2813 = vunpack.c.l.b16 %v2732
    %v2814 = vunpack.c.l.b16 %v2733
    %v2815 = vunpack.c.h.b16 %v2733
    %v2816 = vunpack.c.l.b16 %v2734
    %v2817 = vunpack.c.l.b16 %v2735
    %v2818 = vunpack.c.h.b16 %v2735
    %v2819 = vunpack.c.l.b16 %v2736
    %v2820 = vunpack.c.l.b16 %v2737
    %v2821 = vunpack.c.h.b16 %v2737
    %v2822 = vunpack.c.l.b16 %v2738
    %v2823 = vunpack.c.l.b16 %v2739
    %v2824 = vunpack.c.h.b16 %v2739
    %v2825 = vunpack.c.l.b16 %v2740
    %v2826 = vunpack.c.l.b16 %v2741
    %v2827 = vunpack.c.h.b16 %v2741
    %v2828 = vunpack.c.l.b16 %v2742
    %v2829 = vunpack.c.l.b16 %v2743
    %v2830 = vunpack.c.h.b16 %v2743
    %v2831 = vunpack.c.l.b16 %v2744
    %v2832 = vunpack.c.l.b16 %v2745
    %v2833 = vunpack.c.h.b16 %v2745
    %v2834 = vunpack.c.l.b16 %v2746
    %v2835 = vunpack.c.l.b16 %v2747
    %v2836 = vunpack.c.h.b16 %v2747
    %v2837 = vunpack.c.l.b16 %v2748
    %v2838 = vpack.c.b16 %v2793, %v2790
    %v2839 = vpack.c.b16 %v2794, %v2791
    %v2840 = vpack.c.b16 %v2795, %v2792
    %v2841 = vpack.c.b16 %v2799, %v2796
    %v2842 = vpack.c.b16 %v2800, %v2797
    %v2843 = vpack.c.b16 %v2801, %v2798
    %v2844 = vpack.c.b16 %v2805, %v2802
    %v2845 = vpack.c.b16 %v2806, %v2803
    %v2846 = vpack.c.b16 %v2807, %v2804
    %v2847 = vpack.c.b16 %v2811, %v2808
    %v2848 = vpack.c.b16 %v2812, %v2809
    %v2849 = vpack.c.b16 %v2813, %v2810
    %v2850 = vpack.c.b16 %v2817, %v2814
    %v2851 = vpack.c.b16 %v2818, %v2815
    %v2852 = vpack.c.b16 %v2819, %v2816
    %v2853 = vpack.c.b16 %v2823, %v2820
    %v2854 = vpack.c.b16 %v2824, %v2821
    %v2855 = vpack.c.b16 %v2825, %v2822
    %v2856 = vpack.c.b16 %v2829, %v2826
    %v2857 = vpack.c.b16 %v2830, %v2827
    %v2858 = vpack.c.b16 %v2831, %v2828
    %v2859 = vpack.c.b16 %v2835, %v2832
    %v2860 = vpack.c.b16 %v2836, %v2833
    %v2861 = vpack.c.b16 %v2837, %v2834
    %2886 = vmatpush.bf16.msra.mxu0 %v2859
    %2887 = vmatpush.bf16.msra.mxu0 %v2856
    %2888 = vmatpush.bf16.msra.mxu0 %v2853
    %2889 = vmatpush.bf16.msra.mxu0 %v2850
    %2890 = vmatpush.bf16.msra.mxu0 %v2847
    %2891 = vmatpush.bf16.msra.mxu0 %v2844
    %2892 = vmatpush.bf16.msra.mxu0 %v2841
    %2893 = vmatpush.bf16.msra.mxu0 %v2838
    %2894 = vmatmul.bf16.gmra.mxu0 %v2714
    %v2895 = vpop.f32.mrf.mxu0
    %v2896 = vadd.f32 %v2752, %v2895
    %v2897 = vpop.f32.mrf.mxu0
    %v2898 = vadd.f32 %v2752, %v2897
    %2899 = vmatmul.bf16.gmra.mxu0 %v2715
    %v2900 = vpop.f32.mrf.mxu0
    %v2901 = vadd.f32 %v2752, %v2900
    %v2902 = vpop.f32.mrf.mxu0
    %v2903 = vadd.f32 %v2752, %v2902
    %2904 = vdwg.mxu0
    %2905 = vmatpush.bf16.msra.mxu0 %v2860
    %2906 = vmatpush.bf16.msra.mxu0 %v2857
    %2907 = vmatpush.bf16.msra.mxu0 %v2854
    %2908 = vmatpush.bf16.msra.mxu0 %v2851
    %2909 = vmatpush.bf16.msra.mxu0 %v2848
    %2910 = vmatpush.bf16.msra.mxu0 %v2845
    %2911 = vmatpush.bf16.msra.mxu0 %v2842
    %2912 = vmatpush.bf16.msra.mxu0 %v2839
    %2913 = vmatmul.bf16.gmra.mxu0 %v2714
    %v2914 = vpop.f32.mrf.mxu0
    %v2915 = vadd.f32 %v2753, %v2914
    %v2916 = vpop.f32.mrf.mxu0
    %v2917 = vadd.f32 %v2753, %v2916
    %2918 = vmatmul.bf16.gmra.mxu0 %v2715
    %v2919 = vpop.f32.mrf.mxu0
    %v2920 = vadd.f32 %v2753, %v2919
    %v2921 = vpop.f32.mrf.mxu0
    %v2922 = vadd.f32 %v2753, %v2921
    %2923 = vdwg.mxu0
    %2924 = vmatpush.bf16.msra.mxu0 %v2861
    %2925 = vmatpush.bf16.msra.mxu0 %v2858
    %2926 = vmatpush.bf16.msra.mxu0 %v2855
    %2927 = vmatpush.bf16.msra.mxu0 %v2852
    %2928 = vmatpush.bf16.msra.mxu0 %v2849
    %2929 = vmatpush.bf16.msra.mxu0 %v2846
    %2930 = vmatpush.bf16.msra.mxu0 %v2843
    %2931 = vmatpush.bf16.msra.mxu0 %v2840
    %2932 = vmatmul.bf16.gmra.mxu0 %v2714
    %v2933 = vpop.f32.mrf.mxu0
    %v2934 = vadd.f32 %v2754, %v2933
    %v2935 = vpop.f32.mrf.mxu0
    %v2936 = vadd.f32 %v2754, %v2935
    %2937 = vmatmul.bf16.gmra.mxu0 %v2715
    %v2938 = vpop.f32.mrf.mxu0
    %v2939 = vadd.f32 %v2754, %v2938
    %v2940 = vpop.f32.mrf.mxu0
    %v2941 = vadd.f32 %v2754, %v2940
    %2942 = vdwg.mxu0
    %v2943 = vpack.c.bf16 %v2896, %v2896
    %v2944 = vpack.c.bf16 %v2898, %v2898
    %v2945 = vpack.c.bf16 %v2901, %v2901
    %v2946 = vpack.c.bf16 %v2903, %v2903
    %v2947 = vpack.c.bf16 %v2915, %v2915
    %v2948 = vpack.c.bf16 %v2917, %v2917
    %v2949 = vpack.c.bf16 %v2920, %v2920
    %v2950 = vpack.c.bf16 %v2922, %v2922
    %v2951 = vpack.c.bf16 %v2934, %v2934
    %v2952 = vpack.c.bf16 %v2936, %v2936
    %v2953 = vpack.c.bf16 %v2939, %v2939
    %v2954 = vpack.c.bf16 %v2941, %v2941
    %v2957 = vunpack.c.l.b16 %v2943
    %v2958 = vunpack.c.l.b16 %v2944
    %v2959 = vpack.c.b16 %v2958, %v2957
    %v2962 = vunpack.c.l.b16 %v2947
    %v2963 = vunpack.c.l.b16 %v2948
    %v2964 = vpack.c.b16 %v2963, %v2962
    %v2966 = vsel %vm434, %v2959, 0
    %v2969 = vsel %vm434, %v2964, 0
    %2971 = vmatpush.bf16.xpose.msra.mxu0 0
    %2972 = vmatpush.bf16.xpose.msra.mxu0 0
    %2973 = vmatpush.bf16.xpose.msra.mxu0 0
    %2974 = vmatpush.bf16.xpose.msra.mxu0 0
    %2975 = vmatpush.bf16.xpose.msra.mxu0 0
    %2976 = vmatpush.bf16.xpose.msra.mxu0 0
    %2977 = vmatpush.bf16.xpose.msra.mxu0 0
    %2978 = vmatpush.bf16.xpose.msra.mxu0 %v2969
    %2979 = vmatmul.bf16.gmra.mxu0 %v2966
    %v2980 = vpop.f32.mrf.mxu0
    %v2981 = vadd.f32 0.0, %v2980
    %v2982 = vpop.f32.mrf.mxu0
    %v2983 = vadd.f32 0.0, %v2982
    %2984 = vdwg.mxu0
    %v2987 = vunpack.c.l.b16 %v2945
    %v2988 = vunpack.c.l.b16 %v2946
    %v2989 = vpack.c.b16 %v2988, %v2987
    %v2992 = vunpack.c.l.b16 %v2949
    %v2993 = vunpack.c.l.b16 %v2950
    %v2994 = vpack.c.b16 %v2993, %v2992
    %v2996 = vsel %vm434, %v2989, 0
    %v2999 = vsel %vm434, %v2994, 0
    %3001 = vmatpush.bf16.xpose.msra.mxu0 0
    %3002 = vmatpush.bf16.xpose.msra.mxu0 0
    %3003 = vmatpush.bf16.xpose.msra.mxu0 0
    %3004 = vmatpush.bf16.xpose.msra.mxu0 0
    %3005 = vmatpush.bf16.xpose.msra.mxu0 0
    %3006 = vmatpush.bf16.xpose.msra.mxu0 0
    %3007 = vmatpush.bf16.xpose.msra.mxu0 0
    %3008 = vmatpush.bf16.xpose.msra.mxu0 %v2999
    %3009 = vmatmul.bf16.gmra.mxu0 %v2996
    %v3010 = vpop.f32.mrf.mxu0
    %v3011 = vadd.f32 0.0, %v3010
    %v3012 = vpop.f32.mrf.mxu0
    %v3013 = vadd.f32 0.0, %v3012
    %3014 = vdwg.mxu0
    %v3015 = vsel %vm485, %v2981, -inf
    %3016 = vmax.xlane.f32.xlu0 %v3015
    %v3017 = vpop.xlane.xlu0 %3016
    %v3018 = vsel %vm485, %v2983, -inf
    %3019 = vmax.xlane.f32.xlu0 %v3018
    %v3020 = vpop.xlane.xlu0 %3019
    %v3021 = vsel %vm485, %v3011, -inf
    %3022 = vmax.xlane.f32.xlu0 %v3021
    %v3023 = vpop.xlane.xlu0 %3022
    %v3024 = vsel %vm485, %v3013, -inf
    %3025 = vmax.xlane.f32.xlu0 %v3024
    %v3026 = vpop.xlane.xlu0 %3025
    %v3027 = vsub.f32 %v2981, %v3017
    %v3028 = vsub.f32 %v2983, %v3020
    %v3029 = vsub.f32 %v3011, %v3023
    %v3030 = vsub.f32 %v3013, %v3026
    %v3031 = vmul.f32 %v3027, 1.442695
    %v3032 = vpow.pop %v3031
    %v3033 = vmul.f32 %v3028, 1.442695
    %v3034 = vpow.pop %v3033
    %v3035 = vmul.f32 %v3029, 1.442695
    %v3036 = vpow.pop %v3035
    %v3037 = vmul.f32 %v3030, 1.442695
    %v3038 = vpow.pop %v3037
    %v3039 = vsel %vm485, %v3032, 0.0
    %3040 = vadd.xlane.f32.xlu0 %v3039
    %v3041 = vpop.xlane.xlu0 %3040
    %v3042 = vsel %vm485, %v3034, 0.0
    %3043 = vadd.xlane.f32.xlu0 %v3042
    %v3044 = vpop.xlane.xlu0 %3043
    %v3045 = vsel %vm485, %v3036, 0.0
    %3046 = vadd.xlane.f32.xlu0 %v3045
    %v3047 = vpop.xlane.xlu0 %3046
    %v3048 = vsel %vm485, %v3038, 0.0
    %3049 = vadd.xlane.f32.xlu0 %v3048
    %v3050 = vpop.xlane.xlu0 %3049
    %v3051 = vrcp.pop %v3041
    %v3052 = vrcp.pop %v3044
    %v3053 = vrcp.pop %v3047
    %v3054 = vrcp.pop %v3050
    %v3055 = vmul.f32 %v3032, %v3051
    %v3056 = vmul.f32 %v3034, %v3052
    %v3057 = vmul.f32 %v3036, %v3053
    %v3058 = vmul.f32 %v3038, %v3054
    %v3059 = vpack.c.bf16 %v3055, %v3055
    %v3060 = vpack.c.bf16 %v3056, %v3056
    %v3061 = vpack.c.bf16 %v3057, %v3057
    %v3062 = vpack.c.bf16 %v3058, %v3058
    %v3065 = vunpack.c.l.b16 %v3059
    %v3066 = vunpack.c.l.b16 %v3060
    %v3067 = vpack.c.b16 %v3066, %v3065
    %v3070 = vunpack.c.l.b16 %v2951
    %v3071 = vunpack.c.l.b16 %v2952
    %v3072 = vpack.c.b16 %v3071, %v3070
    %v3075 = vsel %vm485, %v3067, 0
    %3077 = vmatpush.bf16.msra.mxu0 0
    %3078 = vmatpush.bf16.msra.mxu0 0
    %3079 = vmatpush.bf16.msra.mxu0 0
    %3080 = vmatpush.bf16.msra.mxu0 0
    %3081 = vmatpush.bf16.msra.mxu0 0
    %3082 = vmatpush.bf16.msra.mxu0 0
    %3083 = vmatpush.bf16.msra.mxu0 0
    %3084 = vmatpush.bf16.msra.mxu0 %v3072
    %3085 = vmatmul.bf16.gmra.mxu0 %v3075
    %v3086 = vpop.f32.mrf.mxu0
    %v3087 = vadd.f32 0.0, %v3086
    %v3088 = vpop.f32.mrf.mxu0
    %v3089 = vadd.f32 0.0, %v3088
    %3090 = vdwg.mxu0
    %v3093 = vunpack.c.l.b16 %v3061
    %v3094 = vunpack.c.l.b16 %v3062
    %v3095 = vpack.c.b16 %v3094, %v3093
    %v3098 = vunpack.c.l.b16 %v2953
    %v3099 = vunpack.c.l.b16 %v2954
    %v3100 = vpack.c.b16 %v3099, %v3098
    %v3103 = vsel %vm485, %v3095, 0
    %3105 = vmatpush.bf16.msra.mxu0 0
    %3106 = vmatpush.bf16.msra.mxu0 0
    %3107 = vmatpush.bf16.msra.mxu0 0
    %3108 = vmatpush.bf16.msra.mxu0 0
    %3109 = vmatpush.bf16.msra.mxu0 0
    %3110 = vmatpush.bf16.msra.mxu0 0
    %3111 = vmatpush.bf16.msra.mxu0 0
    %3112 = vmatpush.bf16.msra.mxu0 %v3100
    %3113 = vmatmul.bf16.gmra.mxu0 %v3103
    %v3114 = vpop.f32.mrf.mxu0
    %v3115 = vadd.f32 0.0, %v3114
    %v3116 = vpop.f32.mrf.mxu0
    %v3117 = vadd.f32 0.0, %v3116
    %3118 = vdwg.mxu0
    %3119 = vrot.lane.b32.xlu0 %v2959, 96
    %v3120 = vpop.permute.xlu0 %3119
    %3121 = vrot.lane.b32.xlu0 %v2964, 96
    %v3122 = vpop.permute.xlu0 %3121
    %v3124 = vsel %vm434, %v3120, 0
    %v3127 = vsel %vm434, %v3122, 0
    %3129 = vmatpush.bf16.xpose.msra.mxu0 0
    %3130 = vmatpush.bf16.xpose.msra.mxu0 0
    %3131 = vmatpush.bf16.xpose.msra.mxu0 0
    %3132 = vmatpush.bf16.xpose.msra.mxu0 0
    %3133 = vmatpush.bf16.xpose.msra.mxu0 0
    %3134 = vmatpush.bf16.xpose.msra.mxu0 0
    %3135 = vmatpush.bf16.xpose.msra.mxu0 0
    %3136 = vmatpush.bf16.xpose.msra.mxu0 %v3127
    %3137 = vmatmul.bf16.gmra.mxu0 %v3124
    %v3138 = vpop.f32.mrf.mxu0
    %v3139 = vadd.f32 0.0, %v3138
    %v3140 = vpop.f32.mrf.mxu0
    %v3141 = vadd.f32 0.0, %v3140
    %3142 = vdwg.mxu0
    %3143 = vrot.lane.b32.xlu0 %v2989, 96
    %v3144 = vpop.permute.xlu0 %3143
    %3145 = vrot.lane.b32.xlu0 %v2994, 96
    %v3146 = vpop.permute.xlu0 %3145
    %v3148 = vsel %vm434, %v3144, 0
    %v3151 = vsel %vm434, %v3146, 0
    %3153 = vmatpush.bf16.xpose.msra.mxu0 0
    %3154 = vmatpush.bf16.xpose.msra.mxu0 0
    %3155 = vmatpush.bf16.xpose.msra.mxu0 0
    %3156 = vmatpush.bf16.xpose.msra.mxu0 0
    %3157 = vmatpush.bf16.xpose.msra.mxu0 0
    %3158 = vmatpush.bf16.xpose.msra.mxu0 0
    %3159 = vmatpush.bf16.xpose.msra.mxu0 0
    %3160 = vmatpush.bf16.xpose.msra.mxu0 %v3151
    %3161 = vmatmul.bf16.gmra.mxu0 %v3148
    %v3162 = vpop.f32.mrf.mxu0
    %v3163 = vadd.f32 0.0, %v3162
    %v3164 = vpop.f32.mrf.mxu0
    %v3165 = vadd.f32 0.0, %v3164
    %3166 = vdwg.mxu0
    %v3167 = vsel %vm485, %v3139, -inf
    %3168 = vmax.xlane.f32.xlu0 %v3167
    %v3169 = vpop.xlane.xlu0 %3168
    %v3170 = vsel %vm485, %v3141, -inf
    %3171 = vmax.xlane.f32.xlu0 %v3170
    %v3172 = vpop.xlane.xlu0 %3171
    %v3173 = vsel %vm485, %v3163, -inf
    %3174 = vmax.xlane.f32.xlu0 %v3173
    %v3175 = vpop.xlane.xlu0 %3174
    %v3176 = vsel %vm485, %v3165, -inf
    %3177 = vmax.xlane.f32.xlu0 %v3176
    %v3178 = vpop.xlane.xlu0 %3177
    %v3179 = vsub.f32 %v3139, %v3169
    %v3180 = vsub.f32 %v3141, %v3172
    %v3181 = vsub.f32 %v3163, %v3175
    %v3182 = vsub.f32 %v3165, %v3178
    %v3183 = vmul.f32 %v3179, 1.442695
    %v3184 = vpow.pop %v3183
    %v3185 = vmul.f32 %v3180, 1.442695
    %v3186 = vpow.pop %v3185
    %v3187 = vmul.f32 %v3181, 1.442695
    %v3188 = vpow.pop %v3187
    %v3189 = vmul.f32 %v3182, 1.442695
    %v3190 = vpow.pop %v3189
    %v3191 = vsel %vm485, %v3184, 0.0
    %3192 = vadd.xlane.f32.xlu0 %v3191
    %v3193 = vpop.xlane.xlu0 %3192
    %v3194 = vsel %vm485, %v3186, 0.0
    %3195 = vadd.xlane.f32.xlu0 %v3194
    %v3196 = vpop.xlane.xlu0 %3195
    %v3197 = vsel %vm485, %v3188, 0.0
    %3198 = vadd.xlane.f32.xlu0 %v3197
    %v3199 = vpop.xlane.xlu0 %3198
    %v3200 = vsel %vm485, %v3190, 0.0
    %3201 = vadd.xlane.f32.xlu0 %v3200
    %v3202 = vpop.xlane.xlu0 %3201
    %v3203 = vrcp.pop %v3193
    %v3204 = vrcp.pop %v3196
    %v3205 = vrcp.pop %v3199
    %v3206 = vrcp.pop %v3202
    %v3207 = vmul.f32 %v3184, %v3203
    %v3208 = vmul.f32 %v3186, %v3204
    %v3209 = vmul.f32 %v3188, %v3205
    %v3210 = vmul.f32 %v3190, %v3206
    %v3211 = vpack.c.bf16 %v3207, %v3207
    %v3212 = vpack.c.bf16 %v3208, %v3208
    %v3213 = vpack.c.bf16 %v3209, %v3209
    %v3214 = vpack.c.bf16 %v3210, %v3210
    %v3217 = vunpack.c.l.b16 %v3211
    %v3218 = vunpack.c.l.b16 %v3212
    %v3219 = vpack.c.b16 %v3218, %v3217
    %3220 = vrot.lane.b32.xlu0 %v3072, 96
    %v3221 = vpop.permute.xlu0 %3220
    %v3224 = vsel %vm485, %v3219, 0
    %3226 = vmatpush.bf16.msra.mxu0 0
    %3227 = vmatpush.bf16.msra.mxu0 0
    %3228 = vmatpush.bf16.msra.mxu0 0
    %3229 = vmatpush.bf16.msra.mxu0 0
    %3230 = vmatpush.bf16.msra.mxu0 0
    %3231 = vmatpush.bf16.msra.mxu0 0
    %3232 = vmatpush.bf16.msra.mxu0 0
    %3233 = vmatpush.bf16.msra.mxu0 %v3221
    %3234 = vmatmul.bf16.gmra.mxu0 %v3224
    %v3235 = vpop.f32.mrf.mxu0
    %v3236 = vadd.f32 0.0, %v3235
    %v3237 = vpop.f32.mrf.mxu0
    %v3238 = vadd.f32 0.0, %v3237
    %3239 = vdwg.mxu0
    %v3242 = vunpack.c.l.b16 %v3213
    %v3243 = vunpack.c.l.b16 %v3214
    %v3244 = vpack.c.b16 %v3243, %v3242
    %3245 = vrot.lane.b32.xlu0 %v3100, 96
    %v3246 = vpop.permute.xlu0 %3245
    %v3249 = vsel %vm485, %v3244, 0
    %3251 = vmatpush.bf16.msra.mxu0 0
    %3252 = vmatpush.bf16.msra.mxu0 0
    %3253 = vmatpush.bf16.msra.mxu0 0
    %3254 = vmatpush.bf16.msra.mxu0 0
    %3255 = vmatpush.bf16.msra.mxu0 0
    %3256 = vmatpush.bf16.msra.mxu0 0
    %3257 = vmatpush.bf16.msra.mxu0 0
    %3258 = vmatpush.bf16.msra.mxu0 %v3246
    %3259 = vmatmul.bf16.gmra.mxu0 %v3249
    %v3260 = vpop.f32.mrf.mxu0
    %v3261 = vadd.f32 0.0, %v3260
    %v3262 = vpop.f32.mrf.mxu0
    %v3263 = vadd.f32 0.0, %v3262
    %3264 = vdwg.mxu0
    %3265 = vrot.lane.b32.xlu0 %v2959, 64
    %v3266 = vpop.permute.xlu0 %3265
    %3267 = vrot.lane.b32.xlu0 %v2964, 64
    %v3268 = vpop.permute.xlu0 %3267
    %v3270 = vsel %vm434, %v3266, 0
    %v3273 = vsel %vm434, %v3268, 0
    %3275 = vmatpush.bf16.xpose.msra.mxu0 0
    %3276 = vmatpush.bf16.xpose.msra.mxu0 0
    %3277 = vmatpush.bf16.xpose.msra.mxu0 0
    %3278 = vmatpush.bf16.xpose.msra.mxu0 0
    %3279 = vmatpush.bf16.xpose.msra.mxu0 0
    %3280 = vmatpush.bf16.xpose.msra.mxu0 0
    %3281 = vmatpush.bf16.xpose.msra.mxu0 0
    %3282 = vmatpush.bf16.xpose.msra.mxu0 %v3273
    %3283 = vmatmul.bf16.gmra.mxu0 %v3270
    %v3284 = vpop.f32.mrf.mxu0
    %v3285 = vadd.f32 0.0, %v3284
    %v3286 = vpop.f32.mrf.mxu0
    %v3287 = vadd.f32 0.0, %v3286
    %3288 = vdwg.mxu0
    %3289 = vrot.lane.b32.xlu0 %v2989, 64
    %v3290 = vpop.permute.xlu0 %3289
    %3291 = vrot.lane.b32.xlu0 %v2994, 64
    %v3292 = vpop.permute.xlu0 %3291
    %v3294 = vsel %vm434, %v3290, 0
    %v3297 = vsel %vm434, %v3292, 0
    %3299 = vmatpush.bf16.xpose.msra.mxu0 0
    %3300 = vmatpush.bf16.xpose.msra.mxu0 0
    %3301 = vmatpush.bf16.xpose.msra.mxu0 0
    %3302 = vmatpush.bf16.xpose.msra.mxu0 0
    %3303 = vmatpush.bf16.xpose.msra.mxu0 0
    %3304 = vmatpush.bf16.xpose.msra.mxu0 0
    %3305 = vmatpush.bf16.xpose.msra.mxu0 0
    %3306 = vmatpush.bf16.xpose.msra.mxu0 %v3297
    %3307 = vmatmul.bf16.gmra.mxu0 %v3294
    %v3308 = vpop.f32.mrf.mxu0
    %v3309 = vadd.f32 0.0, %v3308
    %v3310 = vpop.f32.mrf.mxu0
    %v3311 = vadd.f32 0.0, %v3310
    %3312 = vdwg.mxu0
    %v3313 = vsel %vm485, %v3285, -inf
    %3314 = vmax.xlane.f32.xlu0 %v3313
    %v3315 = vpop.xlane.xlu0 %3314
    %v3316 = vsel %vm485, %v3287, -inf
    %3317 = vmax.xlane.f32.xlu0 %v3316
    %v3318 = vpop.xlane.xlu0 %3317
    %v3319 = vsel %vm485, %v3309, -inf
    %3320 = vmax.xlane.f32.xlu0 %v3319
    %v3321 = vpop.xlane.xlu0 %3320
    %v3322 = vsel %vm485, %v3311, -inf
    %3323 = vmax.xlane.f32.xlu0 %v3322
    %v3324 = vpop.xlane.xlu0 %3323
    %v3325 = vsub.f32 %v3285, %v3315
    %v3326 = vsub.f32 %v3287, %v3318
    %v3327 = vsub.f32 %v3309, %v3321
    %v3328 = vsub.f32 %v3311, %v3324
    %v3329 = vmul.f32 %v3325, 1.442695
    %v3330 = vpow.pop %v3329
    %v3331 = vmul.f32 %v3326, 1.442695
    %v3332 = vpow.pop %v3331
    %v3333 = vmul.f32 %v3327, 1.442695
    %v3334 = vpow.pop %v3333
    %v3335 = vmul.f32 %v3328, 1.442695
    %v3336 = vpow.pop %v3335
    %v3337 = vsel %vm485, %v3330, 0.0
    %3338 = vadd.xlane.f32.xlu0 %v3337
    %v3339 = vpop.xlane.xlu0 %3338
    %v3340 = vsel %vm485, %v3332, 0.0
    %3341 = vadd.xlane.f32.xlu0 %v3340
    %v3342 = vpop.xlane.xlu0 %3341
    %v3343 = vsel %vm485, %v3334, 0.0
    %3344 = vadd.xlane.f32.xlu0 %v3343
    %v3345 = vpop.xlane.xlu0 %3344
    %v3346 = vsel %vm485, %v3336, 0.0
    %3347 = vadd.xlane.f32.xlu0 %v3346
    %v3348 = vpop.xlane.xlu0 %3347
    %v3349 = vrcp.pop %v3339
    %v3350 = vrcp.pop %v3342
    %v3351 = vrcp.pop %v3345
    %v3352 = vrcp.pop %v3348
    %v3353 = vmul.f32 %v3330, %v3349
    %v3354 = vmul.f32 %v3332, %v3350
    %v3355 = vmul.f32 %v3334, %v3351
    %v3356 = vmul.f32 %v3336, %v3352
    %v3357 = vpack.c.bf16 %v3353, %v3353
    %v3358 = vpack.c.bf16 %v3354, %v3354
    %v3359 = vpack.c.bf16 %v3355, %v3355
    %v3360 = vpack.c.bf16 %v3356, %v3356
    %v3363 = vunpack.c.l.b16 %v3357
    %v3364 = vunpack.c.l.b16 %v3358
    %v3365 = vpack.c.b16 %v3364, %v3363
    %3366 = vrot.lane.b32.xlu0 %v3072, 64
    %v3367 = vpop.permute.xlu0 %3366
    %v3370 = vsel %vm485, %v3365, 0
    %3372 = vmatpush.bf16.msra.mxu0 0
    %3373 = vmatpush.bf16.msra.mxu0 0
    %3374 = vmatpush.bf16.msra.mxu0 0
    %3375 = vmatpush.bf16.msra.mxu0 0
    %3376 = vmatpush.bf16.msra.mxu0 0
    %3377 = vmatpush.bf16.msra.mxu0 0
    %3378 = vmatpush.bf16.msra.mxu0 0
    %3379 = vmatpush.bf16.msra.mxu0 %v3367
    %3380 = vmatmul.bf16.gmra.mxu0 %v3370
    %v3381 = vpop.f32.mrf.mxu0
    %v3382 = vadd.f32 0.0, %v3381
    %v3383 = vpop.f32.mrf.mxu0
    %v3384 = vadd.f32 0.0, %v3383
    %3385 = vdwg.mxu0
    %v3388 = vunpack.c.l.b16 %v3359
    %v3389 = vunpack.c.l.b16 %v3360
    %v3390 = vpack.c.b16 %v3389, %v3388
    %3391 = vrot.lane.b32.xlu0 %v3100, 64
    %v3392 = vpop.permute.xlu0 %3391
    %v3395 = vsel %vm485, %v3390, 0
    %3397 = vmatpush.bf16.msra.mxu0 0
    %3398 = vmatpush.bf16.msra.mxu0 0
    %3399 = vmatpush.bf16.msra.mxu0 0
    %3400 = vmatpush.bf16.msra.mxu0 0
    %3401 = vmatpush.bf16.msra.mxu0 0
    %3402 = vmatpush.bf16.msra.mxu0 0
    %3403 = vmatpush.bf16.msra.mxu0 0
    %3404 = vmatpush.bf16.msra.mxu0 %v3392
    %3405 = vmatmul.bf16.gmra.mxu0 %v3395
    %v3406 = vpop.f32.mrf.mxu0
    %v3407 = vadd.f32 0.0, %v3406
    %v3408 = vpop.f32.mrf.mxu0
    %v3409 = vadd.f32 0.0, %v3408
    %3410 = vdwg.mxu0
    %3411 = vrot.lane.b32.xlu0 %v2959, 32
    %v3412 = vpop.permute.xlu0 %3411
    %3413 = vrot.lane.b32.xlu0 %v2964, 32
    %v3414 = vpop.permute.xlu0 %3413
    %v3416 = vsel %vm434, %v3412, 0
    %v3419 = vsel %vm434, %v3414, 0
    %3421 = vmatpush.bf16.xpose.msra.mxu0 0
    %3422 = vmatpush.bf16.xpose.msra.mxu0 0
    %3423 = vmatpush.bf16.xpose.msra.mxu0 0
    %3424 = vmatpush.bf16.xpose.msra.mxu0 0
    %3425 = vmatpush.bf16.xpose.msra.mxu0 0
    %3426 = vmatpush.bf16.xpose.msra.mxu0 0
    %3427 = vmatpush.bf16.xpose.msra.mxu0 0
    %3428 = vmatpush.bf16.xpose.msra.mxu0 %v3419
    %3429 = vmatmul.bf16.gmra.mxu0 %v3416
    %v3430 = vpop.f32.mrf.mxu0
    %v3431 = vadd.f32 0.0, %v3430
    %v3432 = vpop.f32.mrf.mxu0
    %v3433 = vadd.f32 0.0, %v3432
    %3434 = vdwg.mxu0
    %3435 = vrot.lane.b32.xlu0 %v2989, 32
    %v3436 = vpop.permute.xlu0 %3435
    %3437 = vrot.lane.b32.xlu0 %v2994, 32
    %v3438 = vpop.permute.xlu0 %3437
    %v3440 = vsel %vm434, %v3436, 0
    %v3443 = vsel %vm434, %v3438, 0
    %3445 = vmatpush.bf16.xpose.msra.mxu0 0
    %3446 = vmatpush.bf16.xpose.msra.mxu0 0
    %3447 = vmatpush.bf16.xpose.msra.mxu0 0
    %3448 = vmatpush.bf16.xpose.msra.mxu0 0
    %3449 = vmatpush.bf16.xpose.msra.mxu0 0
    %3450 = vmatpush.bf16.xpose.msra.mxu0 0
    %3451 = vmatpush.bf16.xpose.msra.mxu0 0
    %3452 = vmatpush.bf16.xpose.msra.mxu0 %v3443
    %3453 = vmatmul.bf16.gmra.mxu0 %v3440
    %v3454 = vpop.f32.mrf.mxu0
    %v3455 = vadd.f32 0.0, %v3454
    %v3456 = vpop.f32.mrf.mxu0
    %v3457 = vadd.f32 0.0, %v3456
    %3458 = vdwg.mxu0
    %v3459 = vsel %vm485, %v3431, -inf
    %3460 = vmax.xlane.f32.xlu0 %v3459
    %v3461 = vpop.xlane.xlu0 %3460
    %v3462 = vsel %vm485, %v3433, -inf
    %3463 = vmax.xlane.f32.xlu0 %v3462
    %v3464 = vpop.xlane.xlu0 %3463
    %v3465 = vsel %vm485, %v3455, -inf
    %3466 = vmax.xlane.f32.xlu0 %v3465
    %v3467 = vpop.xlane.xlu0 %3466
    %v3468 = vsel %vm485, %v3457, -inf
    %3469 = vmax.xlane.f32.xlu0 %v3468
    %v3470 = vpop.xlane.xlu0 %3469
    %v3471 = vsub.f32 %v3431, %v3461
    %v3472 = vsub.f32 %v3433, %v3464
    %v3473 = vsub.f32 %v3455, %v3467
    %v3474 = vsub.f32 %v3457, %v3470
    %v3475 = vmul.f32 %v3471, 1.442695
    %v3476 = vpow.pop %v3475
    %v3477 = vmul.f32 %v3472, 1.442695
    %v3478 = vpow.pop %v3477
    %v3479 = vmul.f32 %v3473, 1.442695
    %v3480 = vpow.pop %v3479
    %v3481 = vmul.f32 %v3474, 1.442695
    %v3482 = vpow.pop %v3481
    %v3483 = vsel %vm485, %v3476, 0.0
    %3484 = vadd.xlane.f32.xlu0 %v3483
    %v3485 = vpop.xlane.xlu0 %3484
    %v3486 = vsel %vm485, %v3478, 0.0
    %3487 = vadd.xlane.f32.xlu0 %v3486
    %v3488 = vpop.xlane.xlu0 %3487
    %v3489 = vsel %vm485, %v3480, 0.0
    %3490 = vadd.xlane.f32.xlu0 %v3489
    %v3491 = vpop.xlane.xlu0 %3490
    %v3492 = vsel %vm485, %v3482, 0.0
    %3493 = vadd.xlane.f32.xlu0 %v3492
    %v3494 = vpop.xlane.xlu0 %3493
    %v3495 = vrcp.pop %v3485
    %v3496 = vrcp.pop %v3488
    %v3497 = vrcp.pop %v3491
    %v3498 = vrcp.pop %v3494
    %v3499 = vmul.f32 %v3476, %v3495
    %v3500 = vmul.f32 %v3478, %v3496
    %v3501 = vmul.f32 %v3480, %v3497
    %v3502 = vmul.f32 %v3482, %v3498
    %v3503 = vpack.c.bf16 %v3499, %v3499
    %v3504 = vpack.c.bf16 %v3500, %v3500
    %v3505 = vpack.c.bf16 %v3501, %v3501
    %v3506 = vpack.c.bf16 %v3502, %v3502
    %v3509 = vunpack.c.l.b16 %v3503
    %v3510 = vunpack.c.l.b16 %v3504
    %v3511 = vpack.c.b16 %v3510, %v3509
    %3512 = vrot.lane.b32.xlu0 %v3072, 32
    %v3513 = vpop.permute.xlu0 %3512
    %v3516 = vsel %vm485, %v3511, 0
    %3518 = vmatpush.bf16.msra.mxu0 0
    %3519 = vmatpush.bf16.msra.mxu0 0
    %3520 = vmatpush.bf16.msra.mxu0 0
    %3521 = vmatpush.bf16.msra.mxu0 0
    %3522 = vmatpush.bf16.msra.mxu0 0
    %3523 = vmatpush.bf16.msra.mxu0 0
    %3524 = vmatpush.bf16.msra.mxu0 0
    %3525 = vmatpush.bf16.msra.mxu0 %v3513
    %3526 = vmatmul.bf16.gmra.mxu0 %v3516
    %v3527 = vpop.f32.mrf.mxu0
    %v3528 = vadd.f32 0.0, %v3527
    %v3529 = vpop.f32.mrf.mxu0
    %v3530 = vadd.f32 0.0, %v3529
    %3531 = vdwg.mxu0
    %v3534 = vunpack.c.l.b16 %v3505
    %v3535 = vunpack.c.l.b16 %v3506
    %v3536 = vpack.c.b16 %v3535, %v3534
    %3537 = vrot.lane.b32.xlu0 %v3100, 32
    %v3538 = vpop.permute.xlu0 %3537
    %v3541 = vsel %vm485, %v3536, 0
    %3543 = vmatpush.bf16.msra.mxu0 0
    %3544 = vmatpush.bf16.msra.mxu0 0
    %3545 = vmatpush.bf16.msra.mxu0 0
    %3546 = vmatpush.bf16.msra.mxu0 0
    %3547 = vmatpush.bf16.msra.mxu0 0
    %3548 = vmatpush.bf16.msra.mxu0 0
    %3549 = vmatpush.bf16.msra.mxu0 0
    %3550 = vmatpush.bf16.msra.mxu0 %v3538
    %3551 = vmatmul.bf16.gmra.mxu0 %v3541
    %v3552 = vpop.f32.mrf.mxu0
    %v3553 = vadd.f32 0.0, %v3552
    %v3554 = vpop.f32.mrf.mxu0
    %v3555 = vadd.f32 0.0, %v3554
    %3556 = vdwg.mxu0
    %3561 = vrot.lane.b32.xlu0 %v3236, 32
    %v3562 = vpop.permute.xlu0 %3561
    %3563 = vrot.lane.b32.xlu0 %v3238, 32
    %v3564 = vpop.permute.xlu0 %3563
    %3565 = vrot.lane.b32.xlu0 %v3261, 32
    %v3566 = vpop.permute.xlu0 %3565
    %3567 = vrot.lane.b32.xlu0 %v3263, 32
    %v3568 = vpop.permute.xlu0 %3567
    %3577 = vrot.lane.b32.xlu0 %v3382, 64
    %v3578 = vpop.permute.xlu0 %3577
    %3579 = vrot.lane.b32.xlu0 %v3384, 64
    %v3580 = vpop.permute.xlu0 %3579
    %3581 = vrot.lane.b32.xlu0 %v3407, 64
    %v3582 = vpop.permute.xlu0 %3581
    %3583 = vrot.lane.b32.xlu0 %v3409, 64
    %v3584 = vpop.permute.xlu0 %3583
    %3593 = vrot.lane.b32.xlu0 %v3528, 96
    %v3594 = vpop.permute.xlu0 %3593
    %3595 = vrot.lane.b32.xlu0 %v3530, 96
    %v3596 = vpop.permute.xlu0 %3595
    %3597 = vrot.lane.b32.xlu0 %v3553, 96
    %v3598 = vpop.permute.xlu0 %3597
    %3599 = vrot.lane.b32.xlu0 %v3555, 96
    %v3600 = vpop.permute.xlu0 %3599
    %v3605 = vsel %vm434, %v3087, %v3562
    %v3606 = vsel %vm434, %v3089, %v3564
    %v3607 = vsel %vm434, %v3115, %v3566
    %v3608 = vsel %vm434, %v3117, %v3568
    %v3609 = vsel %vm1080, %v3605, %v3578
    %v3610 = vsel %vm1080, %v3606, %v3580
    %v3611 = vsel %vm1080, %v3607, %v3582
    %v3612 = vsel %vm1080, %v3608, %v3584
    %v3613 = vsel %vm1085, %v3609, %v3594
    %v3614 = vsel %vm1085, %v3610, %v3596
    %v3615 = vsel %vm1085, %v3611, %v3598
    %v3616 = vsel %vm1085, %v3612, %v3600
    %v3617 = vpack.c.bf16 %v3614, %v3613
    %v3618 = vpack.c.bf16 %v3616, %v3615
    %s3619 = scalar_lea.vmem %s5, 64
    %v3620 = vld [vmem:[%s3619] sm:$0xf]
    %v3621 = vld [vmem:[%s3619 + $0x4] sm:$0xf]
    %v3622 = vld [vmem:[%s3619 + $0x8] sm:$0xf]
    %v3623 = vld [vmem:[%s3619 + $0xc] sm:$0xf]
    %v3624 = vld [vmem:[%s3619 + $0x10] sm:$0xf]
    %v3625 = vld [vmem:[%s3619 + $0x14] sm:$0xf]
    %v3626 = vld [vmem:[%s3619 + $0x18] sm:$0xf]
    %v3627 = vld [vmem:[%s3619 + $0x1c] sm:$0xf]
    %v3628 = vld [vmem:[%s3619 + $0x20] sm:$0xf]
    %v3629 = vld [vmem:[%s3619 + $0x24] sm:$0xf]
    %v3630 = vld [vmem:[%s3619 + $0x28] sm:$0xf]
    %v3631 = vld [vmem:[%s3619 + $0x2c] sm:$0xf]
    %v3632 = vld [vmem:[%s3619 + $0x30] sm:$0xf]
    %v3633 = vld [vmem:[%s3619 + $0x34] sm:$0xf]
    %v3634 = vld [vmem:[%s3619 + $0x38] sm:$0xf]
    %v3635 = vld [vmem:[%s3619 + $0x3c] sm:$0xf]
    %s3636 = scalar_lea.vmem %s6, 1
    %v3637 = vld [vmem:[%s3636] sm:$0x1]
    %v3639 = vperm.slane %v3637, 0
    %v3657 = vunpack.c.l.b16 %v3620
    %v3658 = vunpack.c.l.b16 %v3621
    %v3659 = vunpack.c.l.b16 %v3622
    %v3660 = vunpack.c.l.b16 %v3623
    %v3661 = vunpack.c.l.b16 %v3624
    %v3662 = vunpack.c.l.b16 %v3625
    %v3663 = vunpack.c.l.b16 %v3626
    %v3664 = vunpack.c.l.b16 %v3627
    %v3665 = vunpack.c.l.b16 %v3628
    %v3666 = vunpack.c.l.b16 %v3629
    %v3667 = vunpack.c.l.b16 %v3630
    %v3668 = vunpack.c.l.b16 %v3631
    %v3669 = vunpack.c.l.b16 %v3632
    %v3670 = vunpack.c.l.b16 %v3633
    %v3671 = vunpack.c.l.b16 %v3634
    %v3672 = vunpack.c.l.b16 %v3635
    %v3673 = vpack.c.b16 %v3658, %v3657
    %v3674 = vpack.c.b16 %v3660, %v3659
    %v3675 = vpack.c.b16 %v3662, %v3661
    %v3676 = vpack.c.b16 %v3664, %v3663
    %v3677 = vpack.c.b16 %v3666, %v3665
    %v3678 = vpack.c.b16 %v3668, %v3667
    %v3679 = vpack.c.b16 %v3670, %v3669
    %v3680 = vpack.c.b16 %v3672, %v3671
    %3689 = vmatpush.bf16.msra.mxu0 %v3680
    %3690 = vmatpush.bf16.msra.mxu0 %v3679
    %3691 = vmatpush.bf16.msra.mxu0 %v3678
    %3692 = vmatpush.bf16.msra.mxu0 %v3677
    %3693 = vmatpush.bf16.msra.mxu0 %v3676
    %3694 = vmatpush.bf16.msra.mxu0 %v3675
    %3695 = vmatpush.bf16.msra.mxu0 %v3674
    %3696 = vmatpush.bf16.msra.mxu0 %v3673
    %3697 = vmatmul.bf16.gmra.mxu0 %v3617
    %v3698 = vpop.f32.mrf.mxu0
    %v3699 = vadd.f32 %v3639, %v3698
    %v3700 = vpop.f32.mrf.mxu0
    %v3701 = vadd.f32 %v3639, %v3700
    %3702 = vmatmul.bf16.gmra.mxu0 %v3618
    %v3703 = vpop.f32.mrf.mxu0
    %v3704 = vadd.f32 %v3639, %v3703
    %v3705 = vpop.f32.mrf.mxu0
    %v3706 = vadd.f32 %v3639, %v3705
    %3707 = vdwg.mxu0
    %v3708 = vadd.f32 %v2710, %v3699
    %v3709 = vadd.f32 %v2711, %v3701
    %v3710 = vadd.f32 %v2712, %v3704
    %v3711 = vadd.f32 %v2713, %v3706
    %s3712 = scalar_lea.vmem %s7, 1
    %v3713 = vld [vmem:[%s3712] sm:$0x1]
    %s3714 = scalar_lea.vmem %s8, 1
    %v3715 = vld [vmem:[%s3714] sm:$0x1]
    %3716 = vadd.xlane.f32.xlu0 %v3708
    %v3717 = vpop.xlane.xlu0 %3716
    %3718 = vadd.xlane.f32.xlu0 %v3709
    %v3719 = vpop.xlane.xlu0 %3718
    %3720 = vadd.xlane.f32.xlu0 %v3710
    %v3721 = vpop.xlane.xlu0 %3720
    %3722 = vadd.xlane.f32.xlu0 %v3711
    %v3723 = vpop.xlane.xlu0 %3722
    %v3724 = vmul.f32 %v3717, %v1199
    %v3725 = vmul.f32 %v3719, %v1199
    %v3726 = vmul.f32 %v3721, %v1199
    %v3727 = vmul.f32 %v3723, %v1199
    %v3728 = vsub.f32 %v3708, %v3724
    %v3729 = vsub.f32 %v3709, %v3725
    %v3730 = vsub.f32 %v3710, %v3726
    %v3731 = vsub.f32 %v3711, %v3727
    %v3732 = vmul.f32 %v3728, %v3728
    %v3733 = vmul.f32 %v3729, %v3729
    %v3734 = vmul.f32 %v3730, %v3730
    %v3735 = vmul.f32 %v3731, %v3731
    %3736 = vadd.xlane.f32.xlu0 %v3732
    %v3737 = vpop.xlane.xlu0 %3736
    %3738 = vadd.xlane.f32.xlu0 %v3733
    %v3739 = vpop.xlane.xlu0 %3738
    %3740 = vadd.xlane.f32.xlu0 %v3734
    %v3741 = vpop.xlane.xlu0 %3740
    %3742 = vadd.xlane.f32.xlu0 %v3735
    %v3743 = vpop.xlane.xlu0 %3742
    %v3744 = vmul.f32 %v3737, %v1199
    %v3745 = vmul.f32 %v3739, %v1199
    %v3746 = vmul.f32 %v3741, %v1199
    %v3747 = vmul.f32 %v3743, %v1199
    %v3748 = vadd.f32 %v3744, 1e-05
    %v3749 = vadd.f32 %v3745, 1e-05
    %v3750 = vadd.f32 %v3746, 1e-05
    %v3751 = vadd.f32 %v3747, 1e-05
    %v3752 = vrsqrt.pop %v3748
    %v3753 = vmul.f32 %v3752, %v3748
    %v3754 = vmul.f32 %v3753, %v3752
    %v3755 = vmul.f32 0.5, %v3754
    %v3756 = vsub.f32 1.5, %v3755
    %v3757 = vmul.f32 %v3752, %v3756
    %vm3758 = vweird.f32 %v3748
    %vm3759 = vweird.f32 %v3752
    %vm3760 = vmor %vm3758, %vm3759
    %v3761 = vsel %vm3760, %v3752, %v3757
    %v3762 = vrsqrt.pop %v3749
    %v3763 = vmul.f32 %v3762, %v3749
    %v3764 = vmul.f32 %v3763, %v3762
    %v3765 = vmul.f32 0.5, %v3764
    %v3766 = vsub.f32 1.5, %v3765
    %v3767 = vmul.f32 %v3762, %v3766
    %vm3768 = vweird.f32 %v3749
    %vm3769 = vweird.f32 %v3762
    %vm3770 = vmor %vm3768, %vm3769
    %v3771 = vsel %vm3770, %v3762, %v3767
    %v3772 = vrsqrt.pop %v3750
    %v3773 = vmul.f32 %v3772, %v3750
    %v3774 = vmul.f32 %v3773, %v3772
    %v3775 = vmul.f32 0.5, %v3774
    %v3776 = vsub.f32 1.5, %v3775
    %v3777 = vmul.f32 %v3772, %v3776
    %vm3778 = vweird.f32 %v3750
    %vm3779 = vweird.f32 %v3772
    %vm3780 = vmor %vm3778, %vm3779
    %v3781 = vsel %vm3780, %v3772, %v3777
    %v3782 = vrsqrt.pop %v3751
    %v3783 = vmul.f32 %v3782, %v3751
    %v3784 = vmul.f32 %v3783, %v3782
    %v3785 = vmul.f32 0.5, %v3784
    %v3786 = vsub.f32 1.5, %v3785
    %v3787 = vmul.f32 %v3782, %v3786
    %vm3788 = vweird.f32 %v3751
    %vm3789 = vweird.f32 %v3782
    %vm3790 = vmor %vm3788, %vm3789
    %v3791 = vsel %vm3790, %v3782, %v3787
    %v3792 = vmul.f32 %v3728, %v3761
    %v3793 = vmul.f32 %v3729, %v3771
    %v3794 = vmul.f32 %v3730, %v3781
    %v3795 = vmul.f32 %v3731, %v3791
    %v3797 = vperm.slane %v3713, 0
    %v3799 = vmul.f32 %v3792, %v3797
    %v3800 = vmul.f32 %v3793, %v3797
    %v3801 = vmul.f32 %v3794, %v3797
    %v3802 = vmul.f32 %v3795, %v3797
    %v3804 = vperm.slane %v3715, 0
    %v3806 = vadd.f32 %v3799, %v3804
    %v3807 = vadd.f32 %v3800, %v3804
    %v3808 = vadd.f32 %v3801, %v3804
    %v3809 = vadd.f32 %v3802, %v3804
    %v3810 = vpack.c.bf16 %v3807, %v3806
    %v3811 = vpack.c.bf16 %v3809, %v3808
    %s3812 = scalar_lea.vmem %s9, 256
    %v3813 = vld [vmem:[%s3812] sm:$0xff]
    %v3814 = vld [vmem:[%s3812 + $0x8] sm:$0xff]
    %v3815 = vld [vmem:[%s3812 + $0x10] sm:$0xff]
    %v3816 = vld [vmem:[%s3812 + $0x18] sm:$0xff]
    %v3817 = vld [vmem:[%s3812 + $0x20] sm:$0xff]
    %v3818 = vld [vmem:[%s3812 + $0x28] sm:$0xff]
    %v3819 = vld [vmem:[%s3812 + $0x30] sm:$0xff]
    %v3820 = vld [vmem:[%s3812 + $0x38] sm:$0xff]
    %v3821 = vld [vmem:[%s3812 + $0x40] sm:$0xff]
    %v3822 = vld [vmem:[%s3812 + $0x48] sm:$0xff]
    %v3823 = vld [vmem:[%s3812 + $0x50] sm:$0xff]
    %v3824 = vld [vmem:[%s3812 + $0x58] sm:$0xff]
    %v3825 = vld [vmem:[%s3812 + $0x60] sm:$0xff]
    %v3826 = vld [vmem:[%s3812 + $0x68] sm:$0xff]
    %v3827 = vld [vmem:[%s3812 + $0x70] sm:$0xff]
    %v3828 = vld [vmem:[%s3812 + $0x78] sm:$0xff]
    %v3829 = vld [vmem:[%s3812 + $0x80] sm:$0xff]
    %v3830 = vld [vmem:[%s3812 + $0x88] sm:$0xff]
    %v3831 = vld [vmem:[%s3812 + $0x90] sm:$0xff]
    %v3832 = vld [vmem:[%s3812 + $0x98] sm:$0xff]
    %v3833 = vld [vmem:[%s3812 + $0xa0] sm:$0xff]
    %v3834 = vld [vmem:[%s3812 + $0xa8] sm:$0xff]
    %v3835 = vld [vmem:[%s3812 + $0xb0] sm:$0xff]
    %v3836 = vld [vmem:[%s3812 + $0xb8] sm:$0xff]
    %v3837 = vld [vmem:[%s3812 + $0xc0] sm:$0xff]
    %v3838 = vld [vmem:[%s3812 + $0xc8] sm:$0xff]
    %v3839 = vld [vmem:[%s3812 + $0xd0] sm:$0xff]
    %v3840 = vld [vmem:[%s3812 + $0xd8] sm:$0xff]
    %v3841 = vld [vmem:[%s3812 + $0xe0] sm:$0xff]
    %v3842 = vld [vmem:[%s3812 + $0xe8] sm:$0xff]
    %v3843 = vld [vmem:[%s3812 + $0xf0] sm:$0xff]
    %v3844 = vld [vmem:[%s3812 + $0xf8] sm:$0xff]
    %s3845 = scalar_lea.vmem %s10, 4
    %v3846 = vld [vmem:[%s3845] sm:$0xf]
    %v3848 = vperm.slane %v3846, 0
    %v3849 = vperm.slane %v3846, 1
    %v3850 = vperm.slane %v3846, 2
    %v3851 = vperm.slane %v3846, 3
    %v3888 = vunpack.c.l.b16 %v3813
    %v3889 = vunpack.c.h.b16 %v3813
    %v3890 = vunpack.c.l.b16 %v3814
    %v3891 = vunpack.c.h.b16 %v3814
    %v3892 = vunpack.c.l.b16 %v3815
    %v3893 = vunpack.c.h.b16 %v3815
    %v3894 = vunpack.c.l.b16 %v3816
    %v3895 = vunpack.c.h.b16 %v3816
    %v3896 = vunpack.c.l.b16 %v3817
    %v3897 = vunpack.c.h.b16 %v3817
    %v3898 = vunpack.c.l.b16 %v3818
    %v3899 = vunpack.c.h.b16 %v3818
    %v3900 = vunpack.c.l.b16 %v3819
    %v3901 = vunpack.c.h.b16 %v3819
    %v3902 = vunpack.c.l.b16 %v3820
    %v3903 = vunpack.c.h.b16 %v3820
    %v3904 = vunpack.c.l.b16 %v3821
    %v3905 = vunpack.c.h.b16 %v3821
    %v3906 = vunpack.c.l.b16 %v3822
    %v3907 = vunpack.c.h.b16 %v3822
    %v3908 = vunpack.c.l.b16 %v3823
    %v3909 = vunpack.c.h.b16 %v3823
    %v3910 = vunpack.c.l.b16 %v3824
    %v3911 = vunpack.c.h.b16 %v3824
    %v3912 = vunpack.c.l.b16 %v3825
    %v3913 = vunpack.c.h.b16 %v3825
    %v3914 = vunpack.c.l.b16 %v3826
    %v3915 = vunpack.c.h.b16 %v3826
    %v3916 = vunpack.c.l.b16 %v3827
    %v3917 = vunpack.c.h.b16 %v3827
    %v3918 = vunpack.c.l.b16 %v3828
    %v3919 = vunpack.c.h.b16 %v3828
    %v3920 = vunpack.c.l.b16 %v3829
    %v3921 = vunpack.c.h.b16 %v3829
    %v3922 = vunpack.c.l.b16 %v3830
    %v3923 = vunpack.c.h.b16 %v3830
    %v3924 = vunpack.c.l.b16 %v3831
    %v3925 = vunpack.c.h.b16 %v3831
    %v3926 = vunpack.c.l.b16 %v3832
    %v3927 = vunpack.c.h.b16 %v3832
    %v3928 = vunpack.c.l.b16 %v3833
    %v3929 = vunpack.c.h.b16 %v3833
    %v3930 = vunpack.c.l.b16 %v3834
    %v3931 = vunpack.c.h.b16 %v3834
    %v3932 = vunpack.c.l.b16 %v3835
    %v3933 = vunpack.c.h.b16 %v3835
    %v3934 = vunpack.c.l.b16 %v3836
    %v3935 = vunpack.c.h.b16 %v3836
    %v3936 = vunpack.c.l.b16 %v3837
    %v3937 = vunpack.c.h.b16 %v3837
    %v3938 = vunpack.c.l.b16 %v3838
    %v3939 = vunpack.c.h.b16 %v3838
    %v3940 = vunpack.c.l.b16 %v3839
    %v3941 = vunpack.c.h.b16 %v3839
    %v3942 = vunpack.c.l.b16 %v3840
    %v3943 = vunpack.c.h.b16 %v3840
    %v3944 = vunpack.c.l.b16 %v3841
    %v3945 = vunpack.c.h.b16 %v3841
    %v3946 = vunpack.c.l.b16 %v3842
    %v3947 = vunpack.c.h.b16 %v3842
    %v3948 = vunpack.c.l.b16 %v3843
    %v3949 = vunpack.c.h.b16 %v3843
    %v3950 = vunpack.c.l.b16 %v3844
    %v3951 = vunpack.c.h.b16 %v3844
    %v3952 = vpack.c.b16 %v3892, %v3888
    %v3953 = vpack.c.b16 %v3893, %v3889
    %v3954 = vpack.c.b16 %v3894, %v3890
    %v3955 = vpack.c.b16 %v3895, %v3891
    %v3956 = vpack.c.b16 %v3900, %v3896
    %v3957 = vpack.c.b16 %v3901, %v3897
    %v3958 = vpack.c.b16 %v3902, %v3898
    %v3959 = vpack.c.b16 %v3903, %v3899
    %v3960 = vpack.c.b16 %v3908, %v3904
    %v3961 = vpack.c.b16 %v3909, %v3905
    %v3962 = vpack.c.b16 %v3910, %v3906
    %v3963 = vpack.c.b16 %v3911, %v3907
    %v3964 = vpack.c.b16 %v3916, %v3912
    %v3965 = vpack.c.b16 %v3917, %v3913
    %v3966 = vpack.c.b16 %v3918, %v3914
    %v3967 = vpack.c.b16 %v3919, %v3915
    %v3968 = vpack.c.b16 %v3924, %v3920
    %v3969 = vpack.c.b16 %v3925, %v3921
    %v3970 = vpack.c.b16 %v3926, %v3922
    %v3971 = vpack.c.b16 %v3927, %v3923
    %v3972 = vpack.c.b16 %v3932, %v3928
    %v3973 = vpack.c.b16 %v3933, %v3929
    %v3974 = vpack.c.b16 %v3934, %v3930
    %v3975 = vpack.c.b16 %v3935, %v3931
    %v3976 = vpack.c.b16 %v3940, %v3936
    %v3977 = vpack.c.b16 %v3941, %v3937
    %v3978 = vpack.c.b16 %v3942, %v3938
    %v3979 = vpack.c.b16 %v3943, %v3939
    %v3980 = vpack.c.b16 %v3948, %v3944
    %v3981 = vpack.c.b16 %v3949, %v3945
    %v3982 = vpack.c.b16 %v3950, %v3946
    %v3983 = vpack.c.b16 %v3951, %v3947
    %4016 = vmatpush.bf16.msra.mxu0 %v3980
    %4017 = vmatpush.bf16.msra.mxu0 %v3976
    %4018 = vmatpush.bf16.msra.mxu0 %v3972
    %4019 = vmatpush.bf16.msra.mxu0 %v3968
    %4020 = vmatpush.bf16.msra.mxu0 %v3964
    %4021 = vmatpush.bf16.msra.mxu0 %v3960
    %4022 = vmatpush.bf16.msra.mxu0 %v3956
    %4023 = vmatpush.bf16.msra.mxu0 %v3952
    %4024 = vmatmul.bf16.gmra.mxu0 %v3810
    %v4025 = vpop.f32.mrf.mxu0
    %v4026 = vadd.f32 %v3848, %v4025
    %v4027 = vpop.f32.mrf.mxu0
    %v4028 = vadd.f32 %v3848, %v4027
    %4029 = vmatmul.bf16.gmra.mxu0 %v3811
    %v4030 = vpop.f32.mrf.mxu0
    %v4031 = vadd.f32 %v3848, %v4030
    %v4032 = vpop.f32.mrf.mxu0
    %v4033 = vadd.f32 %v3848, %v4032
    %4034 = vdwg.mxu0
    %4035 = vmatpush.bf16.msra.mxu0 %v3981
    %4036 = vmatpush.bf16.msra.mxu0 %v3977
    %4037 = vmatpush.bf16.msra.mxu0 %v3973
    %4038 = vmatpush.bf16.msra.mxu0 %v3969
    %4039 = vmatpush.bf16.msra.mxu0 %v3965
    %4040 = vmatpush.bf16.msra.mxu0 %v3961
    %4041 = vmatpush.bf16.msra.mxu0 %v3957
    %4042 = vmatpush.bf16.msra.mxu0 %v3953
    %4043 = vmatmul.bf16.gmra.mxu0 %v3810
    %v4044 = vpop.f32.mrf.mxu0
    %v4045 = vadd.f32 %v3849, %v4044
    %v4046 = vpop.f32.mrf.mxu0
    %v4047 = vadd.f32 %v3849, %v4046
    %4048 = vmatmul.bf16.gmra.mxu0 %v3811
    %v4049 = vpop.f32.mrf.mxu0
    %v4050 = vadd.f32 %v3849, %v4049
    %v4051 = vpop.f32.mrf.mxu0
    %v4052 = vadd.f32 %v3849, %v4051
    %4053 = vdwg.mxu0
    %4054 = vmatpush.bf16.msra.mxu0 %v3982
    %4055 = vmatpush.bf16.msra.mxu0 %v3978
    %4056 = vmatpush.bf16.msra.mxu0 %v3974
    %4057 = vmatpush.bf16.msra.mxu0 %v3970
    %4058 = vmatpush.bf16.msra.mxu0 %v3966
    %4059 = vmatpush.bf16.msra.mxu0 %v3962
    %4060 = vmatpush.bf16.msra.mxu0 %v3958
    %4061 = vmatpush.bf16.msra.mxu0 %v3954
    %4062 = vmatmul.bf16.gmra.mxu0 %v3810
    %v4063 = vpop.f32.mrf.mxu0
    %v4064 = vadd.f32 %v3850, %v4063
    %v4065 = vpop.f32.mrf.mxu0
    %v4066 = vadd.f32 %v3850, %v4065
    %4067 = vmatmul.bf16.gmra.mxu0 %v3811
    %v4068 = vpop.f32.mrf.mxu0
    %v4069 = vadd.f32 %v3850, %v4068
    %v4070 = vpop.f32.mrf.mxu0
    %v4071 = vadd.f32 %v3850, %v4070
    %4072 = vdwg.mxu0
    %4073 = vmatpush.bf16.msra.mxu0 %v3983
    %4074 = vmatpush.bf16.msra.mxu0 %v3979
    %4075 = vmatpush.bf16.msra.mxu0 %v3975
    %4076 = vmatpush.bf16.msra.mxu0 %v3971
    %4077 = vmatpush.bf16.msra.mxu0 %v3967
    %4078 = vmatpush.bf16.msra.mxu0 %v3963
    %4079 = vmatpush.bf16.msra.mxu0 %v3959
    %4080 = vmatpush.bf16.msra.mxu0 %v3955
    %4081 = vmatmul.bf16.gmra.mxu0 %v3810
    %v4082 = vpop.f32.mrf.mxu0
    %v4083 = vadd.f32 %v3851, %v4082
    %v4084 = vpop.f32.mrf.mxu0
    %v4085 = vadd.f32 %v3851, %v4084
    %4086 = vmatmul.bf16.gmra.mxu0 %v3811
    %v4087 = vpop.f32.mrf.mxu0
    %v4088 = vadd.f32 %v3851, %v4087
    %v4089 = vpop.f32.mrf.mxu0
    %v4090 = vadd.f32 %v3851, %v4089
    %4091 = vdwg.mxu0
    %v4092 = vmul.f32 %v4026, 0.5
    %v4093 = vmul.f32 %v4045, 0.5
    %v4094 = vmul.f32 %v4064, 0.5
    %v4095 = vmul.f32 %v4083, 0.5
    %v4096 = vmul.f32 %v4028, 0.5
    %v4097 = vmul.f32 %v4047, 0.5
    %v4098 = vmul.f32 %v4066, 0.5
    %v4099 = vmul.f32 %v4085, 0.5
    %v4100 = vmul.f32 %v4031, 0.5
    %v4101 = vmul.f32 %v4050, 0.5
    %v4102 = vmul.f32 %v4069, 0.5
    %v4103 = vmul.f32 %v4088, 0.5
    %v4104 = vmul.f32 %v4033, 0.5
    %v4105 = vmul.f32 %v4052, 0.5
    %v4106 = vmul.f32 %v4071, 0.5
    %v4107 = vmul.f32 %v4090, 0.5
    %v4108 = vmul.f32 %v4026, 0.70710677
    %v4109 = vmul.f32 %v4045, 0.70710677
    %v4110 = vmul.f32 %v4064, 0.70710677
    %v4111 = vmul.f32 %v4083, 0.70710677
    %v4112 = vmul.f32 %v4028, 0.70710677
    %v4113 = vmul.f32 %v4047, 0.70710677
    %v4114 = vmul.f32 %v4066, 0.70710677
    %v4115 = vmul.f32 %v4085, 0.70710677
    %v4116 = vmul.f32 %v4031, 0.70710677
    %v4117 = vmul.f32 %v4050, 0.70710677
    %v4118 = vmul.f32 %v4069, 0.70710677
    %v4119 = vmul.f32 %v4088, 0.70710677
    %v4120 = vmul.f32 %v4033, 0.70710677
    %v4121 = vmul.f32 %v4052, 0.70710677
    %v4122 = vmul.f32 %v4071, 0.70710677
    %v4123 = vmul.f32 %v4090, 0.70710677
    %v4124 = vmul.f32 %v4108, %v4108
    %v4125 = vmin.f32 16.0, %v4124
    %v4126 = vmul.f32 %v4125, 2.1237322e-06
    %v4127 = vadd.f32 %v4126, 0.00028619796
    %v4128 = vmul.f32 %v4125, %v4127
    %v4129 = vadd.f32 %v4128, 0.0036580483
    %v4130 = vmul.f32 %v4125, %v4129
    %v4131 = vadd.f32 %v4130, 0.05243302
    %v4132 = vmul.f32 %v4125, %v4131
    %v4133 = vadd.f32 %v4132, 0.18741608
    %v4134 = vmul.f32 %v4125, %v4133
    %v4135 = vadd.f32 %v4134, 1.1283791
    %v4136 = vmul.f32 %v4108, %v4135
    %v4137 = vmul.f32 %v4125, 3.8918573e-05
    %v4138 = vadd.f32 %v4137, 0.001143296
    %v4139 = vmul.f32 %v4125, %v4138
    %v4140 = vadd.f32 %v4139, 0.014752088
    %v4141 = vmul.f32 %v4125, %v4140
    %v4142 = vadd.f32 %v4141, 0.112945676
    %v4143 = vmul.f32 %v4125, %v4142
    %v4144 = vadd.f32 %v4143, 0.4994258
    %v4145 = vmul.f32 %v4125, %v4144
    %v4146 = vadd.f32 %v4145, 1.0
    %v4147 = vrcp.pop %v4146
    %v4148 = vmul.f32 %v4146, %v4147
    %v4149 = vsub.f32 1.0, %v4148
    %v4150 = vmul.f32 %v4147, %v4149
    %v4151 = vadd.f32 %v4147, %v4150
    %vm4152 = vweird.f32 %v4146
    %vm4153 = vweird.f32 %v4147
    %vm4154 = vmor %vm4152, %vm4153
    %v4155 = vsel %vm4154, %v4147, %v4151
    %v4156 = vand.u32 2147483647, %v4146
    %vm4157 = vcmp.eq.f32.partialorder %v4156, 8.507059e+37
    %v4158 = vand.u32 %v4146, 2147483648
    %v4159 = vor.u32 1.1754944e-38, %v4158
    %v4160 = vsel %vm4157, %v4159, %v4155
    %v4161 = vmul.f32 %v4136, %v4160
    %v4162 = vmin.f32 %v4161, 1.0
    %v4163 = vmax.f32 %v4162, -1.0
    %v4164 = vmul.f32 %v4109, %v4109
    %v4165 = vmin.f32 16.0, %v4164
    %v4166 = vmul.f32 %v4165, 2.1237322e-06
    %v4167 = vadd.f32 %v4166, 0.00028619796
    %v4168 = vmul.f32 %v4165, %v4167
    %v4169 = vadd.f32 %v4168, 0.0036580483
    %v4170 = vmul.f32 %v4165, %v4169
    %v4171 = vadd.f32 %v4170, 0.05243302
    %v4172 = vmul.f32 %v4165, %v4171
    %v4173 = vadd.f32 %v4172, 0.18741608
    %v4174 = vmul.f32 %v4165, %v4173
    %v4175 = vadd.f32 %v4174, 1.1283791
    %v4176 = vmul.f32 %v4109, %v4175
    %v4177 = vmul.f32 %v4165, 3.8918573e-05
    %v4178 = vadd.f32 %v4177, 0.001143296
    %v4179 = vmul.f32 %v4165, %v4178
    %v4180 = vadd.f32 %v4179, 0.014752088
    %v4181 = vmul.f32 %v4165, %v4180
    %v4182 = vadd.f32 %v4181, 0.112945676
    %v4183 = vmul.f32 %v4165, %v4182
    %v4184 = vadd.f32 %v4183, 0.4994258
    %v4185 = vmul.f32 %v4165, %v4184
    %v4186 = vadd.f32 %v4185, 1.0
    %v4187 = vrcp.pop %v4186
    %v4188 = vmul.f32 %v4186, %v4187
    %v4189 = vsub.f32 1.0, %v4188
    %v4190 = vmul.f32 %v4187, %v4189
    %v4191 = vadd.f32 %v4187, %v4190
    %vm4192 = vweird.f32 %v4186
    %vm4193 = vweird.f32 %v4187
    %vm4194 = vmor %vm4192, %vm4193
    %v4195 = vsel %vm4194, %v4187, %v4191
    %v4196 = vand.u32 2147483647, %v4186
    %vm4197 = vcmp.eq.f32.partialorder %v4196, 8.507059e+37
    %v4198 = vand.u32 %v4186, 2147483648
    %v4199 = vor.u32 1.1754944e-38, %v4198
    %v4200 = vsel %vm4197, %v4199, %v4195
    %v4201 = vmul.f32 %v4176, %v4200
    %v4202 = vmin.f32 %v4201, 1.0
    %v4203 = vmax.f32 %v4202, -1.0
    %v4204 = vmul.f32 %v4110, %v4110
    %v4205 = vmin.f32 16.0, %v4204
    %v4206 = vmul.f32 %v4205, 2.1237322e-06
    %v4207 = vadd.f32 %v4206, 0.00028619796
    %v4208 = vmul.f32 %v4205, %v4207
    %v4209 = vadd.f32 %v4208, 0.0036580483
    %v4210 = vmul.f32 %v4205, %v4209
    %v4211 = vadd.f32 %v4210, 0.05243302
    %v4212 = vmul.f32 %v4205, %v4211
    %v4213 = vadd.f32 %v4212, 0.18741608
    %v4214 = vmul.f32 %v4205, %v4213
    %v4215 = vadd.f32 %v4214, 1.1283791
    %v4216 = vmul.f32 %v4110, %v4215
    %v4217 = vmul.f32 %v4205, 3.8918573e-05
    %v4218 = vadd.f32 %v4217, 0.001143296
    %v4219 = vmul.f32 %v4205, %v4218
    %v4220 = vadd.f32 %v4219, 0.014752088
    %v4221 = vmul.f32 %v4205, %v4220
    %v4222 = vadd.f32 %v4221, 0.112945676
    %v4223 = vmul.f32 %v4205, %v4222
    %v4224 = vadd.f32 %v4223, 0.4994258
    %v4225 = vmul.f32 %v4205, %v4224
    %v4226 = vadd.f32 %v4225, 1.0
    %v4227 = vrcp.pop %v4226
    %v4228 = vmul.f32 %v4226, %v4227
    %v4229 = vsub.f32 1.0, %v4228
    %v4230 = vmul.f32 %v4227, %v4229
    %v4231 = vadd.f32 %v4227, %v4230
    %vm4232 = vweird.f32 %v4226
    %vm4233 = vweird.f32 %v4227
    %vm4234 = vmor %vm4232, %vm4233
    %v4235 = vsel %vm4234, %v4227, %v4231
    %v4236 = vand.u32 2147483647, %v4226
    %vm4237 = vcmp.eq.f32.partialorder %v4236, 8.507059e+37
    %v4238 = vand.u32 %v4226, 2147483648
    %v4239 = vor.u32 1.1754944e-38, %v4238
    %v4240 = vsel %vm4237, %v4239, %v4235
    %v4241 = vmul.f32 %v4216, %v4240
    %v4242 = vmin.f32 %v4241, 1.0
    %v4243 = vmax.f32 %v4242, -1.0
    %v4244 = vmul.f32 %v4111, %v4111
    %v4245 = vmin.f32 16.0, %v4244
    %v4246 = vmul.f32 %v4245, 2.1237322e-06
    %v4247 = vadd.f32 %v4246, 0.00028619796
    %v4248 = vmul.f32 %v4245, %v4247
    %v4249 = vadd.f32 %v4248, 0.0036580483
    %v4250 = vmul.f32 %v4245, %v4249
    %v4251 = vadd.f32 %v4250, 0.05243302
    %v4252 = vmul.f32 %v4245, %v4251
    %v4253 = vadd.f32 %v4252, 0.18741608
    %v4254 = vmul.f32 %v4245, %v4253
    %v4255 = vadd.f32 %v4254, 1.1283791
    %v4256 = vmul.f32 %v4111, %v4255
    %v4257 = vmul.f32 %v4245, 3.8918573e-05
    %v4258 = vadd.f32 %v4257, 0.001143296
    %v4259 = vmul.f32 %v4245, %v4258
    %v4260 = vadd.f32 %v4259, 0.014752088
    %v4261 = vmul.f32 %v4245, %v4260
    %v4262 = vadd.f32 %v4261, 0.112945676
    %v4263 = vmul.f32 %v4245, %v4262
    %v4264 = vadd.f32 %v4263, 0.4994258
    %v4265 = vmul.f32 %v4245, %v4264
    %v4266 = vadd.f32 %v4265, 1.0
    %v4267 = vrcp.pop %v4266
    %v4268 = vmul.f32 %v4266, %v4267
    %v4269 = vsub.f32 1.0, %v4268
    %v4270 = vmul.f32 %v4267, %v4269
    %v4271 = vadd.f32 %v4267, %v4270
    %vm4272 = vweird.f32 %v4266
    %vm4273 = vweird.f32 %v4267
    %vm4274 = vmor %vm4272, %vm4273
    %v4275 = vsel %vm4274, %v4267, %v4271
    %v4276 = vand.u32 2147483647, %v4266
    %vm4277 = vcmp.eq.f32.partialorder %v4276, 8.507059e+37
    %v4278 = vand.u32 %v4266, 2147483648
    %v4279 = vor.u32 1.1754944e-38, %v4278
    %v4280 = vsel %vm4277, %v4279, %v4275
    %v4281 = vmul.f32 %v4256, %v4280
    %v4282 = vmin.f32 %v4281, 1.0
    %v4283 = vmax.f32 %v4282, -1.0
    %v4284 = vmul.f32 %v4112, %v4112
    %v4285 = vmin.f32 16.0, %v4284
    %v4286 = vmul.f32 %v4285, 2.1237322e-06
    %v4287 = vadd.f32 %v4286, 0.00028619796
    %v4288 = vmul.f32 %v4285, %v4287
    %v4289 = vadd.f32 %v4288, 0.0036580483
    %v4290 = vmul.f32 %v4285, %v4289
    %v4291 = vadd.f32 %v4290, 0.05243302
    %v4292 = vmul.f32 %v4285, %v4291
    %v4293 = vadd.f32 %v4292, 0.18741608
    %v4294 = vmul.f32 %v4285, %v4293
    %v4295 = vadd.f32 %v4294, 1.1283791
    %v4296 = vmul.f32 %v4112, %v4295
    %v4297 = vmul.f32 %v4285, 3.8918573e-05
    %v4298 = vadd.f32 %v4297, 0.001143296
    %v4299 = vmul.f32 %v4285, %v4298
    %v4300 = vadd.f32 %v4299, 0.014752088
    %v4301 = vmul.f32 %v4285, %v4300
    %v4302 = vadd.f32 %v4301, 0.112945676
    %v4303 = vmul.f32 %v4285, %v4302
    %v4304 = vadd.f32 %v4303, 0.4994258
    %v4305 = vmul.f32 %v4285, %v4304
    %v4306 = vadd.f32 %v4305, 1.0
    %v4307 = vrcp.pop %v4306
    %v4308 = vmul.f32 %v4306, %v4307
    %v4309 = vsub.f32 1.0, %v4308
    %v4310 = vmul.f32 %v4307, %v4309
    %v4311 = vadd.f32 %v4307, %v4310
    %vm4312 = vweird.f32 %v4306
    %vm4313 = vweird.f32 %v4307
    %vm4314 = vmor %vm4312, %vm4313
    %v4315 = vsel %vm4314, %v4307, %v4311
    %v4316 = vand.u32 2147483647, %v4306
    %vm4317 = vcmp.eq.f32.partialorder %v4316, 8.507059e+37
    %v4318 = vand.u32 %v4306, 2147483648
    %v4319 = vor.u32 1.1754944e-38, %v4318
    %v4320 = vsel %vm4317, %v4319, %v4315
    %v4321 = vmul.f32 %v4296, %v4320
    %v4322 = vmin.f32 %v4321, 1.0
    %v4323 = vmax.f32 %v4322, -1.0
    %v4324 = vmul.f32 %v4113, %v4113
    %v4325 = vmin.f32 16.0, %v4324
    %v4326 = vmul.f32 %v4325, 2.1237322e-06
    %v4327 = vadd.f32 %v4326, 0.00028619796
    %v4328 = vmul.f32 %v4325, %v4327
    %v4329 = vadd.f32 %v4328, 0.0036580483
    %v4330 = vmul.f32 %v4325, %v4329
    %v4331 = vadd.f32 %v4330, 0.05243302
    %v4332 = vmul.f32 %v4325, %v4331
    %v4333 = vadd.f32 %v4332, 0.18741608
    %v4334 = vmul.f32 %v4325, %v4333
    %v4335 = vadd.f32 %v4334, 1.1283791
    %v4336 = vmul.f32 %v4113, %v4335
    %v4337 = vmul.f32 %v4325, 3.8918573e-05
    %v4338 = vadd.f32 %v4337, 0.001143296
    %v4339 = vmul.f32 %v4325, %v4338
    %v4340 = vadd.f32 %v4339, 0.014752088
    %v4341 = vmul.f32 %v4325, %v4340
    %v4342 = vadd.f32 %v4341, 0.112945676
    %v4343 = vmul.f32 %v4325, %v4342
    %v4344 = vadd.f32 %v4343, 0.4994258
    %v4345 = vmul.f32 %v4325, %v4344
    %v4346 = vadd.f32 %v4345, 1.0
    %v4347 = vrcp.pop %v4346
    %v4348 = vmul.f32 %v4346, %v4347
    %v4349 = vsub.f32 1.0, %v4348
    %v4350 = vmul.f32 %v4347, %v4349
    %v4351 = vadd.f32 %v4347, %v4350
    %vm4352 = vweird.f32 %v4346
    %vm4353 = vweird.f32 %v4347
    %vm4354 = vmor %vm4352, %vm4353
    %v4355 = vsel %vm4354, %v4347, %v4351
    %v4356 = vand.u32 2147483647, %v4346
    %vm4357 = vcmp.eq.f32.partialorder %v4356, 8.507059e+37
    %v4358 = vand.u32 %v4346, 2147483648
    %v4359 = vor.u32 1.1754944e-38, %v4358
    %v4360 = vsel %vm4357, %v4359, %v4355
    %v4361 = vmul.f32 %v4336, %v4360
    %v4362 = vmin.f32 %v4361, 1.0
    %v4363 = vmax.f32 %v4362, -1.0
    %v4364 = vmul.f32 %v4114, %v4114
    %v4365 = vmin.f32 16.0, %v4364
    %v4366 = vmul.f32 %v4365, 2.1237322e-06
    %v4367 = vadd.f32 %v4366, 0.00028619796
    %v4368 = vmul.f32 %v4365, %v4367
    %v4369 = vadd.f32 %v4368, 0.0036580483
    %v4370 = vmul.f32 %v4365, %v4369
    %v4371 = vadd.f32 %v4370, 0.05243302
    %v4372 = vmul.f32 %v4365, %v4371
    %v4373 = vadd.f32 %v4372, 0.18741608
    %v4374 = vmul.f32 %v4365, %v4373
    %v4375 = vadd.f32 %v4374, 1.1283791
    %v4376 = vmul.f32 %v4114, %v4375
    %v4377 = vmul.f32 %v4365, 3.8918573e-05
    %v4378 = vadd.f32 %v4377, 0.001143296
    %v4379 = vmul.f32 %v4365, %v4378
    %v4380 = vadd.f32 %v4379, 0.014752088
    %v4381 = vmul.f32 %v4365, %v4380
    %v4382 = vadd.f32 %v4381, 0.112945676
    %v4383 = vmul.f32 %v4365, %v4382
    %v4384 = vadd.f32 %v4383, 0.4994258
    %v4385 = vmul.f32 %v4365, %v4384
    %v4386 = vadd.f32 %v4385, 1.0
    %v4387 = vrcp.pop %v4386
    %v4388 = vmul.f32 %v4386, %v4387
    %v4389 = vsub.f32 1.0, %v4388
    %v4390 = vmul.f32 %v4387, %v4389
    %v4391 = vadd.f32 %v4387, %v4390
    %vm4392 = vweird.f32 %v4386
    %vm4393 = vweird.f32 %v4387
    %vm4394 = vmor %vm4392, %vm4393
    %v4395 = vsel %vm4394, %v4387, %v4391
    %v4396 = vand.u32 2147483647, %v4386
    %vm4397 = vcmp.eq.f32.partialorder %v4396, 8.507059e+37
    %v4398 = vand.u32 %v4386, 2147483648
    %v4399 = vor.u32 1.1754944e-38, %v4398
    %v4400 = vsel %vm4397, %v4399, %v4395
    %v4401 = vmul.f32 %v4376, %v4400
    %v4402 = vmin.f32 %v4401, 1.0
    %v4403 = vmax.f32 %v4402, -1.0
    %v4404 = vmul.f32 %v4115, %v4115
    %v4405 = vmin.f32 16.0, %v4404
    %v4406 = vmul.f32 %v4405, 2.1237322e-06
    %v4407 = vadd.f32 %v4406, 0.00028619796
    %v4408 = vmul.f32 %v4405, %v4407
    %v4409 = vadd.f32 %v4408, 0.0036580483
    %v4410 = vmul.f32 %v4405, %v4409
    %v4411 = vadd.f32 %v4410, 0.05243302
    %v4412 = vmul.f32 %v4405, %v4411
    %v4413 = vadd.f32 %v4412, 0.18741608
    %v4414 = vmul.f32 %v4405, %v4413
    %v4415 = vadd.f32 %v4414, 1.1283791
    %v4416 = vmul.f32 %v4115, %v4415
    %v4417 = vmul.f32 %v4405, 3.8918573e-05
    %v4418 = vadd.f32 %v4417, 0.001143296
    %v4419 = vmul.f32 %v4405, %v4418
    %v4420 = vadd.f32 %v4419, 0.014752088
    %v4421 = vmul.f32 %v4405, %v4420
    %v4422 = vadd.f32 %v4421, 0.112945676
    %v4423 = vmul.f32 %v4405, %v4422
    %v4424 = vadd.f32 %v4423, 0.4994258
    %v4425 = vmul.f32 %v4405, %v4424
    %v4426 = vadd.f32 %v4425, 1.0
    %v4427 = vrcp.pop %v4426
    %v4428 = vmul.f32 %v4426, %v4427
    %v4429 = vsub.f32 1.0, %v4428
    %v4430 = vmul.f32 %v4427, %v4429
    %v4431 = vadd.f32 %v4427, %v4430
    %vm4432 = vweird.f32 %v4426
    %vm4433 = vweird.f32 %v4427
    %vm4434 = vmor %vm4432, %vm4433
    %v4435 = vsel %vm4434, %v4427, %v4431
    %v4436 = vand.u32 2147483647, %v4426
    %vm4437 = vcmp.eq.f32.partialorder %v4436, 8.507059e+37
    %v4438 = vand.u32 %v4426, 2147483648
    %v4439 = vor.u32 1.1754944e-38, %v4438
    %v4440 = vsel %vm4437, %v4439, %v4435
    %v4441 = vmul.f32 %v4416, %v4440
    %v4442 = vmin.f32 %v4441, 1.0
    %v4443 = vmax.f32 %v4442, -1.0
    %v4444 = vmul.f32 %v4116, %v4116
    %v4445 = vmin.f32 16.0, %v4444
    %v4446 = vmul.f32 %v4445, 2.1237322e-06
    %v4447 = vadd.f32 %v4446, 0.00028619796
    %v4448 = vmul.f32 %v4445, %v4447
    %v4449 = vadd.f32 %v4448, 0.0036580483
    %v4450 = vmul.f32 %v4445, %v4449
    %v4451 = vadd.f32 %v4450, 0.05243302
    %v4452 = vmul.f32 %v4445, %v4451
    %v4453 = vadd.f32 %v4452, 0.18741608
    %v4454 = vmul.f32 %v4445, %v4453
    %v4455 = vadd.f32 %v4454, 1.1283791
    %v4456 = vmul.f32 %v4116, %v4455
    %v4457 = vmul.f32 %v4445, 3.8918573e-05
    %v4458 = vadd.f32 %v4457, 0.001143296
    %v4459 = vmul.f32 %v4445, %v4458
    %v4460 = vadd.f32 %v4459, 0.014752088
    %v4461 = vmul.f32 %v4445, %v4460
    %v4462 = vadd.f32 %v4461, 0.112945676
    %v4463 = vmul.f32 %v4445, %v4462
    %v4464 = vadd.f32 %v4463, 0.4994258
    %v4465 = vmul.f32 %v4445, %v4464
    %v4466 = vadd.f32 %v4465, 1.0
    %v4467 = vrcp.pop %v4466
    %v4468 = vmul.f32 %v4466, %v4467
    %v4469 = vsub.f32 1.0, %v4468
    %v4470 = vmul.f32 %v4467, %v4469
    %v4471 = vadd.f32 %v4467, %v4470
    %vm4472 = vweird.f32 %v4466
    %vm4473 = vweird.f32 %v4467
    %vm4474 = vmor %vm4472, %vm4473
    %v4475 = vsel %vm4474, %v4467, %v4471
    %v4476 = vand.u32 2147483647, %v4466
    %vm4477 = vcmp.eq.f32.partialorder %v4476, 8.507059e+37
    %v4478 = vand.u32 %v4466, 2147483648
    %v4479 = vor.u32 1.1754944e-38, %v4478
    %v4480 = vsel %vm4477, %v4479, %v4475
    %v4481 = vmul.f32 %v4456, %v4480
    %v4482 = vmin.f32 %v4481, 1.0
    %v4483 = vmax.f32 %v4482, -1.0
    %v4484 = vmul.f32 %v4117, %v4117
    %v4485 = vmin.f32 16.0, %v4484
    %v4486 = vmul.f32 %v4485, 2.1237322e-06
    %v4487 = vadd.f32 %v4486, 0.00028619796
    %v4488 = vmul.f32 %v4485, %v4487
    %v4489 = vadd.f32 %v4488, 0.0036580483
    %v4490 = vmul.f32 %v4485, %v4489
    %v4491 = vadd.f32 %v4490, 0.05243302
    %v4492 = vmul.f32 %v4485, %v4491
    %v4493 = vadd.f32 %v4492, 0.18741608
    %v4494 = vmul.f32 %v4485, %v4493
    %v4495 = vadd.f32 %v4494, 1.1283791
    %v4496 = vmul.f32 %v4117, %v4495
    %v4497 = vmul.f32 %v4485, 3.8918573e-05
    %v4498 = vadd.f32 %v4497, 0.001143296
    %v4499 = vmul.f32 %v4485, %v4498
    %v4500 = vadd.f32 %v4499, 0.014752088
    %v4501 = vmul.f32 %v4485, %v4500
    %v4502 = vadd.f32 %v4501, 0.112945676
    %v4503 = vmul.f32 %v4485, %v4502
    %v4504 = vadd.f32 %v4503, 0.4994258
    %v4505 = vmul.f32 %v4485, %v4504
    %v4506 = vadd.f32 %v4505, 1.0
    %v4507 = vrcp.pop %v4506
    %v4508 = vmul.f32 %v4506, %v4507
    %v4509 = vsub.f32 1.0, %v4508
    %v4510 = vmul.f32 %v4507, %v4509
    %v4511 = vadd.f32 %v4507, %v4510
    %vm4512 = vweird.f32 %v4506
    %vm4513 = vweird.f32 %v4507
    %vm4514 = vmor %vm4512, %vm4513
    %v4515 = vsel %vm4514, %v4507, %v4511
    %v4516 = vand.u32 2147483647, %v4506
    %vm4517 = vcmp.eq.f32.partialorder %v4516, 8.507059e+37
    %v4518 = vand.u32 %v4506, 2147483648
    %v4519 = vor.u32 1.1754944e-38, %v4518
    %v4520 = vsel %vm4517, %v4519, %v4515
    %v4521 = vmul.f32 %v4496, %v4520
    %v4522 = vmin.f32 %v4521, 1.0
    %v4523 = vmax.f32 %v4522, -1.0
    %v4524 = vmul.f32 %v4118, %v4118
    %v4525 = vmin.f32 16.0, %v4524
    %v4526 = vmul.f32 %v4525, 2.1237322e-06
    %v4527 = vadd.f32 %v4526, 0.00028619796
    %v4528 = vmul.f32 %v4525, %v4527
    %v4529 = vadd.f32 %v4528, 0.0036580483
    %v4530 = vmul.f32 %v4525, %v4529
    %v4531 = vadd.f32 %v4530, 0.05243302
    %v4532 = vmul.f32 %v4525, %v4531
    %v4533 = vadd.f32 %v4532, 0.18741608
    %v4534 = vmul.f32 %v4525, %v4533
    %v4535 = vadd.f32 %v4534, 1.1283791
    %v4536 = vmul.f32 %v4118, %v4535
    %v4537 = vmul.f32 %v4525, 3.8918573e-05
    %v4538 = vadd.f32 %v4537, 0.001143296
    %v4539 = vmul.f32 %v4525, %v4538
    %v4540 = vadd.f32 %v4539, 0.014752088
    %v4541 = vmul.f32 %v4525, %v4540
    %v4542 = vadd.f32 %v4541, 0.112945676
    %v4543 = vmul.f32 %v4525, %v4542
    %v4544 = vadd.f32 %v4543, 0.4994258
    %v4545 = vmul.f32 %v4525, %v4544
    %v4546 = vadd.f32 %v4545, 1.0
    %v4547 = vrcp.pop %v4546
    %v4548 = vmul.f32 %v4546, %v4547
    %v4549 = vsub.f32 1.0, %v4548
    %v4550 = vmul.f32 %v4547, %v4549
    %v4551 = vadd.f32 %v4547, %v4550
    %vm4552 = vweird.f32 %v4546
    %vm4553 = vweird.f32 %v4547
    %vm4554 = vmor %vm4552, %vm4553
    %v4555 = vsel %vm4554, %v4547, %v4551
    %v4556 = vand.u32 2147483647, %v4546
    %vm4557 = vcmp.eq.f32.partialorder %v4556, 8.507059e+37
    %v4558 = vand.u32 %v4546, 2147483648
    %v4559 = vor.u32 1.1754944e-38, %v4558
    %v4560 = vsel %vm4557, %v4559, %v4555
    %v4561 = vmul.f32 %v4536, %v4560
    %v4562 = vmin.f32 %v4561, 1.0
    %v4563 = vmax.f32 %v4562, -1.0
    %v4564 = vmul.f32 %v4119, %v4119
    %v4565 = vmin.f32 16.0, %v4564
    %v4566 = vmul.f32 %v4565, 2.1237322e-06
    %v4567 = vadd.f32 %v4566, 0.00028619796
    %v4568 = vmul.f32 %v4565, %v4567
    %v4569 = vadd.f32 %v4568, 0.0036580483
    %v4570 = vmul.f32 %v4565, %v4569
    %v4571 = vadd.f32 %v4570, 0.05243302
    %v4572 = vmul.f32 %v4565, %v4571
    %v4573 = vadd.f32 %v4572, 0.18741608
    %v4574 = vmul.f32 %v4565, %v4573
    %v4575 = vadd.f32 %v4574, 1.1283791
    %v4576 = vmul.f32 %v4119, %v4575
    %v4577 = vmul.f32 %v4565, 3.8918573e-05
    %v4578 = vadd.f32 %v4577, 0.001143296
    %v4579 = vmul.f32 %v4565, %v4578
    %v4580 = vadd.f32 %v4579, 0.014752088
    %v4581 = vmul.f32 %v4565, %v4580
    %v4582 = vadd.f32 %v4581, 0.112945676
    %v4583 = vmul.f32 %v4565, %v4582
    %v4584 = vadd.f32 %v4583, 0.4994258
    %v4585 = vmul.f32 %v4565, %v4584
    %v4586 = vadd.f32 %v4585, 1.0
    %v4587 = vrcp.pop %v4586
    %v4588 = vmul.f32 %v4586, %v4587
    %v4589 = vsub.f32 1.0, %v4588
    %v4590 = vmul.f32 %v4587, %v4589
    %v4591 = vadd.f32 %v4587, %v4590
    %vm4592 = vweird.f32 %v4586
    %vm4593 = vweird.f32 %v4587
    %vm4594 = vmor %vm4592, %vm4593
    %v4595 = vsel %vm4594, %v4587, %v4591
    %v4596 = vand.u32 2147483647, %v4586
    %vm4597 = vcmp.eq.f32.partialorder %v4596, 8.507059e+37
    %v4598 = vand.u32 %v4586, 2147483648
    %v4599 = vor.u32 1.1754944e-38, %v4598
    %v4600 = vsel %vm4597, %v4599, %v4595
    %v4601 = vmul.f32 %v4576, %v4600
    %v4602 = vmin.f32 %v4601, 1.0
    %v4603 = vmax.f32 %v4602, -1.0
    %v4604 = vmul.f32 %v4120, %v4120
    %v4605 = vmin.f32 16.0, %v4604
    %v4606 = vmul.f32 %v4605, 2.1237322e-06
    %v4607 = vadd.f32 %v4606, 0.00028619796
    %v4608 = vmul.f32 %v4605, %v4607
    %v4609 = vadd.f32 %v4608, 0.0036580483
    %v4610 = vmul.f32 %v4605, %v4609
    %v4611 = vadd.f32 %v4610, 0.05243302
    %v4612 = vmul.f32 %v4605, %v4611
    %v4613 = vadd.f32 %v4612, 0.18741608
    %v4614 = vmul.f32 %v4605, %v4613
    %v4615 = vadd.f32 %v4614, 1.1283791
    %v4616 = vmul.f32 %v4120, %v4615
    %v4617 = vmul.f32 %v4605, 3.8918573e-05
    %v4618 = vadd.f32 %v4617, 0.001143296
    %v4619 = vmul.f32 %v4605, %v4618
    %v4620 = vadd.f32 %v4619, 0.014752088
    %v4621 = vmul.f32 %v4605, %v4620
    %v4622 = vadd.f32 %v4621, 0.112945676
    %v4623 = vmul.f32 %v4605, %v4622
    %v4624 = vadd.f32 %v4623, 0.4994258
    %v4625 = vmul.f32 %v4605, %v4624
    %v4626 = vadd.f32 %v4625, 1.0
    %v4627 = vrcp.pop %v4626
    %v4628 = vmul.f32 %v4626, %v4627
    %v4629 = vsub.f32 1.0, %v4628
    %v4630 = vmul.f32 %v4627, %v4629
    %v4631 = vadd.f32 %v4627, %v4630
    %vm4632 = vweird.f32 %v4626
    %vm4633 = vweird.f32 %v4627
    %vm4634 = vmor %vm4632, %vm4633
    %v4635 = vsel %vm4634, %v4627, %v4631
    %v4636 = vand.u32 2147483647, %v4626
    %vm4637 = vcmp.eq.f32.partialorder %v4636, 8.507059e+37
    %v4638 = vand.u32 %v4626, 2147483648
    %v4639 = vor.u32 1.1754944e-38, %v4638
    %v4640 = vsel %vm4637, %v4639, %v4635
    %v4641 = vmul.f32 %v4616, %v4640
    %v4642 = vmin.f32 %v4641, 1.0
    %v4643 = vmax.f32 %v4642, -1.0
    %v4644 = vmul.f32 %v4121, %v4121
    %v4645 = vmin.f32 16.0, %v4644
    %v4646 = vmul.f32 %v4645, 2.1237322e-06
    %v4647 = vadd.f32 %v4646, 0.00028619796
    %v4648 = vmul.f32 %v4645, %v4647
    %v4649 = vadd.f32 %v4648, 0.0036580483
    %v4650 = vmul.f32 %v4645, %v4649
    %v4651 = vadd.f32 %v4650, 0.05243302
    %v4652 = vmul.f32 %v4645, %v4651
    %v4653 = vadd.f32 %v4652, 0.18741608
    %v4654 = vmul.f32 %v4645, %v4653
    %v4655 = vadd.f32 %v4654, 1.1283791
    %v4656 = vmul.f32 %v4121, %v4655
    %v4657 = vmul.f32 %v4645, 3.8918573e-05
    %v4658 = vadd.f32 %v4657, 0.001143296
    %v4659 = vmul.f32 %v4645, %v4658
    %v4660 = vadd.f32 %v4659, 0.014752088
    %v4661 = vmul.f32 %v4645, %v4660
    %v4662 = vadd.f32 %v4661, 0.112945676
    %v4663 = vmul.f32 %v4645, %v4662
    %v4664 = vadd.f32 %v4663, 0.4994258
    %v4665 = vmul.f32 %v4645, %v4664
    %v4666 = vadd.f32 %v4665, 1.0
    %v4667 = vrcp.pop %v4666
    %v4668 = vmul.f32 %v4666, %v4667
    %v4669 = vsub.f32 1.0, %v4668
    %v4670 = vmul.f32 %v4667, %v4669
    %v4671 = vadd.f32 %v4667, %v4670
    %vm4672 = vweird.f32 %v4666
    %vm4673 = vweird.f32 %v4667
    %vm4674 = vmor %vm4672, %vm4673
    %v4675 = vsel %vm4674, %v4667, %v4671
    %v4676 = vand.u32 2147483647, %v4666
    %vm4677 = vcmp.eq.f32.partialorder %v4676, 8.507059e+37
    %v4678 = vand.u32 %v4666, 2147483648
    %v4679 = vor.u32 1.1754944e-38, %v4678
    %v4680 = vsel %vm4677, %v4679, %v4675
    %v4681 = vmul.f32 %v4656, %v4680
    %v4682 = vmin.f32 %v4681, 1.0
    %v4683 = vmax.f32 %v4682, -1.0
    %v4684 = vmul.f32 %v4122, %v4122
    %v4685 = vmin.f32 16.0, %v4684
    %v4686 = vmul.f32 %v4685, 2.1237322e-06
    %v4687 = vadd.f32 %v4686, 0.00028619796
    %v4688 = vmul.f32 %v4685, %v4687
    %v4689 = vadd.f32 %v4688, 0.0036580483
    %v4690 = vmul.f32 %v4685, %v4689
    %v4691 = vadd.f32 %v4690, 0.05243302
    %v4692 = vmul.f32 %v4685, %v4691
    %v4693 = vadd.f32 %v4692, 0.18741608
    %v4694 = vmul.f32 %v4685, %v4693
    %v4695 = vadd.f32 %v4694, 1.1283791
    %v4696 = vmul.f32 %v4122, %v4695
    %v4697 = vmul.f32 %v4685, 3.8918573e-05
    %v4698 = vadd.f32 %v4697, 0.001143296
    %v4699 = vmul.f32 %v4685, %v4698
    %v4700 = vadd.f32 %v4699, 0.014752088
    %v4701 = vmul.f32 %v4685, %v4700
    %v4702 = vadd.f32 %v4701, 0.112945676
    %v4703 = vmul.f32 %v4685, %v4702
    %v4704 = vadd.f32 %v4703, 0.4994258
    %v4705 = vmul.f32 %v4685, %v4704
    %v4706 = vadd.f32 %v4705, 1.0
    %v4707 = vrcp.pop %v4706
    %v4708 = vmul.f32 %v4706, %v4707
    %v4709 = vsub.f32 1.0, %v4708
    %v4710 = vmul.f32 %v4707, %v4709
    %v4711 = vadd.f32 %v4707, %v4710
    %vm4712 = vweird.f32 %v4706
    %vm4713 = vweird.f32 %v4707
    %vm4714 = vmor %vm4712, %vm4713
    %v4715 = vsel %vm4714, %v4707, %v4711
    %v4716 = vand.u32 2147483647, %v4706
    %vm4717 = vcmp.eq.f32.partialorder %v4716, 8.507059e+37
    %v4718 = vand.u32 %v4706, 2147483648
    %v4719 = vor.u32 1.1754944e-38, %v4718
    %v4720 = vsel %vm4717, %v4719, %v4715
    %v4721 = vmul.f32 %v4696, %v4720
    %v4722 = vmin.f32 %v4721, 1.0
    %v4723 = vmax.f32 %v4722, -1.0
    %v4724 = vmul.f32 %v4123, %v4123
    %v4725 = vmin.f32 16.0, %v4724
    %v4726 = vmul.f32 %v4725, 2.1237322e-06
    %v4727 = vadd.f32 %v4726, 0.00028619796
    %v4728 = vmul.f32 %v4725, %v4727
    %v4729 = vadd.f32 %v4728, 0.0036580483
    %v4730 = vmul.f32 %v4725, %v4729
    %v4731 = vadd.f32 %v4730, 0.05243302
    %v4732 = vmul.f32 %v4725, %v4731
    %v4733 = vadd.f32 %v4732, 0.18741608
    %v4734 = vmul.f32 %v4725, %v4733
    %v4735 = vadd.f32 %v4734, 1.1283791
    %v4736 = vmul.f32 %v4123, %v4735
    %v4737 = vmul.f32 %v4725, 3.8918573e-05
    %v4738 = vadd.f32 %v4737, 0.001143296
    %v4739 = vmul.f32 %v4725, %v4738
    %v4740 = vadd.f32 %v4739, 0.014752088
    %v4741 = vmul.f32 %v4725, %v4740
    %v4742 = vadd.f32 %v4741, 0.112945676
    %v4743 = vmul.f32 %v4725, %v4742
    %v4744 = vadd.f32 %v4743, 0.4994258
    %v4745 = vmul.f32 %v4725, %v4744
    %v4746 = vadd.f32 %v4745, 1.0
    %v4747 = vrcp.pop %v4746
    %v4748 = vmul.f32 %v4746, %v4747
    %v4749 = vsub.f32 1.0, %v4748
    %v4750 = vmul.f32 %v4747, %v4749
    %v4751 = vadd.f32 %v4747, %v4750
    %vm4752 = vweird.f32 %v4746
    %vm4753 = vweird.f32 %v4747
    %vm4754 = vmor %vm4752, %vm4753
    %v4755 = vsel %vm4754, %v4747, %v4751
    %v4756 = vand.u32 2147483647, %v4746
    %vm4757 = vcmp.eq.f32.partialorder %v4756, 8.507059e+37
    %v4758 = vand.u32 %v4746, 2147483648
    %v4759 = vor.u32 1.1754944e-38, %v4758
    %v4760 = vsel %vm4757, %v4759, %v4755
    %v4761 = vmul.f32 %v4736, %v4760
    %v4762 = vmin.f32 %v4761, 1.0
    %v4763 = vmax.f32 %v4762, -1.0
    %v4764 = vadd.f32 %v4163, 1.0
    %v4765 = vadd.f32 %v4203, 1.0
    %v4766 = vadd.f32 %v4243, 1.0
    %v4767 = vadd.f32 %v4283, 1.0
    %v4768 = vadd.f32 %v4323, 1.0
    %v4769 = vadd.f32 %v4363, 1.0
    %v4770 = vadd.f32 %v4403, 1.0
    %v4771 = vadd.f32 %v4443, 1.0
    %v4772 = vadd.f32 %v4483, 1.0
    %v4773 = vadd.f32 %v4523, 1.0
    %v4774 = vadd.f32 %v4563, 1.0
    %v4775 = vadd.f32 %v4603, 1.0
    %v4776 = vadd.f32 %v4643, 1.0
    %v4777 = vadd.f32 %v4683, 1.0
    %v4778 = vadd.f32 %v4723, 1.0
    %v4779 = vadd.f32 %v4763, 1.0
    %v4780 = vmul.f32 %v4092, %v4764
    %v4781 = vmul.f32 %v4093, %v4765
    %v4782 = vmul.f32 %v4094, %v4766
    %v4783 = vmul.f32 %v4095, %v4767
    %v4784 = vmul.f32 %v4096, %v4768
    %v4785 = vmul.f32 %v4097, %v4769
    %v4786 = vmul.f32 %v4098, %v4770
    %v4787 = vmul.f32 %v4099, %v4771
    %v4788 = vmul.f32 %v4100, %v4772
    %v4789 = vmul.f32 %v4101, %v4773
    %v4790 = vmul.f32 %v4102, %v4774
    %v4791 = vmul.f32 %v4103, %v4775
    %v4792 = vmul.f32 %v4104, %v4776
    %v4793 = vmul.f32 %v4105, %v4777
    %v4794 = vmul.f32 %v4106, %v4778
    %v4795 = vmul.f32 %v4107, %v4779
    %v4796 = vpack.c.bf16 %v4784, %v4780
    %v4797 = vpack.c.bf16 %v4785, %v4781
    %v4798 = vpack.c.bf16 %v4786, %v4782
    %v4799 = vpack.c.bf16 %v4787, %v4783
    %v4800 = vpack.c.bf16 %v4792, %v4788
    %v4801 = vpack.c.bf16 %v4793, %v4789
    %v4802 = vpack.c.bf16 %v4794, %v4790
    %v4803 = vpack.c.bf16 %v4795, %v4791
    %s4804 = scalar_lea.vmem %s11, 256
    %v4805 = vld [vmem:[%s4804] sm:$0xf]
    %v4806 = vld [vmem:[%s4804 + $0x4] sm:$0xf]
    %v4807 = vld [vmem:[%s4804 + $0x8] sm:$0xf]
    %v4808 = vld [vmem:[%s4804 + $0xc] sm:$0xf]
    %v4809 = vld [vmem:[%s4804 + $0x10] sm:$0xf]
    %v4810 = vld [vmem:[%s4804 + $0x14] sm:$0xf]
    %v4811 = vld [vmem:[%s4804 + $0x18] sm:$0xf]
    %v4812 = vld [vmem:[%s4804 + $0x1c] sm:$0xf]
    %v4813 = vld [vmem:[%s4804 + $0x20] sm:$0xf]
    %v4814 = vld [vmem:[%s4804 + $0x24] sm:$0xf]
    %v4815 = vld [vmem:[%s4804 + $0x28] sm:$0xf]
    %v4816 = vld [vmem:[%s4804 + $0x2c] sm:$0xf]
    %v4817 = vld [vmem:[%s4804 + $0x30] sm:$0xf]
    %v4818 = vld [vmem:[%s4804 + $0x34] sm:$0xf]
    %v4819 = vld [vmem:[%s4804 + $0x38] sm:$0xf]
    %v4820 = vld [vmem:[%s4804 + $0x3c] sm:$0xf]
    %v4821 = vld [vmem:[%s4804 + $0x40] sm:$0xf]
    %v4822 = vld [vmem:[%s4804 + $0x44] sm:$0xf]
    %v4823 = vld [vmem:[%s4804 + $0x48] sm:$0xf]
    %v4824 = vld [vmem:[%s4804 + $0x4c] sm:$0xf]
    %v4825 = vld [vmem:[%s4804 + $0x50] sm:$0xf]
    %v4826 = vld [vmem:[%s4804 + $0x54] sm:$0xf]
    %v4827 = vld [vmem:[%s4804 + $0x58] sm:$0xf]
    %v4828 = vld [vmem:[%s4804 + $0x5c] sm:$0xf]
    %v4829 = vld [vmem:[%s4804 + $0x60] sm:$0xf]
    %v4830 = vld [vmem:[%s4804 + $0x64] sm:$0xf]
    %v4831 = vld [vmem:[%s4804 + $0x68] sm:$0xf]
    %v4832 = vld [vmem:[%s4804 + $0x6c] sm:$0xf]
    %v4833 = vld [vmem:[%s4804 + $0x70] sm:$0xf]
    %v4834 = vld [vmem:[%s4804 + $0x74] sm:$0xf]
    %v4835 = vld [vmem:[%s4804 + $0x78] sm:$0xf]
    %v4836 = vld [vmem:[%s4804 + $0x7c] sm:$0xf]
    %v4837 = vld [vmem:[%s4804 + $0x80] sm:$0xf]
    %v4838 = vld [vmem:[%s4804 + $0x84] sm:$0xf]
    %v4839 = vld [vmem:[%s4804 + $0x88] sm:$0xf]
    %v4840 = vld [vmem:[%s4804 + $0x8c] sm:$0xf]
    %v4841 = vld [vmem:[%s4804 + $0x90] sm:$0xf]
    %v4842 = vld [vmem:[%s4804 + $0x94] sm:$0xf]
    %v4843 = vld [vmem:[%s4804 + $0x98] sm:$0xf]
    %v4844 = vld [vmem:[%s4804 + $0x9c] sm:$0xf]
    %v4845 = vld [vmem:[%s4804 + $0xa0] sm:$0xf]
    %v4846 = vld [vmem:[%s4804 + $0xa4] sm:$0xf]
    %v4847 = vld [vmem:[%s4804 + $0xa8] sm:$0xf]
    %v4848 = vld [vmem:[%s4804 + $0xac] sm:$0xf]
    %v4849 = vld [vmem:[%s4804 + $0xb0] sm:$0xf]
    %v4850 = vld [vmem:[%s4804 + $0xb4] sm:$0xf]
    %v4851 = vld [vmem:[%s4804 + $0xb8] sm:$0xf]
    %v4852 = vld [vmem:[%s4804 + $0xbc] sm:$0xf]
    %v4853 = vld [vmem:[%s4804 + $0xc0] sm:$0xf]
    %v4854 = vld [vmem:[%s4804 + $0xc4] sm:$0xf]
    %v4855 = vld [vmem:[%s4804 + $0xc8] sm:$0xf]
    %v4856 = vld [vmem:[%s4804 + $0xcc] sm:$0xf]
    %v4857 = vld [vmem:[%s4804 + $0xd0] sm:$0xf]
    %v4858 = vld [vmem:[%s4804 + $0xd4] sm:$0xf]
    %v4859 = vld [vmem:[%s4804 + $0xd8] sm:$0xf]
    %v4860 = vld [vmem:[%s4804 + $0xdc] sm:$0xf]
    %v4861 = vld [vmem:[%s4804 + $0xe0] sm:$0xf]
    %v4862 = vld [vmem:[%s4804 + $0xe4] sm:$0xf]
    %v4863 = vld [vmem:[%s4804 + $0xe8] sm:$0xf]
    %v4864 = vld [vmem:[%s4804 + $0xec] sm:$0xf]
    %v4865 = vld [vmem:[%s4804 + $0xf0] sm:$0xf]
    %v4866 = vld [vmem:[%s4804 + $0xf4] sm:$0xf]
    %v4867 = vld [vmem:[%s4804 + $0xf8] sm:$0xf]
    %v4868 = vld [vmem:[%s4804 + $0xfc] sm:$0xf]
    %s4869 = scalar_lea.vmem %s12, 1
    %v4870 = vld [vmem:[%s4869] sm:$0x1]
    %v4872 = vperm.slane %v4870, 0
    %v4938 = vunpack.c.l.b16 %v4805
    %v4939 = vunpack.c.l.b16 %v4806
    %v4940 = vunpack.c.l.b16 %v4807
    %v4941 = vunpack.c.l.b16 %v4808
    %v4942 = vunpack.c.l.b16 %v4809
    %v4943 = vunpack.c.l.b16 %v4810
    %v4944 = vunpack.c.l.b16 %v4811
    %v4945 = vunpack.c.l.b16 %v4812
    %v4946 = vunpack.c.l.b16 %v4813
    %v4947 = vunpack.c.l.b16 %v4814
    %v4948 = vunpack.c.l.b16 %v4815
    %v4949 = vunpack.c.l.b16 %v4816
    %v4950 = vunpack.c.l.b16 %v4817
    %v4951 = vunpack.c.l.b16 %v4818
    %v4952 = vunpack.c.l.b16 %v4819
    %v4953 = vunpack.c.l.b16 %v4820
    %v4954 = vunpack.c.l.b16 %v4821
    %v4955 = vunpack.c.l.b16 %v4822
    %v4956 = vunpack.c.l.b16 %v4823
    %v4957 = vunpack.c.l.b16 %v4824
    %v4958 = vunpack.c.l.b16 %v4825
    %v4959 = vunpack.c.l.b16 %v4826
    %v4960 = vunpack.c.l.b16 %v4827
    %v4961 = vunpack.c.l.b16 %v4828
    %v4962 = vunpack.c.l.b16 %v4829
    %v4963 = vunpack.c.l.b16 %v4830
    %v4964 = vunpack.c.l.b16 %v4831
    %v4965 = vunpack.c.l.b16 %v4832
    %v4966 = vunpack.c.l.b16 %v4833
    %v4967 = vunpack.c.l.b16 %v4834
    %v4968 = vunpack.c.l.b16 %v4835
    %v4969 = vunpack.c.l.b16 %v4836
    %v4970 = vunpack.c.l.b16 %v4837
    %v4971 = vunpack.c.l.b16 %v4838
    %v4972 = vunpack.c.l.b16 %v4839
    %v4973 = vunpack.c.l.b16 %v4840
    %v4974 = vunpack.c.l.b16 %v4841
    %v4975 = vunpack.c.l.b16 %v4842
    %v4976 = vunpack.c.l.b16 %v4843
    %v4977 = vunpack.c.l.b16 %v4844
    %v4978 = vunpack.c.l.b16 %v4845
    %v4979 = vunpack.c.l.b16 %v4846
    %v4980 = vunpack.c.l.b16 %v4847
    %v4981 = vunpack.c.l.b16 %v4848
    %v4982 = vunpack.c.l.b16 %v4849
    %v4983 = vunpack.c.l.b16 %v4850
    %v4984 = vunpack.c.l.b16 %v4851
    %v4985 = vunpack.c.l.b16 %v4852
    %v4986 = vunpack.c.l.b16 %v4853
    %v4987 = vunpack.c.l.b16 %v4854
    %v4988 = vunpack.c.l.b16 %v4855
    %v4989 = vunpack.c.l.b16 %v4856
    %v4990 = vunpack.c.l.b16 %v4857
    %v4991 = vunpack.c.l.b16 %v4858
    %v4992 = vunpack.c.l.b16 %v4859
    %v4993 = vunpack.c.l.b16 %v4860
    %v4994 = vunpack.c.l.b16 %v4861
    %v4995 = vunpack.c.l.b16 %v4862
    %v4996 = vunpack.c.l.b16 %v4863
    %v4997 = vunpack.c.l.b16 %v4864
    %v4998 = vunpack.c.l.b16 %v4865
    %v4999 = vunpack.c.l.b16 %v4866
    %v5000 = vunpack.c.l.b16 %v4867
    %v5001 = vunpack.c.l.b16 %v4868
    %v5002 = vpack.c.b16 %v4939, %v4938
    %v5003 = vpack.c.b16 %v4941, %v4940
    %v5004 = vpack.c.b16 %v4943, %v4942
    %v5005 = vpack.c.b16 %v4945, %v4944
    %v5006 = vpack.c.b16 %v4947, %v4946
    %v5007 = vpack.c.b16 %v4949, %v4948
    %v5008 = vpack.c.b16 %v4951, %v4950
    %v5009 = vpack.c.b16 %v4953, %v4952
    %v5010 = vpack.c.b16 %v4955, %v4954
    %v5011 = vpack.c.b16 %v4957, %v4956
    %v5012 = vpack.c.b16 %v4959, %v4958
    %v5013 = vpack.c.b16 %v4961, %v4960
    %v5014 = vpack.c.b16 %v4963, %v4962
    %v5015 = vpack.c.b16 %v4965, %v4964
    %v5016 = vpack.c.b16 %v4967, %v4966
    %v5017 = vpack.c.b16 %v4969, %v4968
    %v5018 = vpack.c.b16 %v4971, %v4970
    %v5019 = vpack.c.b16 %v4973, %v4972
    %v5020 = vpack.c.b16 %v4975, %v4974
    %v5021 = vpack.c.b16 %v4977, %v4976
    %v5022 = vpack.c.b16 %v4979, %v4978
    %v5023 = vpack.c.b16 %v4981, %v4980
    %v5024 = vpack.c.b16 %v4983, %v4982
    %v5025 = vpack.c.b16 %v4985, %v4984
    %v5026 = vpack.c.b16 %v4987, %v4986
    %v5027 = vpack.c.b16 %v4989, %v4988
    %v5028 = vpack.c.b16 %v4991, %v4990
    %v5029 = vpack.c.b16 %v4993, %v4992
    %v5030 = vpack.c.b16 %v4995, %v4994
    %v5031 = vpack.c.b16 %v4997, %v4996
    %v5032 = vpack.c.b16 %v4999, %v4998
    %v5033 = vpack.c.b16 %v5001, %v5000
    %5066 = vmatpush.bf16.msra.mxu0 %v5009
    %5067 = vmatpush.bf16.msra.mxu0 %v5008
    %5068 = vmatpush.bf16.msra.mxu0 %v5007
    %5069 = vmatpush.bf16.msra.mxu0 %v5006
    %5070 = vmatpush.bf16.msra.mxu0 %v5005
    %5071 = vmatpush.bf16.msra.mxu0 %v5004
    %5072 = vmatpush.bf16.msra.mxu0 %v5003
    %5073 = vmatpush.bf16.msra.mxu0 %v5002
    %5074 = vmatmul.bf16.gmra.mxu0 %v4796
    %v5075 = vpop.f32.mrf.mxu0
    %v5076 = vadd.f32 %v4872, %v5075
    %v5077 = vpop.f32.mrf.mxu0
    %v5078 = vadd.f32 %v4872, %v5077
    %5079 = vmatmul.bf16.gmra.mxu0 %v4800
    %v5080 = vpop.f32.mrf.mxu0
    %v5081 = vadd.f32 %v4872, %v5080
    %v5082 = vpop.f32.mrf.mxu0
    %v5083 = vadd.f32 %v4872, %v5082
    %5084 = vdwg.mxu0
    %5085 = vmatpush.bf16.msra.mxu0 %v5017
    %5086 = vmatpush.bf16.msra.mxu0 %v5016
    %5087 = vmatpush.bf16.msra.mxu0 %v5015
    %5088 = vmatpush.bf16.msra.mxu0 %v5014
    %5089 = vmatpush.bf16.msra.mxu0 %v5013
    %5090 = vmatpush.bf16.msra.mxu0 %v5012
    %5091 = vmatpush.bf16.msra.mxu0 %v5011
    %5092 = vmatpush.bf16.msra.mxu0 %v5010
    %5093 = vmatmul.bf16.gmra.mxu0 %v4797
    %v5094 = vpop.f32.mrf.mxu0
    %v5095 = vadd.f32 %v5076, %v5094
    %v5096 = vpop.f32.mrf.mxu0
    %v5097 = vadd.f32 %v5078, %v5096
    %5098 = vmatmul.bf16.gmra.mxu0 %v4801
    %v5099 = vpop.f32.mrf.mxu0
    %v5100 = vadd.f32 %v5081, %v5099
    %v5101 = vpop.f32.mrf.mxu0
    %v5102 = vadd.f32 %v5083, %v5101
    %5103 = vdwg.mxu0
    %5104 = vmatpush.bf16.msra.mxu0 %v5025
    %5105 = vmatpush.bf16.msra.mxu0 %v5024
    %5106 = vmatpush.bf16.msra.mxu0 %v5023
    %5107 = vmatpush.bf16.msra.mxu0 %v5022
    %5108 = vmatpush.bf16.msra.mxu0 %v5021
    %5109 = vmatpush.bf16.msra.mxu0 %v5020
    %5110 = vmatpush.bf16.msra.mxu0 %v5019
    %5111 = vmatpush.bf16.msra.mxu0 %v5018
    %5112 = vmatmul.bf16.gmra.mxu0 %v4798
    %v5113 = vpop.f32.mrf.mxu0
    %v5114 = vadd.f32 %v5095, %v5113
    %v5115 = vpop.f32.mrf.mxu0
    %v5116 = vadd.f32 %v5097, %v5115
    %5117 = vmatmul.bf16.gmra.mxu0 %v4802
    %v5118 = vpop.f32.mrf.mxu0
    %v5119 = vadd.f32 %v5100, %v5118
    %v5120 = vpop.f32.mrf.mxu0
    %v5121 = vadd.f32 %v5102, %v5120
    %5122 = vdwg.mxu0
    %5123 = vmatpush.bf16.msra.mxu0 %v5033
    %5124 = vmatpush.bf16.msra.mxu0 %v5032
    %5125 = vmatpush.bf16.msra.mxu0 %v5031
    %5126 = vmatpush.bf16.msra.mxu0 %v5030
    %5127 = vmatpush.bf16.msra.mxu0 %v5029
    %5128 = vmatpush.bf16.msra.mxu0 %v5028
    %5129 = vmatpush.bf16.msra.mxu0 %v5027
    %5130 = vmatpush.bf16.msra.mxu0 %v5026
    %5131 = vmatmul.bf16.gmra.mxu0 %v4799
    %v5132 = vpop.f32.mrf.mxu0
    %v5133 = vadd.f32 %v5114, %v5132
    %v5134 = vpop.f32.mrf.mxu0
    %v5135 = vadd.f32 %v5116, %v5134
    %5136 = vmatmul.bf16.gmra.mxu0 %v4803
    %v5137 = vpop.f32.mrf.mxu0
    %v5138 = vadd.f32 %v5119, %v5137
    %v5139 = vpop.f32.mrf.mxu0
    %v5140 = vadd.f32 %v5121, %v5139
    %5141 = vdwg.mxu0
    %v5142 = vadd.f32 %v3806, %v5133
    %v5143 = vadd.f32 %v3807, %v5135
    %v5144 = vadd.f32 %v3808, %v5138
    %v5145 = vadd.f32 %v3809, %v5140
    %s5146 = scalar_lea.vmem %s13, 1
    %v5147 = vld [vmem:[%s5146] sm:$0x1]
    %s5148 = scalar_lea.vmem %s14, 1
    %v5149 = vld [vmem:[%s5148] sm:$0x1]
    %5150 = vadd.xlane.f32.xlu0 %v5142
    %v5151 = vpop.xlane.xlu0 %5150
    %5152 = vadd.xlane.f32.xlu0 %v5143
    %v5153 = vpop.xlane.xlu0 %5152
    %5154 = vadd.xlane.f32.xlu0 %v5144
    %v5155 = vpop.xlane.xlu0 %5154
    %5156 = vadd.xlane.f32.xlu0 %v5145
    %v5157 = vpop.xlane.xlu0 %5156
    %v5158 = vmul.f32 %v5151, %v1199
    %v5159 = vmul.f32 %v5153, %v1199
    %v5160 = vmul.f32 %v5155, %v1199
    %v5161 = vmul.f32 %v5157, %v1199
    %v5162 = vsub.f32 %v5142, %v5158
    %v5163 = vsub.f32 %v5143, %v5159
    %v5164 = vsub.f32 %v5144, %v5160
    %v5165 = vsub.f32 %v5145, %v5161
    %v5166 = vmul.f32 %v5162, %v5162
    %v5167 = vmul.f32 %v5163, %v5163
    %v5168 = vmul.f32 %v5164, %v5164
    %v5169 = vmul.f32 %v5165, %v5165
    %5170 = vadd.xlane.f32.xlu0 %v5166
    %v5171 = vpop.xlane.xlu0 %5170
    %5172 = vadd.xlane.f32.xlu0 %v5167
    %v5173 = vpop.xlane.xlu0 %5172
    %5174 = vadd.xlane.f32.xlu0 %v5168
    %v5175 = vpop.xlane.xlu0 %5174
    %5176 = vadd.xlane.f32.xlu0 %v5169
    %v5177 = vpop.xlane.xlu0 %5176
    %v5178 = vmul.f32 %v5171, %v1199
    %v5179 = vmul.f32 %v5173, %v1199
    %v5180 = vmul.f32 %v5175, %v1199
    %v5181 = vmul.f32 %v5177, %v1199
    %v5182 = vadd.f32 %v5178, 1e-05
    %v5183 = vadd.f32 %v5179, 1e-05
    %v5184 = vadd.f32 %v5180, 1e-05
    %v5185 = vadd.f32 %v5181, 1e-05
    %v5186 = vrsqrt.pop %v5182
    %v5187 = vmul.f32 %v5186, %v5182
    %v5188 = vmul.f32 %v5187, %v5186
    %v5189 = vmul.f32 0.5, %v5188
    %v5190 = vsub.f32 1.5, %v5189
    %v5191 = vmul.f32 %v5186, %v5190
    %vm5192 = vweird.f32 %v5182
    %vm5193 = vweird.f32 %v5186
    %vm5194 = vmor %vm5192, %vm5193
    %v5195 = vsel %vm5194, %v5186, %v5191
    %v5196 = vrsqrt.pop %v5183
    %v5197 = vmul.f32 %v5196, %v5183
    %v5198 = vmul.f32 %v5197, %v5196
    %v5199 = vmul.f32 0.5, %v5198
    %v5200 = vsub.f32 1.5, %v5199
    %v5201 = vmul.f32 %v5196, %v5200
    %vm5202 = vweird.f32 %v5183
    %vm5203 = vweird.f32 %v5196
    %vm5204 = vmor %vm5202, %vm5203
    %v5205 = vsel %vm5204, %v5196, %v5201
    %v5206 = vrsqrt.pop %v5184
    %v5207 = vmul.f32 %v5206, %v5184
    %v5208 = vmul.f32 %v5207, %v5206
    %v5209 = vmul.f32 0.5, %v5208
    %v5210 = vsub.f32 1.5, %v5209
    %v5211 = vmul.f32 %v5206, %v5210
    %vm5212 = vweird.f32 %v5184
    %vm5213 = vweird.f32 %v5206
    %vm5214 = vmor %vm5212, %vm5213
    %v5215 = vsel %vm5214, %v5206, %v5211
    %v5216 = vrsqrt.pop %v5185
    %v5217 = vmul.f32 %v5216, %v5185
    %v5218 = vmul.f32 %v5217, %v5216
    %v5219 = vmul.f32 0.5, %v5218
    %v5220 = vsub.f32 1.5, %v5219
    %v5221 = vmul.f32 %v5216, %v5220
    %vm5222 = vweird.f32 %v5185
    %vm5223 = vweird.f32 %v5216
    %vm5224 = vmor %vm5222, %vm5223
    %v5225 = vsel %vm5224, %v5216, %v5221
    %v5226 = vmul.f32 %v5162, %v5195
    %v5227 = vmul.f32 %v5163, %v5205
    %v5228 = vmul.f32 %v5164, %v5215
    %v5229 = vmul.f32 %v5165, %v5225
    %v5231 = vperm.slane %v5147, 0
    %v5233 = vmul.f32 %v5226, %v5231
    %v5234 = vmul.f32 %v5227, %v5231
    %v5235 = vmul.f32 %v5228, %v5231
    %v5236 = vmul.f32 %v5229, %v5231
    %v5238 = vperm.slane %v5149, 0
    %v5240 = vadd.f32 %v5233, %v5238
    %v5241 = vadd.f32 %v5234, %v5238
    %v5242 = vadd.f32 %v5235, %v5238
    %v5243 = vadd.f32 %v5236, %v5238
    %v5244 = vld [vmem:[%s15] sm:$0x1]
    %v5245 = vld [vmem:[%s16] sm:$0x1]
    %5246 = vadd.xlane.f32.xlu0 %v5240
    %v5247 = vpop.xlane.xlu0 %5246
    %5248 = vadd.xlane.f32.xlu0 %v5241
    %v5249 = vpop.xlane.xlu0 %5248
    %5250 = vadd.xlane.f32.xlu0 %v5242
    %v5251 = vpop.xlane.xlu0 %5250
    %5252 = vadd.xlane.f32.xlu0 %v5243
    %v5253 = vpop.xlane.xlu0 %5252
    %v5254 = vmul.f32 %v5247, %v1199
    %v5255 = vmul.f32 %v5249, %v1199
    %v5256 = vmul.f32 %v5251, %v1199
    %v5257 = vmul.f32 %v5253, %v1199
    %v5258 = vsub.f32 %v5240, %v5254
    %v5259 = vsub.f32 %v5241, %v5255
    %v5260 = vsub.f32 %v5242, %v5256
    %v5261 = vsub.f32 %v5243, %v5257
    %v5262 = vmul.f32 %v5258, %v5258
    %v5263 = vmul.f32 %v5259, %v5259
    %v5264 = vmul.f32 %v5260, %v5260
    %v5265 = vmul.f32 %v5261, %v5261
    %5266 = vadd.xlane.f32.xlu0 %v5262
    %v5267 = vpop.xlane.xlu0 %5266
    %5268 = vadd.xlane.f32.xlu0 %v5263
    %v5269 = vpop.xlane.xlu0 %5268
    %5270 = vadd.xlane.f32.xlu0 %v5264
    %v5271 = vpop.xlane.xlu0 %5270
    %5272 = vadd.xlane.f32.xlu0 %v5265
    %v5273 = vpop.xlane.xlu0 %5272
    %v5274 = vmul.f32 %v5267, %v1199
    %v5275 = vmul.f32 %v5269, %v1199
    %v5276 = vmul.f32 %v5271, %v1199
    %v5277 = vmul.f32 %v5273, %v1199
    %v5278 = vadd.f32 %v5274, 1e-05
    %v5279 = vadd.f32 %v5275, 1e-05
    %v5280 = vadd.f32 %v5276, 1e-05
    %v5281 = vadd.f32 %v5277, 1e-05
    %v5282 = vrsqrt.pop %v5278
    %v5283 = vmul.f32 %v5282, %v5278
    %v5284 = vmul.f32 %v5283, %v5282
    %v5285 = vmul.f32 0.5, %v5284
    %v5286 = vsub.f32 1.5, %v5285
    %v5287 = vmul.f32 %v5282, %v5286
    %vm5288 = vweird.f32 %v5278
    %vm5289 = vweird.f32 %v5282
    %vm5290 = vmor %vm5288, %vm5289
    %v5291 = vsel %vm5290, %v5282, %v5287
    %v5292 = vrsqrt.pop %v5279
    %v5293 = vmul.f32 %v5292, %v5279
    %v5294 = vmul.f32 %v5293, %v5292
    %v5295 = vmul.f32 0.5, %v5294
    %v5296 = vsub.f32 1.5, %v5295
    %v5297 = vmul.f32 %v5292, %v5296
    %vm5298 = vweird.f32 %v5279
    %vm5299 = vweird.f32 %v5292
    %vm5300 = vmor %vm5298, %vm5299
    %v5301 = vsel %vm5300, %v5292, %v5297
    %v5302 = vrsqrt.pop %v5280
    %v5303 = vmul.f32 %v5302, %v5280
    %v5304 = vmul.f32 %v5303, %v5302
    %v5305 = vmul.f32 0.5, %v5304
    %v5306 = vsub.f32 1.5, %v5305
    %v5307 = vmul.f32 %v5302, %v5306
    %vm5308 = vweird.f32 %v5280
    %vm5309 = vweird.f32 %v5302
    %vm5310 = vmor %vm5308, %vm5309
    %v5311 = vsel %vm5310, %v5302, %v5307
    %v5312 = vrsqrt.pop %v5281
    %v5313 = vmul.f32 %v5312, %v5281
    %v5314 = vmul.f32 %v5313, %v5312
    %v5315 = vmul.f32 0.5, %v5314
    %v5316 = vsub.f32 1.5, %v5315
    %v5317 = vmul.f32 %v5312, %v5316
    %vm5318 = vweird.f32 %v5281
    %vm5319 = vweird.f32 %v5312
    %vm5320 = vmor %vm5318, %vm5319
    %v5321 = vsel %vm5320, %v5312, %v5317
    %v5322 = vmul.f32 %v5258, %v5291
    %v5323 = vmul.f32 %v5259, %v5301
    %v5324 = vmul.f32 %v5260, %v5311
    %v5325 = vmul.f32 %v5261, %v5321
    %v5327 = vperm.slane %v5244, 0
    %v5329 = vmul.f32 %v5322, %v5327
    %v5330 = vmul.f32 %v5323, %v5327
    %v5331 = vmul.f32 %v5324, %v5327
    %v5332 = vmul.f32 %v5325, %v5327
    %v5334 = vperm.slane %v5245, 0
    %v5336 = vadd.f32 %v5329, %v5334
    %v5337 = vadd.f32 %v5330, %v5334
    %v5338 = vadd.f32 %v5331, %v5334
    %v5339 = vadd.f32 %v5332, %v5334
    %v5340 = vpack.c.bf16 %v5337, %v5336
    %v5341 = vpack.c.bf16 %v5339, %v5338
    %v5342 = vld [vmem:[%s17] sm:$0xf]
    %v5343 = vld [vmem:[%s17 + $0x4] sm:$0xf]
    %v5344 = vld [vmem:[%s17 + $0x8] sm:$0xf]
    %v5345 = vld [vmem:[%s17 + $0xc] sm:$0xf]
    %v5346 = vld [vmem:[%s17 + $0x10] sm:$0xf]
    %v5347 = vld [vmem:[%s17 + $0x14] sm:$0xf]
    %v5348 = vld [vmem:[%s17 + $0x18] sm:$0xf]
    %v5349 = vld [vmem:[%s17 + $0x1c] sm:$0xf]
    %v5350 = vld [vmem:[%s17 + $0x20] sm:$0xf]
    %v5351 = vld [vmem:[%s17 + $0x24] sm:$0xf]
    %v5352 = vld [vmem:[%s17 + $0x28] sm:$0xf]
    %v5353 = vld [vmem:[%s17 + $0x2c] sm:$0xf]
    %v5354 = vld [vmem:[%s17 + $0x30] sm:$0xf]
    %v5355 = vld [vmem:[%s17 + $0x34] sm:$0xf]
    %v5356 = vld [vmem:[%s17 + $0x38] sm:$0xf]
    %v5357 = vld [vmem:[%s17 + $0x3c] sm:$0xf]
    %v5358 = vld [vmem:[%s18] sm:$0x1]
    %v5360 = vperm.slane %v5358, 0
    %v5378 = vunpack.c.l.b16 %v5342
    %v5379 = vunpack.c.l.b16 %v5343
    %v5380 = vunpack.c.l.b16 %v5344
    %v5381 = vunpack.c.l.b16 %v5345
    %v5382 = vunpack.c.l.b16 %v5346
    %v5383 = vunpack.c.l.b16 %v5347
    %v5384 = vunpack.c.l.b16 %v5348
    %v5385 = vunpack.c.l.b16 %v5349
    %v5386 = vunpack.c.l.b16 %v5350
    %v5387 = vunpack.c.l.b16 %v5351
    %v5388 = vunpack.c.l.b16 %v5352
    %v5389 = vunpack.c.l.b16 %v5353
    %v5390 = vunpack.c.l.b16 %v5354
    %v5391 = vunpack.c.l.b16 %v5355
    %v5392 = vunpack.c.l.b16 %v5356
    %v5393 = vunpack.c.l.b16 %v5357
    %v5394 = vpack.c.b16 %v5379, %v5378
    %v5395 = vpack.c.b16 %v5381, %v5380
    %v5396 = vpack.c.b16 %v5383, %v5382
    %v5397 = vpack.c.b16 %v5385, %v5384
    %v5398 = vpack.c.b16 %v5387, %v5386
    %v5399 = vpack.c.b16 %v5389, %v5388
    %v5400 = vpack.c.b16 %v5391, %v5390
    %v5401 = vpack.c.b16 %v5393, %v5392
    %5410 = vmatpush.bf16.msra.mxu0 %v5401
    %5411 = vmatpush.bf16.msra.mxu0 %v5400
    %5412 = vmatpush.bf16.msra.mxu0 %v5399
    %5413 = vmatpush.bf16.msra.mxu0 %v5398
    %5414 = vmatpush.bf16.msra.mxu0 %v5397
    %5415 = vmatpush.bf16.msra.mxu0 %v5396
    %5416 = vmatpush.bf16.msra.mxu0 %v5395
    %5417 = vmatpush.bf16.msra.mxu0 %v5394
    %5418 = vmatmul.bf16.gmra.mxu0 %v5340
    %v5419 = vpop.f32.mrf.mxu0
    %v5420 = vadd.f32 %v5360, %v5419
    %v5421 = vpop.f32.mrf.mxu0
    %v5422 = vadd.f32 %v5360, %v5421
    %5423 = vmatmul.bf16.gmra.mxu0 %v5341
    %v5424 = vpop.f32.mrf.mxu0
    %v5425 = vadd.f32 %v5360, %v5424
    %v5426 = vpop.f32.mrf.mxu0
    %v5427 = vadd.f32 %v5360, %v5426
    %5428 = vdwg.mxu0
    %5429 = vst [vmem:[#allocation2] sm:$0xff] %v5420
    %5430 = vst [vmem:[#allocation2 + $0x8] sm:$0xff] %v5422
    %5431 = vst [vmem:[#allocation2 + $0x10] sm:$0xff] %v5425
    %5432 = vst [vmem:[#allocation2 + $0x18] sm:$0xff] %v5427
    // Predicated region
    $region78: #{mini_gpt2_forward.1} parent=1 // pred_check
      _
    $region79: #{mini_gpt2_forward.1} parent=1 // pred_check_branch
      %5434 = sbr.rel (0) target = $region81
    $region80: #{mini_gpt2_forward.1} parent=1 // pred_region
      %5436 = vsyncadd [#allocation3], 0
      %s5437 = sshll.u32 [#allocation2], 4
      %s5438 = int_to_ptr.vmem [resolvable:$true] %s5437
      %s5439 = sshll.u32 %s19, 4
      %s5440 = int_to_ptr.hbm [resolvable:$true] %s5439
      %5445 = dma.vmem_to_hbm [thread:$0]  %s5438, 512, %s5440, [#allocation3], 128, 128, 8
    $region81: #{mini_gpt2_forward.1} parent=1 // pred_fallthru
      _
    // Predicated region
    $region82: #{mini_gpt2_forward.1} parent=1 // pred_check
      _
    $region83: #{mini_gpt2_forward.1} parent=1 // pred_check_branch
      %5447 = sbr.rel (0) target = $region85
    $region84: #{mini_gpt2_forward.1} parent=1 // pred_region
      %5449 = dma.done [#allocation3], 512
    $region85: #{mini_gpt2_forward.1} parent=1 // pred_fallthru
      _
    %5450 = vsyncpa [#allocation3], 1

</llo_original>
